<compile_context>
chip_gen: v6e
topology: v6e:2x2x1
jax: 0.10.0
libtpu: 0.0.40
codegen_flags: <defaults>
</compile_context>

<pallas_src>
import jax
import jax.numpy as jnp
from jax.experimental import pallas as pl
from jax.experimental.pallas import tpu as pltpu

_LN_EPS = 1e-6
_BN_EPS = 1e-5


# ---------------------------------------------------------------------------
# helpers usable inside kernels
# ---------------------------------------------------------------------------

def _gelu_tanh(x):
    # tanh-approximate GELU (EUP tanh).
    c = 0.7978845608028654  # sqrt(2/pi)
    return 0.5 * x * (1.0 + jnp.tanh(c * (x + 0.044715 * x * x * x)))


def _hw_indices(H, W):
    """(1, H*W) int32 row / col index of each flattened spatial position."""
    H, W = int(H), int(W)
    HW = H * W
    pos = jax.lax.broadcasted_iota(jnp.int32, (1, HW), 1)
    if (W & (W - 1)) == 0:  # power-of-two fast path: no vector int div/mod
        shift = W.bit_length() - 1
        return pos >> shift, pos & (W - 1)
    h_idx = pos // W
    return h_idx, pos - h_idx * W


def _layernorm_cf(x, gamma, beta):
    """channels_first LayerNorm over the (sublane) channel axis of (C, HW)."""
    u = jnp.mean(x, axis=0, keepdims=True)
    xc = x - u
    var = jnp.mean(xc * xc, axis=0, keepdims=True)
    return gamma * (xc * jax.lax.rsqrt(var + _LN_EPS)) + beta


def _flat_roll(v, shift, size):
    """Circular roll along the flattened spatial (lane) axis, jnp.roll-style."""
    s = shift % size
    if s == 0:
        return v
    return pltpu.roll(v, s, axis=1)


# ---------------------------------------------------------------------------
# kernels
# ---------------------------------------------------------------------------

def _make_hire_branch_kernel(*, H, W, roll_axis, a_index, step=1):
    """Fused: norm1 -> circular roll -> 1x1(BN folded)+ReLU -> 1x1+bias ->
    roll back -> global mean -> reweight MLP -> 3-way softmax gate -> proj."""
    HW = H * W

    def kernel(x_ref, g_ref, b_ref, w1_ref, b1_ref, w2_ref, b2_ref,
               rw1t_ref, rb1_ref, rw2_ref, rb2_ref, wp_ref, bp_ref, o_ref):
        h_idx, w_idx = _hw_indices(H, W)

        def roll_w(v, s):
            # output[h, w] = input[h, (w - s) mod W], done on the flat layout
            sm = s % W
            if sm == 0:
                return v
            return jnp.where(w_idx < sm,
                             _flat_roll(v, sm - W, HW),
                             _flat_roll(v, sm, HW))

        def roll_h(v, s):
            # output[h, w] = input[(h - s) mod H, w]
            sm = s % H
            if sm == 0:
                return v
            return jnp.where(h_idx < sm,
                             _flat_roll(v, (sm - H) * W, HW),
                             _flat_roll(v, sm * W, HW))

        roll_fn = roll_w if roll_axis == "w" else roll_h

        # norm1 (recomputed per branch to avoid an extra HBM round trip).
        y = _layernorm_cf(x_ref[0], g_ref[...], b_ref[...])       # (C, HW) f32

        # cross-region rearrangement: circular roll by +step
        h = roll_fn(y, step)

        # mlp_*1 (bias-free 1x1 with eval-BatchNorm folded in) + ReLU
        h = jnp.dot(w1_ref[...], h.astype(jnp.bfloat16),
                    preferred_element_type=jnp.float32) + b1_ref[...]
        h = jnp.maximum(h, 0.0)

        # mlp_*2 (1x1 + bias)
        h = jnp.dot(w2_ref[...], h.astype(jnp.bfloat16),
                    preferred_element_type=jnp.float32) + b2_ref[...]

        # roll back by -step
        h = roll_fn(h, -step)

        # reweight: global average pool -> Mlp(C -> C//4 -> 3C) -> per-channel
        # softmax over the 3 gates; this branch uses gate `a_index`.
        a_vec = jnp.mean(h, axis=1, keepdims=True)                # (C, 1)
        t = jnp.sum(rw1t_ref[...] * a_vec, axis=0, keepdims=True) + rb1_ref[...]
        t = _gelu_tanh(t)                                         # (1, C//4)
        logits = [jnp.sum(rw2_ref[k] * t, axis=1, keepdims=True) + rb2_ref[k]
                  for k in range(3)]                              # 3 x (C, 1)
        m = jnp.maximum(jnp.maximum(logits[0], logits[1]), logits[2])
        exps = [jnp.exp(l - m) for l in logits]
        gate = exps[a_index] / (exps[0] + exps[1] + exps[2])      # (C, 1)

        # gate and project (1x1 + bias)
        h = h * gate
        out = jnp.dot(wp_ref[...], h.astype(jnp.bfloat16),
                      preferred_element_type=jnp.float32) + bp_ref[...]
        o_ref[0] = out.astype(o_ref.dtype)

    return kernel


def _make_conv3x3_kernel(*, H, W, act=None, pre_ln=False):
    """3x3 same-padding conv in NC(HW) orientation: 9 taps of
    (Cout, Cin) @ (Cin, H*W) bf16 MXU matmuls on lane-rolled windows; the zero
    padding is realized with an iota validity mask (no padded input copy).
    Optionally fuses a channels_first LayerNorm on the input (norm2) and a
    GELU on the output."""
    HW = H * W

    def kernel(*refs):
        if pre_ln:
            x_ref, w_ref, b_ref, g_ref, beta_ref, o_ref = refs
        else:
            x_ref, w_ref, b_ref, o_ref = refs

        x = x_ref[0]                                              # (Cin, HW) f32
        if pre_ln:
            x = _layernorm_cf(x, g_ref[...], beta_ref[...])

        h_idx, w_idx = _hw_indices(H, W)
        cout = o_ref.shape[1]
        acc = jnp.zeros((cout, HW), jnp.float32)
        for kh in range(3):
            dh = kh - 1
            for kw in range(3):
                dw = kw - 1
                delta = dh * W + dw
                tap = _flat_roll(x, -delta, HW)       # tap[p] = x[p + delta]
                conds = []
                if dh < 0:
                    conds.append(h_idx >= -dh)
                elif dh > 0:
                    conds.append(h_idx < H - dh)
                if dw < 0:
                    conds.append(w_idx >= -dw)
                elif dw > 0:
                    conds.append(w_idx < W - dw)
                if conds:
                    valid = conds[0]
                    for c in conds[1:]:
                        valid = jnp.logical_and(valid, c)
                    tap = jnp.where(valid, tap, 0.0)
                acc = acc + jnp.dot(w_ref[kh * 3 + kw],
                                    tap.astype(jnp.bfloat16),
                                    preferred_element_type=jnp.float32)
        acc = acc + b_ref[...]
        if act == "gelu":
            acc = _gelu_tanh(acc)
        o_ref[0] = acc.astype(o_ref.dtype)

    return kernel


def _fuse_expand_kernel(y1_ref, y2_ref, fw1_ref, fw2_ref, we_ref, be_ref, o_ref):
    # FusionLayer: per-channel weighted sum + 1x1 expand conv (C -> 2C)
    z = y1_ref[0] * fw1_ref[...] + y2_ref[0] * fw2_ref[...]
    out = jnp.dot(we_ref[...], z.astype(jnp.bfloat16),
                  preferred_element_type=jnp.float32) + be_ref[...]
    o_ref[0] = out.astype(o_ref.dtype)


def _conv1x1_residual_kernel(x_ref, r_ref, w_ref, b_ref, o_ref):
    # FC second conv (1x1 + bias) fused with the residual add.
    out = jnp.dot(w_ref[...], x_ref[0].astype(jnp.bfloat16),
                  preferred_element_type=jnp.float32)
    o_ref[0] = (out + b_ref[...] + r_ref[0]).astype(o_ref.dtype)


# ---------------------------------------------------------------------------
# pallas_call plumbing
# ---------------------------------------------------------------------------

def _bspec(shape):
    """Per-batch block: leading (batch) dim blocked by 1, rest full."""
    nd = len(shape)
    return pl.BlockSpec((1,) + tuple(shape[1:]),
                        lambda b, _n=nd: (b,) + (0,) * (_n - 1))


def _wspec(shape):
    """Grid-invariant full-array block (weights / per-channel params)."""
    nd = len(shape)
    return pl.BlockSpec(tuple(shape), lambda b, _n=nd: (0,) * _n)


def _call(kernel, inputs, batched, out_shape):
    B = out_shape[0]
    in_specs = [_bspec(a.shape) if bt else _wspec(a.shape)
                for a, bt in zip(inputs, batched)]
    return pl.pallas_call(
        kernel,
        out_shape=jax.ShapeDtypeStruct(out_shape, jnp.float32),
        grid_spec=pltpu.PrefetchScalarGridSpec(
            num_scalar_prefetch=0,
            grid=(B,),
            in_specs=in_specs,
            out_specs=_bspec(out_shape),
        ),
        compiler_params=pltpu.CompilerParams(
            dimension_semantics=("parallel",)),
    )(*inputs)


# ---------------------------------------------------------------------------
# parameters (PyTorch-shaped init -> TPU-friendly prepared layout)
# ---------------------------------------------------------------------------

def init_raw_params(key, dim, ffn_scale=2.0):
    """Random parameters with the same shapes as the PyTorch module."""
    hidden = int(dim * ffn_scale)
    c2, c4 = dim // 2, dim // 4
    keys = iter(jax.random.split(key, 48))

    def rand(shape, scale=0.1):
        return jax.random.normal(next(keys), shape, jnp.float32) * scale

    def branch():
        return dict(
            mlp1_w=rand((c2, dim, 1, 1)),
            bn_gamma=1.0 + rand((c2,)), bn_beta=rand((c2,)),
            bn_mean=rand((c2,)), bn_var=1.0 + jnp.abs(rand((c2,))),
            mlp2_w=rand((dim, c2, 1, 1)), mlp2_b=rand((dim,)),
            rw1_w=rand((c4, dim, 1, 1)), rw1_b=rand((c4,)),
            rw2_w=rand((dim * 3, c4, 1, 1)), rw2_b=rand((dim * 3,)),
            proj_w=rand((dim, dim, 1, 1)), proj_b=rand((dim,)),
        )

    return dict(
        norm1_g=1.0 + rand((dim,)), norm1_b=rand((dim,)),
        norm2_g=1.0 + rand((dim,)), norm2_b=rand((dim,)),
        gobal1=branch(), gobal2=branch(),
        fus_w1=jnp.full((1, dim, 1, 1), 0.5, jnp.float32),
        fus_w2=jnp.full((1, dim, 1, 1), 0.5, jnp.float32),
        fus_conv_w=rand((dim * 2, dim, 1, 1)), fus_conv_b=rand((dim * 2,)),
        red_w=rand((dim, dim * 2, 3, 3)), red_b=rand((dim,)),
        fc1_w=rand((hidden, dim, 3, 3)), fc1_b=rand((hidden,)),
        fc2_w=rand((dim, hidden, 1, 1)), fc2_b=rand((dim,)),
    )


def _conv3x3_taps(w_oihw):
    cout, cin = w_oihw.shape[0], w_oihw.shape[1]
    # (Cout, Cin, 3, 3) -> (9, Cout, Cin), tap index = kh*3 + kw
    return (jnp.transpose(w_oihw, (2, 3, 0, 1))
            .reshape(9, cout, cin).astype(jnp.bfloat16))


def _prep_branch(p, dim):
    c2, c4 = dim // 2, dim // 4
    # Fold eval-mode BatchNorm into the bias-free 1x1 conv (exact).
    s = p['bn_gamma'] / jnp.sqrt(p['bn_var'] + _BN_EPS)
    w1 = p['mlp1_w'].reshape(c2, dim) * s[:, None]
    b1 = (p['bn_beta'] - s * p['bn_mean']).reshape(c2, 1)
    rw2 = p['rw2_w'].reshape(dim * 3, c4)   # row i -> (channel i//3, gate i%3)
    return dict(
        w1=w1.astype(jnp.bfloat16), b1=b1,
        w2=p['mlp2_w'].reshape(dim, c2).astype(jnp.bfloat16),
        b2=p['mlp2_b'].reshape(dim, 1),
        rw1t=p['rw1_w'].reshape(c4, dim).T,                 # (dim, c4)
        rb1=p['rw1_b'].reshape(1, c4),
        rw2=jnp.stack([rw2[k::3, :] for k in range(3)], axis=0),        # (3, dim, c4)
        rb2=jnp.stack([p['rw2_b'][k::3].reshape(dim, 1) for k in range(3)],
                      axis=0),                                          # (3, dim, 1)
        wp=p['proj_w'].reshape(dim, dim).astype(jnp.bfloat16),
        bp=p['proj_b'].reshape(dim, 1),
    )


def prepare_params(raw, dim, ffn_scale=2.0):
    hidden = int(dim * ffn_scale)
    return dict(
        g1=raw['norm1_g'].reshape(dim, 1), b1=raw['norm1_b'].reshape(dim, 1),
        g2=raw['norm2_g'].reshape(dim, 1), b2=raw['norm2_b'].reshape(dim, 1),
        br_w=_prep_branch(raw['gobal1'], dim),
        br_h=_prep_branch(raw['gobal2'], dim),
        fw1=raw['fus_w1'].reshape(dim, 1), fw2=raw['fus_w2'].reshape(dim, 1),
        we=raw['fus_conv_w'].reshape(dim * 2, dim).astype(jnp.bfloat16),
        be=raw['fus_conv_b'].reshape(dim * 2, 1),
        w_red=_conv3x3_taps(raw['red_w']), b_red=raw['red_b'].reshape(dim, 1),
        w_fc1=_conv3x3_taps(raw['fc1_w']), b_fc1=raw['fc1_b'].reshape(hidden, 1),
        w_fc2=raw['fc2_w'].reshape(dim, hidden).astype(jnp.bfloat16),
        b_fc2=raw['fc2_b'].reshape(dim, 1),
    )


# ---------------------------------------------------------------------------
# forward
# ---------------------------------------------------------------------------

def attblock_b_forward(x_nchw, P):
    B, C, H, W = x_nchw.shape
    HW = H * W
    hidden = P['b_fc1'].shape[0]
    # Free reshape: channels stay in sublanes, H*W goes into the lane dim.
    x = x_nchw.reshape(B, C, HW)

    # gobal1 = HireMLP_w_wai (roll along W, softmax gate index 1)
    bw = P['br_w']
    y1 = _call(_make_hire_branch_kernel(H=H, W=W, roll_axis="w", a_index=1),
               (x, P['g1'], P['b1'], bw['w1'], bw['b1'], bw['w2'], bw['b2'],
                bw['rw1t'], bw['rb1'], bw['rw2'], bw['rb2'], bw['wp'], bw['bp']),
               (True,) + (False,) * 12, (B, C, HW))

    # gobal2 = HireMLP_H_wai (roll along H, softmax gate index 0)
    bh = P['br_h']
    y2 = _call(_make_hire_branch_kernel(H=H, W=W, roll_axis="h", a_index=0),
               (x, P['g1'], P['b1'], bh['w1'], bh['b1'], bh['w2'], bh['b2'],
                bh['rw1t'], bh['rb1'], bh['rw2'], bh['rb2'], bh['wp'], bh['bp']),
               (True,) + (False,) * 12, (B, C, HW))

    # FusionLayer: y1*w1 + y2*w2 -> 1x1 expand conv (C -> 2C)
    z = _call(_fuse_expand_kernel,
              (y1, y2, P['fw1'], P['fw2'], P['we'], P['be']),
              (True, True, False, False, False, False), (B, 2 * C, HW))

    # reduce_chan: 3x3 conv (2C -> C)
    r = _call(_make_conv3x3_kernel(H=H, W=W),
              (z, P['w_red'], P['b_red']),
              (True, False, False), (B, C, HW))

    # FC: norm2 -> 3x3 conv (C -> hidden) -> GELU (fused in one kernel)
    f = _call(_make_conv3x3_kernel(H=H, W=W, act="gelu", pre_ln=True),
              (r, P['w_fc1'], P['b_fc1'], P['g2'], P['b2']),
              (True, False, False, False, False), (B, hidden, HW))

    # FC second conv (1x1, hidden -> C) + residual with reduce_chan output
    out = _call(_conv1x1_residual_kernel,
                (f, r, P['w_fc2'], P['b_fc2']),
                (True, True, False, False), (B, C, HW))

    return out.reshape(B, C, H, W)


if __name__ == "__main__":
    key = jax.random.PRNGKey(0)
    k_x, k_p = jax.random.split(key)

    dim, B, H, W = 4, 2, 16, 16
    x = jax.random.normal(k_x, (B, dim, H, W), dtype=jnp.float32)
    raw = init_raw_params(k_p, dim, ffn_scale=2.0)
    P = prepare_params(raw, dim, ffn_scale=2.0)

    fwd = jax.jit(lambda xx: attblock_b_forward(xx, P))
    out = jax.block_until_ready(fwd(x))

    assert out.shape == (B, dim, H, W), out.shape
    assert bool(jnp.all(jnp.isfinite(out))), "non-finite output"
    print("KERNEL_OK")
</pallas_src>

<mosaic_0001>
module attributes {stable_mosaic.version = 11 : i64} {
  func.func @kernel(%arg0: i32, %arg1: memref<1x4x256xf32, #tpu.memory_space<vmem>>, %arg2: memref<4x1xf32, #tpu.memory_space<vmem>>, %arg3: memref<4x1xf32, #tpu.memory_space<vmem>>, %arg4: memref<2x4xbf16, #tpu.memory_space<vmem>>, %arg5: memref<2x1xf32, #tpu.memory_space<vmem>>, %arg6: memref<4x2xbf16, #tpu.memory_space<vmem>>, %arg7: memref<4x1xf32, #tpu.memory_space<vmem>>, %arg8: memref<4x1xf32, #tpu.memory_space<vmem>>, %arg9: memref<1x1xf32, #tpu.memory_space<vmem>>, %arg10: memref<3x4x1xf32, #tpu.memory_space<vmem>>, %arg11: memref<3x4x1xf32, #tpu.memory_space<vmem>>, %arg12: memref<4x4xbf16, #tpu.memory_space<vmem>>, %arg13: memref<4x1xf32, #tpu.memory_space<vmem>>, %arg14: memref<1x4x256xf32, #tpu.memory_space<vmem>>) attributes {dimension_semantics = [#tpu.dimension_semantics<parallel>], iteration_bounds = array<i64: 2>, scalar_prefetch = 0 : i64, scratch_operands = 0 : i64, tpu.core_type = #tpu.core_type<tc>, window_params = [{transform_indices = @transform_0, window_bounds = array<i64: 1, 4, 256>}, {pipeline_mode = #tpu.pipeline_mode<synchronous>, transform_indices = @transform_1, window_bounds = array<i64: 4, 1>}, {pipeline_mode = #tpu.pipeline_mode<synchronous>, transform_indices = @transform_2, window_bounds = array<i64: 4, 1>}, {pipeline_mode = #tpu.pipeline_mode<synchronous>, transform_indices = @transform_3, window_bounds = array<i64: 2, 4>}, {pipeline_mode = #tpu.pipeline_mode<synchronous>, transform_indices = @transform_4, window_bounds = array<i64: 2, 1>}, {pipeline_mode = #tpu.pipeline_mode<synchronous>, transform_indices = @transform_5, window_bounds = array<i64: 4, 2>}, {pipeline_mode = #tpu.pipeline_mode<synchronous>, transform_indices = @transform_6, window_bounds = array<i64: 4, 1>}, {pipeline_mode = #tpu.pipeline_mode<synchronous>, transform_indices = @transform_7, window_bounds = array<i64: 4, 1>}, {pipeline_mode = #tpu.pipeline_mode<synchronous>, transform_indices = @transform_8, window_bounds = array<i64: 1, 1>}, {pipeline_mode = #tpu.pipeline_mode<synchronous>, transform_indices = @transform_9, window_bounds = array<i64: 3, 4, 1>}, {pipeline_mode = #tpu.pipeline_mode<synchronous>, transform_indices = @transform_10, window_bounds = array<i64: 3, 4, 1>}, {pipeline_mode = #tpu.pipeline_mode<synchronous>, transform_indices = @transform_11, window_bounds = array<i64: 4, 4>}, {pipeline_mode = #tpu.pipeline_mode<synchronous>, transform_indices = @transform_12, window_bounds = array<i64: 4, 1>}, {transform_indices = @transform_13, window_bounds = array<i64: 1, 4, 256>}]} {
    %0 = tpu.iota {dimensions = array<i32: 1>} : vector<1x256xi32>
    %c15_i32 = arith.constant 15 : i32
    %1 = vector.broadcast %c15_i32 : i32 to vector<1x256xi32>
    %2 = arith.andi %0, %1 : vector<1x256xi32>
    %c0 = arith.constant 0 : index
    %c0_0 = arith.constant 0 : index
    %c0_1 = arith.constant 0 : index
    %3 = vector.load %arg1[%c0, %c0_0, %c0_1] : memref<1x4x256xf32, #tpu.memory_space<vmem>>, vector<1x4x256xf32>
    %4 = vector.shape_cast %3 : vector<1x4x256xf32> to vector<4x256xf32>
    %c0_2 = arith.constant 0 : index
    %c0_3 = arith.constant 0 : index
    %5 = vector.load %arg2[%c0_2, %c0_3] : memref<4x1xf32, #tpu.memory_space<vmem>>, vector<4x1xf32>
    %c0_4 = arith.constant 0 : index
    %c0_5 = arith.constant 0 : index
    %6 = vector.load %arg3[%c0_4, %c0_5] : memref<4x1xf32, #tpu.memory_space<vmem>>, vector<4x1xf32>
    %cst = arith.constant dense<0.000000e+00> : vector<256xf32>
    %7 = vector.multi_reduction <add>, %4, %cst [0] : vector<4x256xf32> to vector<256xf32>
    %8 = vector.shape_cast %7 : vector<256xf32> to vector<1x256xf32>
    %cst_6 = arith.constant 4.000000e+00 : f32
    %9 = vector.broadcast %cst_6 : f32 to vector<1x256xf32>
    %10 = arith.divf %8, %9 : vector<1x256xf32>
    %11 = vector.broadcast %10 : vector<1x256xf32> to vector<4x256xf32>
    %12 = arith.subf %4, %11 : vector<4x256xf32>
    %13 = arith.mulf %12, %12 : vector<4x256xf32>
    %cst_7 = arith.constant dense<0.000000e+00> : vector<256xf32>
    %14 = vector.multi_reduction <add>, %13, %cst_7 [0] : vector<4x256xf32> to vector<256xf32>
    %15 = vector.shape_cast %14 : vector<256xf32> to vector<1x256xf32>
    %cst_8 = arith.constant 4.000000e+00 : f32
    %16 = vector.broadcast %cst_8 : f32 to vector<1x256xf32>
    %17 = arith.divf %15, %16 : vector<1x256xf32>
    %cst_9 = arith.constant 9.99999997E-7 : f32
    %18 = vector.broadcast %cst_9 : f32 to vector<1x256xf32>
    %19 = arith.addf %17, %18 : vector<1x256xf32>
    %20 = math.rsqrt %19 : vector<1x256xf32>
    %21 = vector.broadcast %20 : vector<1x256xf32> to vector<4x256xf32>
    %22 = arith.mulf %12, %21 : vector<4x256xf32>
    %23 = vector.broadcast %5 : vector<4x1xf32> to vector<4x256xf32>
    %24 = arith.mulf %23, %22 : vector<4x256xf32>
    %25 = vector.broadcast %6 : vector<4x1xf32> to vector<4x256xf32>
    %26 = arith.addf %24, %25 : vector<4x256xf32>
    %c1_i32 = arith.constant 1 : i32
    %27 = vector.broadcast %c1_i32 : i32 to vector<1x256xi32>
    %28 = arith.cmpi slt, %2, %27 : vector<1x256xi32>
    %c241_i32 = arith.constant 241 : i32
    %29 = tpu.dynamic_rotate %26 by %c241_i32 dim 1 : vector<4x256xf32>, i32 -> vector<4x256xf32>
    %c1_i32_10 = arith.constant 1 : i32
    %30 = tpu.dynamic_rotate %26 by %c1_i32_10 dim 1 : vector<4x256xf32>, i32 -> vector<4x256xf32>
    %31 = vector.shape_cast %28 : vector<1x256xi1> to vector<1x256xi1>
    %32 = vector.broadcast %31 : vector<1x256xi1> to vector<4x256xi1>
    %33 = arith.select %32, %29, %30 : vector<4x256xi1>, vector<4x256xf32>
    %c0_11 = arith.constant 0 : index
    %c0_12 = arith.constant 0 : index
    %34 = vector.load %arg4[%c0_11, %c0_12] : memref<2x4xbf16, #tpu.memory_space<vmem>>, vector<2x4xbf16>
    %35 = arith.truncf %33 : vector<4x256xf32> to vector<4x256xbf16>
    %cst_13 = arith.constant dense<0.000000e+00> : vector<2x256xf32>
    %36 = tpu.matmul %34, %35, %cst_13 {dimension_numbers = #tpu.dot_dimension_numbers<[1], [0], [0], [1], [0, 0, 1, 1], [], []>} : vector<2x4xbf16>, vector<4x256xbf16>, vector<2x256xf32> -> vector<2x256xf32>
    %c0_14 = arith.constant 0 : index
    %c0_15 = arith.constant 0 : index
    %37 = vector.load %arg5[%c0_14, %c0_15] : memref<2x1xf32, #tpu.memory_space<vmem>>, vector<2x1xf32>
    %38 = vector.broadcast %37 : vector<2x1xf32> to vector<2x256xf32>
    %39 = arith.addf %36, %38 : vector<2x256xf32>
    %cst_16 = arith.constant 0.000000e+00 : f32
    %40 = vector.broadcast %cst_16 : f32 to vector<2x256xf32>
    %41 = arith.maximumf %39, %40 : vector<2x256xf32>
    %c0_17 = arith.constant 0 : index
    %c0_18 = arith.constant 0 : index
    %42 = vector.load %arg6[%c0_17, %c0_18] : memref<4x2xbf16, #tpu.memory_space<vmem>>, vector<4x2xbf16>
    %43 = arith.truncf %41 : vector<2x256xf32> to vector<2x256xbf16>
    %cst_19 = arith.constant dense<0.000000e+00> : vector<4x256xf32>
    %44 = tpu.matmul %42, %43, %cst_19 {dimension_numbers = #tpu.dot_dimension_numbers<[1], [0], [0], [1], [0, 0, 1, 1], [], []>} : vector<4x2xbf16>, vector<2x256xbf16>, vector<4x256xf32> -> vector<4x256xf32>
    %c0_20 = arith.constant 0 : index
    %c0_21 = arith.constant 0 : index
    %45 = vector.load %arg7[%c0_20, %c0_21] : memref<4x1xf32, #tpu.memory_space<vmem>>, vector<4x1xf32>
    %46 = vector.broadcast %45 : vector<4x1xf32> to vector<4x256xf32>
    %47 = arith.addf %44, %46 : vector<4x256xf32>
    %c15_i32_22 = arith.constant 15 : i32
    %48 = vector.broadcast %c15_i32_22 : i32 to vector<1x256xi32>
    %49 = arith.cmpi slt, %2, %48 : vector<1x256xi32>
    %c255_i32 = arith.constant 255 : i32
    %50 = tpu.dynamic_rotate %47 by %c255_i32 dim 1 : vector<4x256xf32>, i32 -> vector<4x256xf32>
    %c15_i32_23 = arith.constant 15 : i32
    %51 = tpu.dynamic_rotate %47 by %c15_i32_23 dim 1 : vector<4x256xf32>, i32 -> vector<4x256xf32>
    %52 = vector.shape_cast %49 : vector<1x256xi1> to vector<1x256xi1>
    %53 = vector.broadcast %52 : vector<1x256xi1> to vector<4x256xi1>
    %54 = arith.select %53, %50, %51 : vector<4x256xi1>, vector<4x256xf32>
    %cst_24 = arith.constant dense<0.000000e+00> : vector<4xf32>
    %55 = vector.multi_reduction <add>, %54, %cst_24 [1] : vector<4x256xf32> to vector<4xf32>
    %56 = vector.shape_cast %55 : vector<4xf32> to vector<4x1xf32>
    %cst_25 = arith.constant 2.560000e+02 : f32
    %57 = vector.broadcast %cst_25 : f32 to vector<4x1xf32>
    %58 = arith.divf %56, %57 : vector<4x1xf32>
    %c0_26 = arith.constant 0 : index
    %c0_27 = arith.constant 0 : index
    %59 = vector.load %arg8[%c0_26, %c0_27] : memref<4x1xf32, #tpu.memory_space<vmem>>, vector<4x1xf32>
    %60 = arith.mulf %59, %58 : vector<4x1xf32>
    %cst_28 = arith.constant dense<0.000000e+00> : vector<1xf32>
    %61 = vector.multi_reduction <add>, %60, %cst_28 [0] : vector<4x1xf32> to vector<1xf32>
    %62 = vector.shape_cast %61 : vector<1xf32> to vector<1x1xf32>
    %c0_29 = arith.constant 0 : index
    %c0_30 = arith.constant 0 : index
    %63 = vector.load %arg9[%c0_29, %c0_30] : memref<1x1xf32, #tpu.memory_space<vmem>>, vector<1x1xf32>
    %64 = arith.addf %62, %63 : vector<1x1xf32>
    %cst_31 = arith.constant 5.000000e-01 : f32
    %65 = vector.broadcast %cst_31 : f32 to vector<1x1xf32>
    %66 = arith.mulf %65, %64 : vector<1x1xf32>
    %cst_32 = arith.constant 4.471500e-02 : f32
    %67 = vector.broadcast %cst_32 : f32 to vector<1x1xf32>
    %68 = arith.mulf %67, %64 : vector<1x1xf32>
    %69 = arith.mulf %68, %64 : vector<1x1xf32>
    %70 = arith.mulf %69, %64 : vector<1x1xf32>
    %71 = arith.addf %64, %70 : vector<1x1xf32>
    %cst_33 = arith.constant 0.797884583 : f32
    %72 = vector.broadcast %cst_33 : f32 to vector<1x1xf32>
    %73 = arith.mulf %72, %71 : vector<1x1xf32>
    %74 = math.tanh %73 : vector<1x1xf32>
    %cst_34 = arith.constant 1.000000e+00 : f32
    %75 = vector.broadcast %cst_34 : f32 to vector<1x1xf32>
    %76 = arith.addf %75, %74 : vector<1x1xf32>
    %77 = arith.mulf %66, %76 : vector<1x1xf32>
    %c0_35 = arith.constant 0 : index
    %c0_36 = arith.constant 0 : index
    %c0_37 = arith.constant 0 : index
    %78 = vector.load %arg10[%c0_35, %c0_36, %c0_37] : memref<3x4x1xf32, #tpu.memory_space<vmem>>, vector<1x4x1xf32>
    %79 = vector.shape_cast %78 : vector<1x4x1xf32> to vector<4x1xf32>
    %80 = vector.broadcast %77 : vector<1x1xf32> to vector<4x1xf32>
    %81 = arith.mulf %79, %80 : vector<4x1xf32>
    %cst_38 = arith.constant dense<0.000000e+00> : vector<4xf32>
    %82 = vector.multi_reduction <add>, %81, %cst_38 [1] : vector<4x1xf32> to vector<4xf32>
    %83 = vector.shape_cast %82 : vector<4xf32> to vector<4x1xf32>
    %c0_39 = arith.constant 0 : index
    %c0_40 = arith.constant 0 : index
    %c0_41 = arith.constant 0 : index
    %84 = vector.load %arg11[%c0_39, %c0_40, %c0_41] : memref<3x4x1xf32, #tpu.memory_space<vmem>>, vector<1x4x1xf32>
    %85 = vector.shape_cast %84 : vector<1x4x1xf32> to vector<4x1xf32>
    %86 = arith.addf %83, %85 : vector<4x1xf32>
    %c1 = arith.constant 1 : index
    %c0_42 = arith.constant 0 : index
    %c0_43 = arith.constant 0 : index
    %87 = vector.load %arg10[%c1, %c0_42, %c0_43] : memref<3x4x1xf32, #tpu.memory_space<vmem>>, vector<1x4x1xf32>
    %88 = vector.shape_cast %87 : vector<1x4x1xf32> to vector<4x1xf32>
    %89 = vector.broadcast %77 : vector<1x1xf32> to vector<4x1xf32>
    %90 = arith.mulf %88, %89 : vector<4x1xf32>
    %cst_44 = arith.constant dense<0.000000e+00> : vector<4xf32>
    %91 = vector.multi_reduction <add>, %90, %cst_44 [1] : vector<4x1xf32> to vector<4xf32>
    %92 = vector.shape_cast %91 : vector<4xf32> to vector<4x1xf32>
    %c1_45 = arith.constant 1 : index
    %c0_46 = arith.constant 0 : index
    %c0_47 = arith.constant 0 : index
    %93 = vector.load %arg11[%c1_45, %c0_46, %c0_47] : memref<3x4x1xf32, #tpu.memory_space<vmem>>, vector<1x4x1xf32>
    %94 = vector.shape_cast %93 : vector<1x4x1xf32> to vector<4x1xf32>
    %95 = arith.addf %92, %94 : vector<4x1xf32>
    %c2 = arith.constant 2 : index
    %c0_48 = arith.constant 0 : index
    %c0_49 = arith.constant 0 : index
    %96 = vector.load %arg10[%c2, %c0_48, %c0_49] : memref<3x4x1xf32, #tpu.memory_space<vmem>>, vector<1x4x1xf32>
    %97 = vector.shape_cast %96 : vector<1x4x1xf32> to vector<4x1xf32>
    %98 = vector.broadcast %77 : vector<1x1xf32> to vector<4x1xf32>
    %99 = arith.mulf %97, %98 : vector<4x1xf32>
    %cst_50 = arith.constant dense<0.000000e+00> : vector<4xf32>
    %100 = vector.multi_reduction <add>, %99, %cst_50 [1] : vector<4x1xf32> to vector<4xf32>
    %101 = vector.shape_cast %100 : vector<4xf32> to vector<4x1xf32>
    %c2_51 = arith.constant 2 : index
    %c0_52 = arith.constant 0 : index
    %c0_53 = arith.constant 0 : index
    %102 = vector.load %arg11[%c2_51, %c0_52, %c0_53] : memref<3x4x1xf32, #tpu.memory_space<vmem>>, vector<1x4x1xf32>
    %103 = vector.shape_cast %102 : vector<1x4x1xf32> to vector<4x1xf32>
    %104 = arith.addf %101, %103 : vector<4x1xf32>
    %105 = arith.maximumf %86, %95 : vector<4x1xf32>
    %106 = arith.maximumf %105, %104 : vector<4x1xf32>
    %107 = arith.subf %86, %106 : vector<4x1xf32>
    %108 = math.exp %107 : vector<4x1xf32>
    %109 = arith.subf %95, %106 : vector<4x1xf32>
    %110 = math.exp %109 : vector<4x1xf32>
    %111 = arith.subf %104, %106 : vector<4x1xf32>
    %112 = math.exp %111 : vector<4x1xf32>
    %113 = arith.addf %108, %110 : vector<4x1xf32>
    %114 = arith.addf %113, %112 : vector<4x1xf32>
    %115 = arith.divf %110, %114 : vector<4x1xf32>
    %116 = vector.broadcast %115 : vector<4x1xf32> to vector<4x256xf32>
    %117 = arith.mulf %54, %116 : vector<4x256xf32>
    %c0_54 = arith.constant 0 : index
    %c0_55 = arith.constant 0 : index
    %118 = vector.load %arg12[%c0_54, %c0_55] : memref<4x4xbf16, #tpu.memory_space<vmem>>, vector<4x4xbf16>
    %119 = arith.truncf %117 : vector<4x256xf32> to vector<4x256xbf16>
    %cst_56 = arith.constant dense<0.000000e+00> : vector<4x256xf32>
    %120 = tpu.matmul %118, %119, %cst_56 {dimension_numbers = #tpu.dot_dimension_numbers<[1], [0], [0], [1], [0, 0, 1, 1], [], []>} : vector<4x4xbf16>, vector<4x256xbf16>, vector<4x256xf32> -> vector<4x256xf32>
    %c0_57 = arith.constant 0 : index
    %c0_58 = arith.constant 0 : index
    %121 = vector.load %arg13[%c0_57, %c0_58] : memref<4x1xf32, #tpu.memory_space<vmem>>, vector<4x1xf32>
    %122 = vector.broadcast %121 : vector<4x1xf32> to vector<4x256xf32>
    %123 = arith.addf %120, %122 : vector<4x256xf32>
    %c0_59 = arith.constant 0 : index
    %c0_60 = arith.constant 0 : index
    %c0_61 = arith.constant 0 : index
    %124 = vector.load %arg14[%c0_59, %c0_60, %c0_61] : memref<1x4x256xf32, #tpu.memory_space<vmem>>, vector<1x4x256xf32>
    %125 = vector.shape_cast %124 : vector<1x4x256xf32> to vector<4x256xf32>
    %126 = vector.shape_cast %123 : vector<4x256xf32> to vector<1x4x256xf32>
    tpu.vector_store %arg14[%c0_59, %c0_60, %c0_61], %126 {strides = array<i32>} : memref<1x4x256xf32, #tpu.memory_space<vmem>>, vector<1x4x256xf32>,
    return
  }
  func.func @transform_0(%arg0: i32) -> (i32, i32, i32) {
    %c0_i32 = arith.constant 0 : i32
    %c0_i32_0 = arith.constant 0 : i32
    %c0_i32_1 = arith.constant 0 : i32
    return %arg0, %c0_i32, %c0_i32_0 : i32, i32, i32
  }
  func.func @transform_1(%arg0: i32) -> (i32, i32) {
    %c0_i32 = arith.constant 0 : i32
    %c0_i32_0 = arith.constant 0 : i32
    %c0_i32_1 = arith.constant 0 : i32
    return %c0_i32, %c0_i32_0 : i32, i32
  }
  func.func @transform_2(%arg0: i32) -> (i32, i32) {
    %c0_i32 = arith.constant 0 : i32
    %c0_i32_0 = arith.constant 0 : i32
    %c0_i32_1 = arith.constant 0 : i32
    return %c0_i32, %c0_i32_0 : i32, i32
  }
  func.func @transform_3(%arg0: i32) -> (i32, i32) {
    %c0_i32 = arith.constant 0 : i32
    %c0_i32_0 = arith.constant 0 : i32
    %c0_i32_1 = arith.constant 0 : i32
    return %c0_i32, %c0_i32_0 : i32, i32
  }
  func.func @transform_4(%arg0: i32) -> (i32, i32) {
    %c0_i32 = arith.constant 0 : i32
    %c0_i32_0 = arith.constant 0 : i32
    %c0_i32_1 = arith.constant 0 : i32
    return %c0_i32, %c0_i32_0 : i32, i32
  }
  func.func @transform_5(%arg0: i32) -> (i32, i32) {
    %c0_i32 = arith.constant 0 : i32
    %c0_i32_0 = arith.constant 0 : i32
    %c0_i32_1 = arith.constant 0 : i32
    return %c0_i32, %c0_i32_0 : i32, i32
  }
  func.func @transform_6(%arg0: i32) -> (i32, i32) {
    %c0_i32 = arith.constant 0 : i32
    %c0_i32_0 = arith.constant 0 : i32
    %c0_i32_1 = arith.constant 0 : i32
    return %c0_i32, %c0_i32_0 : i32, i32
  }
  func.func @transform_7(%arg0: i32) -> (i32, i32) {
    %c0_i32 = arith.constant 0 : i32
    %c0_i32_0 = arith.constant 0 : i32
    %c0_i32_1 = arith.constant 0 : i32
    return %c0_i32, %c0_i32_0 : i32, i32
  }
  func.func @transform_8(%arg0: i32) -> (i32, i32) {
    %c0_i32 = arith.constant 0 : i32
    %c0_i32_0 = arith.constant 0 : i32
    %c0_i32_1 = arith.constant 0 : i32
    return %c0_i32, %c0_i32_0 : i32, i32
  }
  func.func @transform_9(%arg0: i32) -> (i32, i32, i32) {
    %c0_i32 = arith.constant 0 : i32
    %c0_i32_0 = arith.constant 0 : i32
    %c0_i32_1 = arith.constant 0 : i32
    %c0_i32_2 = arith.constant 0 : i32
    return %c0_i32, %c0_i32_0, %c0_i32_1 : i32, i32, i32
  }
  func.func @transform_10(%arg0: i32) -> (i32, i32, i32) {
    %c0_i32 = arith.constant 0 : i32
    %c0_i32_0 = arith.constant 0 : i32
    %c0_i32_1 = arith.constant 0 : i32
    %c0_i32_2 = arith.constant 0 : i32
    return %c0_i32, %c0_i32_0, %c0_i32_1 : i32, i32, i32
  }
  func.func @transform_11(%arg0: i32) -> (i32, i32) {
    %c0_i32 = arith.constant 0 : i32
    %c0_i32_0 = arith.constant 0 : i32
    %c0_i32_1 = arith.constant 0 : i32
    return %c0_i32, %c0_i32_0 : i32, i32
  }
  func.func @transform_12(%arg0: i32) -> (i32, i32) {
    %c0_i32 = arith.constant 0 : i32
    %c0_i32_0 = arith.constant 0 : i32
    %c0_i32_1 = arith.constant 0 : i32
    return %c0_i32, %c0_i32_0 : i32, i32
  }
  func.func @transform_13(%arg0: i32) -> (i32, i32, i32) {
    %c0_i32 = arith.constant 0 : i32
    %c0_i32_0 = arith.constant 0 : i32
    %c0_i32_1 = arith.constant 0 : i32
    return %arg0, %c0_i32, %c0_i32_0 : i32, i32, i32
  }
}

module attributes {stable_mosaic.version = 11 : i64} {
  func.func @kernel(%arg0: i32, %arg1: memref<1x4x256xf32, #tpu.memory_space<vmem>>, %arg2: memref<4x1xf32, #tpu.memory_space<vmem>>, %arg3: memref<4x1xf32, #tpu.memory_space<vmem>>, %arg4: memref<2x4xbf16, #tpu.memory_space<vmem>>, %arg5: memref<2x1xf32, #tpu.memory_space<vmem>>, %arg6: memref<4x2xbf16, #tpu.memory_space<vmem>>, %arg7: memref<4x1xf32, #tpu.memory_space<vmem>>, %arg8: memref<4x1xf32, #tpu.memory_space<vmem>>, %arg9: memref<1x1xf32, #tpu.memory_space<vmem>>, %arg10: memref<3x4x1xf32, #tpu.memory_space<vmem>>, %arg11: memref<3x4x1xf32, #tpu.memory_space<vmem>>, %arg12: memref<4x4xbf16, #tpu.memory_space<vmem>>, %arg13: memref<4x1xf32, #tpu.memory_space<vmem>>, %arg14: memref<1x4x256xf32, #tpu.memory_space<vmem>>) attributes {dimension_semantics = [#tpu.dimension_semantics<parallel>], iteration_bounds = array<i64: 2>, scalar_prefetch = 0 : i64, scratch_operands = 0 : i64, tpu.core_type = #tpu.core_type<tc>, window_params = [{transform_indices = @transform_0, window_bounds = array<i64: 1, 4, 256>}, {pipeline_mode = #tpu.pipeline_mode<synchronous>, transform_indices = @transform_1, window_bounds = array<i64: 4, 1>}, {pipeline_mode = #tpu.pipeline_mode<synchronous>, transform_indices = @transform_2, window_bounds = array<i64: 4, 1>}, {pipeline_mode = #tpu.pipeline_mode<synchronous>, transform_indices = @transform_3, window_bounds = array<i64: 2, 4>}, {pipeline_mode = #tpu.pipeline_mode<synchronous>, transform_indices = @transform_4, window_bounds = array<i64: 2, 1>}, {pipeline_mode = #tpu.pipeline_mode<synchronous>, transform_indices = @transform_5, window_bounds = array<i64: 4, 2>}, {pipeline_mode = #tpu.pipeline_mode<synchronous>, transform_indices = @transform_6, window_bounds = array<i64: 4, 1>}, {pipeline_mode = #tpu.pipeline_mode<synchronous>, transform_indices = @transform_7, window_bounds = array<i64: 4, 1>}, {pipeline_mode = #tpu.pipeline_mode<synchronous>, transform_indices = @transform_8, window_bounds = array<i64: 1, 1>}, {pipeline_mode = #tpu.pipeline_mode<synchronous>, transform_indices = @transform_9, window_bounds = array<i64: 3, 4, 1>}, {pipeline_mode = #tpu.pipeline_mode<synchronous>, transform_indices = @transform_10, window_bounds = array<i64: 3, 4, 1>}, {pipeline_mode = #tpu.pipeline_mode<synchronous>, transform_indices = @transform_11, window_bounds = array<i64: 4, 4>}, {pipeline_mode = #tpu.pipeline_mode<synchronous>, transform_indices = @transform_12, window_bounds = array<i64: 4, 1>}, {transform_indices = @transform_13, window_bounds = array<i64: 1, 4, 256>}]} {
    %0 = tpu.iota {dimensions = array<i32: 1>} : vector<1x256xi32>
    %c4_i32 = arith.constant 4 : i32
    %1 = vector.broadcast %c4_i32 : i32 to vector<1x256xi32>
    %2 = arith.shrsi %0, %1 : vector<1x256xi32>
    %c0 = arith.constant 0 : index
    %c0_0 = arith.constant 0 : index
    %c0_1 = arith.constant 0 : index
    %3 = vector.load %arg1[%c0, %c0_0, %c0_1] : memref<1x4x256xf32, #tpu.memory_space<vmem>>, vector<1x4x256xf32>
    %4 = vector.shape_cast %3 : vector<1x4x256xf32> to vector<4x256xf32>
    %c0_2 = arith.constant 0 : index
    %c0_3 = arith.constant 0 : index
    %5 = vector.load %arg2[%c0_2, %c0_3] : memref<4x1xf32, #tpu.memory_space<vmem>>, vector<4x1xf32>
    %c0_4 = arith.constant 0 : index
    %c0_5 = arith.constant 0 : index
    %6 = vector.load %arg3[%c0_4, %c0_5] : memref<4x1xf32, #tpu.memory_space<vmem>>, vector<4x1xf32>
    %cst = arith.constant dense<0.000000e+00> : vector<256xf32>
    %7 = vector.multi_reduction <add>, %4, %cst [0] : vector<4x256xf32> to vector<256xf32>
    %8 = vector.shape_cast %7 : vector<256xf32> to vector<1x256xf32>
    %cst_6 = arith.constant 4.000000e+00 : f32
    %9 = vector.broadcast %cst_6 : f32 to vector<1x256xf32>
    %10 = arith.divf %8, %9 : vector<1x256xf32>
    %11 = vector.broadcast %10 : vector<1x256xf32> to vector<4x256xf32>
    %12 = arith.subf %4, %11 : vector<4x256xf32>
    %13 = arith.mulf %12, %12 : vector<4x256xf32>
    %cst_7 = arith.constant dense<0.000000e+00> : vector<256xf32>
    %14 = vector.multi_reduction <add>, %13, %cst_7 [0] : vector<4x256xf32> to vector<256xf32>
    %15 = vector.shape_cast %14 : vector<256xf32> to vector<1x256xf32>
    %cst_8 = arith.constant 4.000000e+00 : f32
    %16 = vector.broadcast %cst_8 : f32 to vector<1x256xf32>
    %17 = arith.divf %15, %16 : vector<1x256xf32>
    %cst_9 = arith.constant 9.99999997E-7 : f32
    %18 = vector.broadcast %cst_9 : f32 to vector<1x256xf32>
    %19 = arith.addf %17, %18 : vector<1x256xf32>
    %20 = math.rsqrt %19 : vector<1x256xf32>
    %21 = vector.broadcast %20 : vector<1x256xf32> to vector<4x256xf32>
    %22 = arith.mulf %12, %21 : vector<4x256xf32>
    %23 = vector.broadcast %5 : vector<4x1xf32> to vector<4x256xf32>
    %24 = arith.mulf %23, %22 : vector<4x256xf32>
    %25 = vector.broadcast %6 : vector<4x1xf32> to vector<4x256xf32>
    %26 = arith.addf %24, %25 : vector<4x256xf32>
    %c1_i32 = arith.constant 1 : i32
    %27 = vector.broadcast %c1_i32 : i32 to vector<1x256xi32>
    %28 = arith.cmpi slt, %2, %27 : vector<1x256xi32>
    %c16_i32 = arith.constant 16 : i32
    %29 = tpu.dynamic_rotate %26 by %c16_i32 dim 1 : vector<4x256xf32>, i32 -> vector<4x256xf32>
    %c16_i32_10 = arith.constant 16 : i32
    %30 = tpu.dynamic_rotate %26 by %c16_i32_10 dim 1 : vector<4x256xf32>, i32 -> vector<4x256xf32>
    %31 = vector.shape_cast %28 : vector<1x256xi1> to vector<1x256xi1>
    %32 = vector.broadcast %31 : vector<1x256xi1> to vector<4x256xi1>
    %33 = arith.select %32, %29, %30 : vector<4x256xi1>, vector<4x256xf32>
    %c0_11 = arith.constant 0 : index
    %c0_12 = arith.constant 0 : index
    %34 = vector.load %arg4[%c0_11, %c0_12] : memref<2x4xbf16, #tpu.memory_space<vmem>>, vector<2x4xbf16>
    %35 = arith.truncf %33 : vector<4x256xf32> to vector<4x256xbf16>
    %cst_13 = arith.constant dense<0.000000e+00> : vector<2x256xf32>
    %36 = tpu.matmul %34, %35, %cst_13 {dimension_numbers = #tpu.dot_dimension_numbers<[1], [0], [0], [1], [0, 0, 1, 1], [], []>} : vector<2x4xbf16>, vector<4x256xbf16>, vector<2x256xf32> -> vector<2x256xf32>
    %c0_14 = arith.constant 0 : index
    %c0_15 = arith.constant 0 : index
    %37 = vector.load %arg5[%c0_14, %c0_15] : memref<2x1xf32, #tpu.memory_space<vmem>>, vector<2x1xf32>
    %38 = vector.broadcast %37 : vector<2x1xf32> to vector<2x256xf32>
    %39 = arith.addf %36, %38 : vector<2x256xf32>
    %cst_16 = arith.constant 0.000000e+00 : f32
    %40 = vector.broadcast %cst_16 : f32 to vector<2x256xf32>
    %41 = arith.maximumf %39, %40 : vector<2x256xf32>
    %c0_17 = arith.constant 0 : index
    %c0_18 = arith.constant 0 : index
    %42 = vector.load %arg6[%c0_17, %c0_18] : memref<4x2xbf16, #tpu.memory_space<vmem>>, vector<4x2xbf16>
    %43 = arith.truncf %41 : vector<2x256xf32> to vector<2x256xbf16>
    %cst_19 = arith.constant dense<0.000000e+00> : vector<4x256xf32>
    %44 = tpu.matmul %42, %43, %cst_19 {dimension_numbers = #tpu.dot_dimension_numbers<[1], [0], [0], [1], [0, 0, 1, 1], [], []>} : vector<4x2xbf16>, vector<2x256xbf16>, vector<4x256xf32> -> vector<4x256xf32>
    %c0_20 = arith.constant 0 : index
    %c0_21 = arith.constant 0 : index
    %45 = vector.load %arg7[%c0_20, %c0_21] : memref<4x1xf32, #tpu.memory_space<vmem>>, vector<4x1xf32>
    %46 = vector.broadcast %45 : vector<4x1xf32> to vector<4x256xf32>
    %47 = arith.addf %44, %46 : vector<4x256xf32>
    %c15_i32 = arith.constant 15 : i32
    %48 = vector.broadcast %c15_i32 : i32 to vector<1x256xi32>
    %49 = arith.cmpi slt, %2, %48 : vector<1x256xi32>
    %c240_i32 = arith.constant 240 : i32
    %50 = tpu.dynamic_rotate %47 by %c240_i32 dim 1 : vector<4x256xf32>, i32 -> vector<4x256xf32>
    %c240_i32_22 = arith.constant 240 : i32
    %51 = tpu.dynamic_rotate %47 by %c240_i32_22 dim 1 : vector<4x256xf32>, i32 -> vector<4x256xf32>
    %52 = vector.shape_cast %49 : vector<1x256xi1> to vector<1x256xi1>
    %53 = vector.broadcast %52 : vector<1x256xi1> to vector<4x256xi1>
    %54 = arith.select %53, %50, %51 : vector<4x256xi1>, vector<4x256xf32>
    %cst_23 = arith.constant dense<0.000000e+00> : vector<4xf32>
    %55 = vector.multi_reduction <add>, %54, %cst_23 [1] : vector<4x256xf32> to vector<4xf32>
    %56 = vector.shape_cast %55 : vector<4xf32> to vector<4x1xf32>
    %cst_24 = arith.constant 2.560000e+02 : f32
    %57 = vector.broadcast %cst_24 : f32 to vector<4x1xf32>
    %58 = arith.divf %56, %57 : vector<4x1xf32>
    %c0_25 = arith.constant 0 : index
    %c0_26 = arith.constant 0 : index
    %59 = vector.load %arg8[%c0_25, %c0_26] : memref<4x1xf32, #tpu.memory_space<vmem>>, vector<4x1xf32>
    %60 = arith.mulf %59, %58 : vector<4x1xf32>
    %cst_27 = arith.constant dense<0.000000e+00> : vector<1xf32>
    %61 = vector.multi_reduction <add>, %60, %cst_27 [0] : vector<4x1xf32> to vector<1xf32>
    %62 = vector.shape_cast %61 : vector<1xf32> to vector<1x1xf32>
    %c0_28 = arith.constant 0 : index
    %c0_29 = arith.constant 0 : index
    %63 = vector.load %arg9[%c0_28, %c0_29] : memref<1x1xf32, #tpu.memory_space<vmem>>, vector<1x1xf32>
    %64 = arith.addf %62, %63 : vector<1x1xf32>
    %cst_30 = arith.constant 5.000000e-01 : f32
    %65 = vector.broadcast %cst_30 : f32 to vector<1x1xf32>
    %66 = arith.mulf %65, %64 : vector<1x1xf32>
    %cst_31 = arith.constant 4.471500e-02 : f32
    %67 = vector.broadcast %cst_31 : f32 to vector<1x1xf32>
    %68 = arith.mulf %67, %64 : vector<1x1xf32>
    %69 = arith.mulf %68, %64 : vector<1x1xf32>
    %70 = arith.mulf %69, %64 : vector<1x1xf32>
    %71 = arith.addf %64, %70 : vector<1x1xf32>
    %cst_32 = arith.constant 0.797884583 : f32
    %72 = vector.broadcast %cst_32 : f32 to vector<1x1xf32>
    %73 = arith.mulf %72, %71 : vector<1x1xf32>
    %74 = math.tanh %73 : vector<1x1xf32>
    %cst_33 = arith.constant 1.000000e+00 : f32
    %75 = vector.broadcast %cst_33 : f32 to vector<1x1xf32>
    %76 = arith.addf %75, %74 : vector<1x1xf32>
    %77 = arith.mulf %66, %76 : vector<1x1xf32>
    %c0_34 = arith.constant 0 : index
    %c0_35 = arith.constant 0 : index
    %c0_36 = arith.constant 0 : index
    %78 = vector.load %arg10[%c0_34, %c0_35, %c0_36] : memref<3x4x1xf32, #tpu.memory_space<vmem>>, vector<1x4x1xf32>
    %79 = vector.shape_cast %78 : vector<1x4x1xf32> to vector<4x1xf32>
    %80 = vector.broadcast %77 : vector<1x1xf32> to vector<4x1xf32>
    %81 = arith.mulf %79, %80 : vector<4x1xf32>
    %cst_37 = arith.constant dense<0.000000e+00> : vector<4xf32>
    %82 = vector.multi_reduction <add>, %81, %cst_37 [1] : vector<4x1xf32> to vector<4xf32>
    %83 = vector.shape_cast %82 : vector<4xf32> to vector<4x1xf32>
    %c0_38 = arith.constant 0 : index
    %c0_39 = arith.constant 0 : index
    %c0_40 = arith.constant 0 : index
    %84 = vector.load %arg11[%c0_38, %c0_39, %c0_40] : memref<3x4x1xf32, #tpu.memory_space<vmem>>, vector<1x4x1xf32>
    %85 = vector.shape_cast %84 : vector<1x4x1xf32> to vector<4x1xf32>
    %86 = arith.addf %83, %85 : vector<4x1xf32>
    %c1 = arith.constant 1 : index
    %c0_41 = arith.constant 0 : index
    %c0_42 = arith.constant 0 : index
    %87 = vector.load %arg10[%c1, %c0_41, %c0_42] : memref<3x4x1xf32, #tpu.memory_space<vmem>>, vector<1x4x1xf32>
    %88 = vector.shape_cast %87 : vector<1x4x1xf32> to vector<4x1xf32>
    %89 = vector.broadcast %77 : vector<1x1xf32> to vector<4x1xf32>
    %90 = arith.mulf %88, %89 : vector<4x1xf32>
    %cst_43 = arith.constant dense<0.000000e+00> : vector<4xf32>
    %91 = vector.multi_reduction <add>, %90, %cst_43 [1] : vector<4x1xf32> to vector<4xf32>
    %92 = vector.shape_cast %91 : vector<4xf32> to vector<4x1xf32>
    %c1_44 = arith.constant 1 : index
    %c0_45 = arith.constant 0 : index
    %c0_46 = arith.constant 0 : index
    %93 = vector.load %arg11[%c1_44, %c0_45, %c0_46] : memref<3x4x1xf32, #tpu.memory_space<vmem>>, vector<1x4x1xf32>
    %94 = vector.shape_cast %93 : vector<1x4x1xf32> to vector<4x1xf32>
    %95 = arith.addf %92, %94 : vector<4x1xf32>
    %c2 = arith.constant 2 : index
    %c0_47 = arith.constant 0 : index
    %c0_48 = arith.constant 0 : index
    %96 = vector.load %arg10[%c2, %c0_47, %c0_48] : memref<3x4x1xf32, #tpu.memory_space<vmem>>, vector<1x4x1xf32>
    %97 = vector.shape_cast %96 : vector<1x4x1xf32> to vector<4x1xf32>
    %98 = vector.broadcast %77 : vector<1x1xf32> to vector<4x1xf32>
    %99 = arith.mulf %97, %98 : vector<4x1xf32>
    %cst_49 = arith.constant dense<0.000000e+00> : vector<4xf32>
    %100 = vector.multi_reduction <add>, %99, %cst_49 [1] : vector<4x1xf32> to vector<4xf32>
    %101 = vector.shape_cast %100 : vector<4xf32> to vector<4x1xf32>
    %c2_50 = arith.constant 2 : index
    %c0_51 = arith.constant 0 : index
    %c0_52 = arith.constant 0 : index
    %102 = vector.load %arg11[%c2_50, %c0_51, %c0_52] : memref<3x4x1xf32, #tpu.memory_space<vmem>>, vector<1x4x1xf32>
    %103 = vector.shape_cast %102 : vector<1x4x1xf32> to vector<4x1xf32>
    %104 = arith.addf %101, %103 : vector<4x1xf32>
    %105 = arith.maximumf %86, %95 : vector<4x1xf32>
    %106 = arith.maximumf %105, %104 : vector<4x1xf32>
    %107 = arith.subf %86, %106 : vector<4x1xf32>
    %108 = math.exp %107 : vector<4x1xf32>
    %109 = arith.subf %95, %106 : vector<4x1xf32>
    %110 = math.exp %109 : vector<4x1xf32>
    %111 = arith.subf %104, %106 : vector<4x1xf32>
    %112 = math.exp %111 : vector<4x1xf32>
    %113 = arith.addf %108, %110 : vector<4x1xf32>
    %114 = arith.addf %113, %112 : vector<4x1xf32>
    %115 = arith.divf %108, %114 : vector<4x1xf32>
    %116 = vector.broadcast %115 : vector<4x1xf32> to vector<4x256xf32>
    %117 = arith.mulf %54, %116 : vector<4x256xf32>
    %c0_53 = arith.constant 0 : index
    %c0_54 = arith.constant 0 : index
    %118 = vector.load %arg12[%c0_53, %c0_54] : memref<4x4xbf16, #tpu.memory_space<vmem>>, vector<4x4xbf16>
    %119 = arith.truncf %117 : vector<4x256xf32> to vector<4x256xbf16>
    %cst_55 = arith.constant dense<0.000000e+00> : vector<4x256xf32>
    %120 = tpu.matmul %118, %119, %cst_55 {dimension_numbers = #tpu.dot_dimension_numbers<[1], [0], [0], [1], [0, 0, 1, 1], [], []>} : vector<4x4xbf16>, vector<4x256xbf16>, vector<4x256xf32> -> vector<4x256xf32>
    %c0_56 = arith.constant 0 : index
    %c0_57 = arith.constant 0 : index
    %121 = vector.load %arg13[%c0_56, %c0_57] : memref<4x1xf32, #tpu.memory_space<vmem>>, vector<4x1xf32>
    %122 = vector.broadcast %121 : vector<4x1xf32> to vector<4x256xf32>
    %123 = arith.addf %120, %122 : vector<4x256xf32>
    %c0_58 = arith.constant 0 : index
    %c0_59 = arith.constant 0 : index
    %c0_60 = arith.constant 0 : index
    %124 = vector.load %arg14[%c0_58, %c0_59, %c0_60] : memref<1x4x256xf32, #tpu.memory_space<vmem>>, vector<1x4x256xf32>
    %125 = vector.shape_cast %124 : vector<1x4x256xf32> to vector<4x256xf32>
    %126 = vector.shape_cast %123 : vector<4x256xf32> to vector<1x4x256xf32>
    tpu.vector_store %arg14[%c0_58, %c0_59, %c0_60], %126 {strides = array<i32>} : memref<1x4x256xf32, #tpu.memory_space<vmem>>, vector<1x4x256xf32>,
    return
  }
  func.func @transform_0(%arg0: i32) -> (i32, i32, i32) {
    %c0_i32 = arith.constant 0 : i32
    %c0_i32_0 = arith.constant 0 : i32
    %c0_i32_1 = arith.constant 0 : i32
    return %arg0, %c0_i32, %c0_i32_0 : i32, i32, i32
  }
  func.func @transform_1(%arg0: i32) -> (i32, i32) {
    %c0_i32 = arith.constant 0 : i32
    %c0_i32_0 = arith.constant 0 : i32
    %c0_i32_1 = arith.constant 0 : i32
    return %c0_i32, %c0_i32_0 : i32, i32
  }
  func.func @transform_2(%arg0: i32) -> (i32, i32) {
    %c0_i32 = arith.constant 0 : i32
    %c0_i32_0 = arith.constant 0 : i32
    %c0_i32_1 = arith.constant 0 : i32
    return %c0_i32, %c0_i32_0 : i32, i32
  }
  func.func @transform_3(%arg0: i32) -> (i32, i32) {
    %c0_i32 = arith.constant 0 : i32
    %c0_i32_0 = arith.constant 0 : i32
    %c0_i32_1 = arith.constant 0 : i32
    return %c0_i32, %c0_i32_0 : i32, i32
  }
  func.func @transform_4(%arg0: i32) -> (i32, i32) {
    %c0_i32 = arith.constant 0 : i32
    %c0_i32_0 = arith.constant 0 : i32
    %c0_i32_1 = arith.constant 0 : i32
    return %c0_i32, %c0_i32_0 : i32, i32
  }
  func.func @transform_5(%arg0: i32) -> (i32, i32) {
    %c0_i32 = arith.constant 0 : i32
    %c0_i32_0 = arith.constant 0 : i32
    %c0_i32_1 = arith.constant 0 : i32
    return %c0_i32, %c0_i32_0 : i32, i32
  }
  func.func @transform_6(%arg0: i32) -> (i32, i32) {
    %c0_i32 = arith.constant 0 : i32
    %c0_i32_0 = arith.constant 0 : i32
    %c0_i32_1 = arith.constant 0 : i32
    return %c0_i32, %c0_i32_0 : i32, i32
  }
  func.func @transform_7(%arg0: i32) -> (i32, i32) {
    %c0_i32 = arith.constant 0 : i32
    %c0_i32_0 = arith.constant 0 : i32
    %c0_i32_1 = arith.constant 0 : i32
    return %c0_i32, %c0_i32_0 : i32, i32
  }
  func.func @transform_8(%arg0: i32) -> (i32, i32) {
    %c0_i32 = arith.constant 0 : i32
    %c0_i32_0 = arith.constant 0 : i32
    %c0_i32_1 = arith.constant 0 : i32
    return %c0_i32, %c0_i32_0 : i32, i32
  }
  func.func @transform_9(%arg0: i32) -> (i32, i32, i32) {
    %c0_i32 = arith.constant 0 : i32
    %c0_i32_0 = arith.constant 0 : i32
    %c0_i32_1 = arith.constant 0 : i32
    %c0_i32_2 = arith.constant 0 : i32
    return %c0_i32, %c0_i32_0, %c0_i32_1 : i32, i32, i32
  }
  func.func @transform_10(%arg0: i32) -> (i32, i32, i32) {
    %c0_i32 = arith.constant 0 : i32
    %c0_i32_0 = arith.constant 0 : i32
    %c0_i32_1 = arith.constant 0 : i32
    %c0_i32_2 = arith.constant 0 : i32
    return %c0_i32, %c0_i32_0, %c0_i32_1 : i32, i32, i32
  }
  func.func @transform_11(%arg0: i32) -> (i32, i32) {
    %c0_i32 = arith.constant 0 : i32
    %c0_i32_0 = arith.constant 0 : i32
    %c0_i32_1 = arith.constant 0 : i32
    return %c0_i32, %c0_i32_0 : i32, i32
  }
  func.func @transform_12(%arg0: i32) -> (i32, i32) {
    %c0_i32 = arith.constant 0 : i32
    %c0_i32_0 = arith.constant 0 : i32
    %c0_i32_1 = arith.constant 0 : i32
    return %c0_i32, %c0_i32_0 : i32, i32
  }
  func.func @transform_13(%arg0: i32) -> (i32, i32, i32) {
    %c0_i32 = arith.constant 0 : i32
    %c0_i32_0 = arith.constant 0 : i32
    %c0_i32_1 = arith.constant 0 : i32
    return %arg0, %c0_i32, %c0_i32_0 : i32, i32, i32
  }
}

module attributes {stable_mosaic.version = 11 : i64} {
  func.func @_fuse_expand_kernel(%arg0: i32, %arg1: memref<1x4x256xf32, #tpu.memory_space<vmem>>, %arg2: memref<1x4x256xf32, #tpu.memory_space<vmem>>, %arg3: memref<4x1xf32, #tpu.memory_space<vmem>>, %arg4: memref<4x1xf32, #tpu.memory_space<vmem>>, %arg5: memref<8x4xbf16, #tpu.memory_space<vmem>>, %arg6: memref<8x1xf32, #tpu.memory_space<vmem>>, %arg7: memref<1x8x256xf32, #tpu.memory_space<vmem>>) attributes {dimension_semantics = [#tpu.dimension_semantics<parallel>], iteration_bounds = array<i64: 2>, scalar_prefetch = 0 : i64, scratch_operands = 0 : i64, tpu.core_type = #tpu.core_type<tc>, window_params = [{transform_indices = @transform_0, window_bounds = array<i64: 1, 4, 256>}, {transform_indices = @transform_1, window_bounds = array<i64: 1, 4, 256>}, {pipeline_mode = #tpu.pipeline_mode<synchronous>, transform_indices = @transform_2, window_bounds = array<i64: 4, 1>}, {pipeline_mode = #tpu.pipeline_mode<synchronous>, transform_indices = @transform_3, window_bounds = array<i64: 4, 1>}, {pipeline_mode = #tpu.pipeline_mode<synchronous>, transform_indices = @transform_4, window_bounds = array<i64: 8, 4>}, {pipeline_mode = #tpu.pipeline_mode<synchronous>, transform_indices = @transform_5, window_bounds = array<i64: 8, 1>}, {transform_indices = @transform_6, window_bounds = array<i64: 1, 8, 256>}]} {
    %c0 = arith.constant 0 : index
    %c0_0 = arith.constant 0 : index
    %c0_1 = arith.constant 0 : index
    %0 = vector.load %arg1[%c0, %c0_0, %c0_1] : memref<1x4x256xf32, #tpu.memory_space<vmem>>, vector<1x4x256xf32>
    %1 = vector.shape_cast %0 : vector<1x4x256xf32> to vector<4x256xf32>
    %c0_2 = arith.constant 0 : index
    %c0_3 = arith.constant 0 : index
    %2 = vector.load %arg3[%c0_2, %c0_3] : memref<4x1xf32, #tpu.memory_space<vmem>>, vector<4x1xf32>
    %3 = vector.broadcast %2 : vector<4x1xf32> to vector<4x256xf32>
    %4 = arith.mulf %1, %3 : vector<4x256xf32>
    %c0_4 = arith.constant 0 : index
    %c0_5 = arith.constant 0 : index
    %c0_6 = arith.constant 0 : index
    %5 = vector.load %arg2[%c0_4, %c0_5, %c0_6] : memref<1x4x256xf32, #tpu.memory_space<vmem>>, vector<1x4x256xf32>
    %6 = vector.shape_cast %5 : vector<1x4x256xf32> to vector<4x256xf32>
    %c0_7 = arith.constant 0 : index
    %c0_8 = arith.constant 0 : index
    %7 = vector.load %arg4[%c0_7, %c0_8] : memref<4x1xf32, #tpu.memory_space<vmem>>, vector<4x1xf32>
    %8 = vector.broadcast %7 : vector<4x1xf32> to vector<4x256xf32>
    %9 = arith.mulf %6, %8 : vector<4x256xf32>
    %10 = arith.addf %4, %9 : vector<4x256xf32>
    %c0_9 = arith.constant 0 : index
    %c0_10 = arith.constant 0 : index
    %11 = vector.load %arg5[%c0_9, %c0_10] : memref<8x4xbf16, #tpu.memory_space<vmem>>, vector<8x4xbf16>
    %12 = arith.truncf %10 : vector<4x256xf32> to vector<4x256xbf16>
    %cst = arith.constant dense<0.000000e+00> : vector<8x256xf32>
    %13 = tpu.matmul %11, %12, %cst {dimension_numbers = #tpu.dot_dimension_numbers<[1], [0], [0], [1], [0, 0, 1, 1], [], []>} : vector<8x4xbf16>, vector<4x256xbf16>, vector<8x256xf32> -> vector<8x256xf32>
    %c0_11 = arith.constant 0 : index
    %c0_12 = arith.constant 0 : index
    %14 = vector.load %arg6[%c0_11, %c0_12] : memref<8x1xf32, #tpu.memory_space<vmem>>, vector<8x1xf32>
    %15 = vector.broadcast %14 : vector<8x1xf32> to vector<8x256xf32>
    %16 = arith.addf %13, %15 : vector<8x256xf32>
    %c0_13 = arith.constant 0 : index
    %c0_14 = arith.constant 0 : index
    %c0_15 = arith.constant 0 : index
    %17 = vector.load %arg7[%c0_13, %c0_14, %c0_15] : memref<1x8x256xf32, #tpu.memory_space<vmem>>, vector<1x8x256xf32>
    %18 = vector.shape_cast %17 : vector<1x8x256xf32> to vector<8x256xf32>
    %19 = vector.shape_cast %16 : vector<8x256xf32> to vector<1x8x256xf32>
    tpu.vector_store %arg7[%c0_13, %c0_14, %c0_15], %19 {strides = array<i32>} : memref<1x8x256xf32, #tpu.memory_space<vmem>>, vector<1x8x256xf32>,
    return
  }
  func.func @transform_0(%arg0: i32) -> (i32, i32, i32) {
    %c0_i32 = arith.constant 0 : i32
    %c0_i32_0 = arith.constant 0 : i32
    %c0_i32_1 = arith.constant 0 : i32
    return %arg0, %c0_i32, %c0_i32_0 : i32, i32, i32
  }
  func.func @transform_1(%arg0: i32) -> (i32, i32, i32) {
    %c0_i32 = arith.constant 0 : i32
    %c0_i32_0 = arith.constant 0 : i32
    %c0_i32_1 = arith.constant 0 : i32
    return %arg0, %c0_i32, %c0_i32_0 : i32, i32, i32
  }
  func.func @transform_2(%arg0: i32) -> (i32, i32) {
    %c0_i32 = arith.constant 0 : i32
    %c0_i32_0 = arith.constant 0 : i32
    %c0_i32_1 = arith.constant 0 : i32
    return %c0_i32, %c0_i32_0 : i32, i32
  }
  func.func @transform_3(%arg0: i32) -> (i32, i32) {
    %c0_i32 = arith.constant 0 : i32
    %c0_i32_0 = arith.constant 0 : i32
    %c0_i32_1 = arith.constant 0 : i32
    return %c0_i32, %c0_i32_0 : i32, i32
  }
  func.func @transform_4(%arg0: i32) -> (i32, i32) {
    %c0_i32 = arith.constant 0 : i32
    %c0_i32_0 = arith.constant 0 : i32
    %c0_i32_1 = arith.constant 0 : i32
    return %c0_i32, %c0_i32_0 : i32, i32
  }
  func.func @transform_5(%arg0: i32) -> (i32, i32) {
    %c0_i32 = arith.constant 0 : i32
    %c0_i32_0 = arith.constant 0 : i32
    %c0_i32_1 = arith.constant 0 : i32
    return %c0_i32, %c0_i32_0 : i32, i32
  }
  func.func @transform_6(%arg0: i32) -> (i32, i32, i32) {
    %c0_i32 = arith.constant 0 : i32
    %c0_i32_0 = arith.constant 0 : i32
    %c0_i32_1 = arith.constant 0 : i32
    return %arg0, %c0_i32, %c0_i32_0 : i32, i32, i32
  }
}

module attributes {stable_mosaic.version = 11 : i64} {
  func.func @kernel(%arg0: i32, %arg1: memref<1x8x256xf32, #tpu.memory_space<vmem>>, %arg2: memref<9x4x8xbf16, #tpu.memory_space<vmem>>, %arg3: memref<4x1xf32, #tpu.memory_space<vmem>>, %arg4: memref<1x4x256xf32, #tpu.memory_space<vmem>>) attributes {dimension_semantics = [#tpu.dimension_semantics<parallel>], iteration_bounds = array<i64: 2>, scalar_prefetch = 0 : i64, scratch_operands = 0 : i64, tpu.core_type = #tpu.core_type<tc>, window_params = [{transform_indices = @transform_0, window_bounds = array<i64: 1, 8, 256>}, {pipeline_mode = #tpu.pipeline_mode<synchronous>, transform_indices = @transform_1, window_bounds = array<i64: 9, 4, 8>}, {pipeline_mode = #tpu.pipeline_mode<synchronous>, transform_indices = @transform_2, window_bounds = array<i64: 4, 1>}, {transform_indices = @transform_3, window_bounds = array<i64: 1, 4, 256>}]} {
    %c0 = arith.constant 0 : index
    %c0_0 = arith.constant 0 : index
    %c0_1 = arith.constant 0 : index
    %0 = vector.load %arg1[%c0, %c0_0, %c0_1] : memref<1x8x256xf32, #tpu.memory_space<vmem>>, vector<1x8x256xf32>
    %1 = vector.shape_cast %0 : vector<1x8x256xf32> to vector<8x256xf32>
    %2 = tpu.iota {dimensions = array<i32: 1>} : vector<1x256xi32>
    %c4_i32 = arith.constant 4 : i32
    %3 = vector.broadcast %c4_i32 : i32 to vector<1x256xi32>
    %4 = arith.shrsi %2, %3 : vector<1x256xi32>
    %c15_i32 = arith.constant 15 : i32
    %5 = vector.broadcast %c15_i32 : i32 to vector<1x256xi32>
    %6 = arith.andi %2, %5 : vector<1x256xi32>
    %cst = arith.constant 0.000000e+00 : f32
    %7 = vector.broadcast %cst : f32 to vector<4x256xf32>
    %c17_i32 = arith.constant 17 : i32
    %8 = tpu.dynamic_rotate %1 by %c17_i32 dim 1 : vector<8x256xf32>, i32 -> vector<8x256xf32>
    %c1_i32 = arith.constant 1 : i32
    %9 = vector.broadcast %c1_i32 : i32 to vector<1x256xi32>
    %10 = arith.cmpi sge, %4, %9 : vector<1x256xi32>
    %c1_i32_2 = arith.constant 1 : i32
    %11 = vector.broadcast %c1_i32_2 : i32 to vector<1x256xi32>
    %12 = arith.cmpi sge, %6, %11 : vector<1x256xi32>
    %13 = arith.andi %10, %12 : vector<1x256xi1>
    %cst_3 = arith.constant 0.000000e+00 : f32
    %14 = vector.shape_cast %13 : vector<1x256xi1> to vector<1x256xi1>
    %15 = vector.broadcast %14 : vector<1x256xi1> to vector<8x256xi1>
    %16 = vector.broadcast %cst_3 : f32 to vector<8x256xf32>
    %17 = arith.select %15, %8, %16 : vector<8x256xi1>, vector<8x256xf32>
    %c0_4 = arith.constant 0 : index
    %c0_5 = arith.constant 0 : index
    %c0_6 = arith.constant 0 : index
    %18 = vector.load %arg2[%c0_4, %c0_5, %c0_6] : memref<9x4x8xbf16, #tpu.memory_space<vmem>>, vector<1x4x8xbf16>
    %19 = vector.shape_cast %18 : vector<1x4x8xbf16> to vector<4x8xbf16>
    %20 = arith.truncf %17 : vector<8x256xf32> to vector<8x256xbf16>
    %cst_7 = arith.constant dense<0.000000e+00> : vector<4x256xf32>
    %21 = tpu.matmul %19, %20, %cst_7 {dimension_numbers = #tpu.dot_dimension_numbers<[1], [0], [0], [1], [0, 0, 1, 1], [], []>} : vector<4x8xbf16>, vector<8x256xbf16>, vector<4x256xf32> -> vector<4x256xf32>
    %22 = arith.addf %7, %21 : vector<4x256xf32>
    %c16_i32 = arith.constant 16 : i32
    %23 = tpu.dynamic_rotate %1 by %c16_i32 dim 1 : vector<8x256xf32>, i32 -> vector<8x256xf32>
    %c1_i32_8 = arith.constant 1 : i32
    %24 = vector.broadcast %c1_i32_8 : i32 to vector<1x256xi32>
    %25 = arith.cmpi sge, %4, %24 : vector<1x256xi32>
    %cst_9 = arith.constant 0.000000e+00 : f32
    %26 = vector.shape_cast %25 : vector<1x256xi1> to vector<1x256xi1>
    %27 = vector.broadcast %26 : vector<1x256xi1> to vector<8x256xi1>
    %28 = vector.broadcast %cst_9 : f32 to vector<8x256xf32>
    %29 = arith.select %27, %23, %28 : vector<8x256xi1>, vector<8x256xf32>
    %c1 = arith.constant 1 : index
    %c0_10 = arith.constant 0 : index
    %c0_11 = arith.constant 0 : index
    %30 = vector.load %arg2[%c1, %c0_10, %c0_11] : memref<9x4x8xbf16, #tpu.memory_space<vmem>>, vector<1x4x8xbf16>
    %31 = vector.shape_cast %30 : vector<1x4x8xbf16> to vector<4x8xbf16>
    %32 = arith.truncf %29 : vector<8x256xf32> to vector<8x256xbf16>
    %cst_12 = arith.constant dense<0.000000e+00> : vector<4x256xf32>
    %33 = tpu.matmul %31, %32, %cst_12 {dimension_numbers = #tpu.dot_dimension_numbers<[1], [0], [0], [1], [0, 0, 1, 1], [], []>} : vector<4x8xbf16>, vector<8x256xbf16>, vector<4x256xf32> -> vector<4x256xf32>
    %34 = arith.addf %22, %33 : vector<4x256xf32>
    %c15_i32_13 = arith.constant 15 : i32
    %35 = tpu.dynamic_rotate %1 by %c15_i32_13 dim 1 : vector<8x256xf32>, i32 -> vector<8x256xf32>
    %c1_i32_14 = arith.constant 1 : i32
    %36 = vector.broadcast %c1_i32_14 : i32 to vector<1x256xi32>
    %37 = arith.cmpi sge, %4, %36 : vector<1x256xi32>
    %c15_i32_15 = arith.constant 15 : i32
    %38 = vector.broadcast %c15_i32_15 : i32 to vector<1x256xi32>
    %39 = arith.cmpi slt, %6, %38 : vector<1x256xi32>
    %40 = arith.andi %37, %39 : vector<1x256xi1>
    %cst_16 = arith.constant 0.000000e+00 : f32
    %41 = vector.shape_cast %40 : vector<1x256xi1> to vector<1x256xi1>
    %42 = vector.broadcast %41 : vector<1x256xi1> to vector<8x256xi1>
    %43 = vector.broadcast %cst_16 : f32 to vector<8x256xf32>
    %44 = arith.select %42, %35, %43 : vector<8x256xi1>, vector<8x256xf32>
    %c2 = arith.constant 2 : index
    %c0_17 = arith.constant 0 : index
    %c0_18 = arith.constant 0 : index
    %45 = vector.load %arg2[%c2, %c0_17, %c0_18] : memref<9x4x8xbf16, #tpu.memory_space<vmem>>, vector<1x4x8xbf16>
    %46 = vector.shape_cast %45 : vector<1x4x8xbf16> to vector<4x8xbf16>
    %47 = arith.truncf %44 : vector<8x256xf32> to vector<8x256xbf16>
    %cst_19 = arith.constant dense<0.000000e+00> : vector<4x256xf32>
    %48 = tpu.matmul %46, %47, %cst_19 {dimension_numbers = #tpu.dot_dimension_numbers<[1], [0], [0], [1], [0, 0, 1, 1], [], []>} : vector<4x8xbf16>, vector<8x256xbf16>, vector<4x256xf32> -> vector<4x256xf32>
    %49 = arith.addf %34, %48 : vector<4x256xf32>
    %c1_i32_20 = arith.constant 1 : i32
    %50 = tpu.dynamic_rotate %1 by %c1_i32_20 dim 1 : vector<8x256xf32>, i32 -> vector<8x256xf32>
    %c1_i32_21 = arith.constant 1 : i32
    %51 = vector.broadcast %c1_i32_21 : i32 to vector<1x256xi32>
    %52 = arith.cmpi sge, %6, %51 : vector<1x256xi32>
    %cst_22 = arith.constant 0.000000e+00 : f32
    %53 = vector.shape_cast %52 : vector<1x256xi1> to vector<1x256xi1>
    %54 = vector.broadcast %53 : vector<1x256xi1> to vector<8x256xi1>
    %55 = vector.broadcast %cst_22 : f32 to vector<8x256xf32>
    %56 = arith.select %54, %50, %55 : vector<8x256xi1>, vector<8x256xf32>
    %c3 = arith.constant 3 : index
    %c0_23 = arith.constant 0 : index
    %c0_24 = arith.constant 0 : index
    %57 = vector.load %arg2[%c3, %c0_23, %c0_24] : memref<9x4x8xbf16, #tpu.memory_space<vmem>>, vector<1x4x8xbf16>
    %58 = vector.shape_cast %57 : vector<1x4x8xbf16> to vector<4x8xbf16>
    %59 = arith.truncf %56 : vector<8x256xf32> to vector<8x256xbf16>
    %cst_25 = arith.constant dense<0.000000e+00> : vector<4x256xf32>
    %60 = tpu.matmul %58, %59, %cst_25 {dimension_numbers = #tpu.dot_dimension_numbers<[1], [0], [0], [1], [0, 0, 1, 1], [], []>} : vector<4x8xbf16>, vector<8x256xbf16>, vector<4x256xf32> -> vector<4x256xf32>
    %61 = arith.addf %49, %60 : vector<4x256xf32>
    %c4 = arith.constant 4 : index
    %c0_26 = arith.constant 0 : index
    %c0_27 = arith.constant 0 : index
    %62 = vector.load %arg2[%c4, %c0_26, %c0_27] : memref<9x4x8xbf16, #tpu.memory_space<vmem>>, vector<1x4x8xbf16>
    %63 = vector.shape_cast %62 : vector<1x4x8xbf16> to vector<4x8xbf16>
    %64 = arith.truncf %1 : vector<8x256xf32> to vector<8x256xbf16>
    %cst_28 = arith.constant dense<0.000000e+00> : vector<4x256xf32>
    %65 = tpu.matmul %63, %64, %cst_28 {dimension_numbers = #tpu.dot_dimension_numbers<[1], [0], [0], [1], [0, 0, 1, 1], [], []>} : vector<4x8xbf16>, vector<8x256xbf16>, vector<4x256xf32> -> vector<4x256xf32>
    %66 = arith.addf %61, %65 : vector<4x256xf32>
    %c255_i32 = arith.constant 255 : i32
    %67 = tpu.dynamic_rotate %1 by %c255_i32 dim 1 : vector<8x256xf32>, i32 -> vector<8x256xf32>
    %c15_i32_29 = arith.constant 15 : i32
    %68 = vector.broadcast %c15_i32_29 : i32 to vector<1x256xi32>
    %69 = arith.cmpi slt, %6, %68 : vector<1x256xi32>
    %cst_30 = arith.constant 0.000000e+00 : f32
    %70 = vector.shape_cast %69 : vector<1x256xi1> to vector<1x256xi1>
    %71 = vector.broadcast %70 : vector<1x256xi1> to vector<8x256xi1>
    %72 = vector.broadcast %cst_30 : f32 to vector<8x256xf32>
    %73 = arith.select %71, %67, %72 : vector<8x256xi1>, vector<8x256xf32>
    %c5 = arith.constant 5 : index
    %c0_31 = arith.constant 0 : index
    %c0_32 = arith.constant 0 : index
    %74 = vector.load %arg2[%c5, %c0_31, %c0_32] : memref<9x4x8xbf16, #tpu.memory_space<vmem>>, vector<1x4x8xbf16>
    %75 = vector.shape_cast %74 : vector<1x4x8xbf16> to vector<4x8xbf16>
    %76 = arith.truncf %73 : vector<8x256xf32> to vector<8x256xbf16>
    %cst_33 = arith.constant dense<0.000000e+00> : vector<4x256xf32>
    %77 = tpu.matmul %75, %76, %cst_33 {dimension_numbers = #tpu.dot_dimension_numbers<[1], [0], [0], [1], [0, 0, 1, 1], [], []>} : vector<4x8xbf16>, vector<8x256xbf16>, vector<4x256xf32> -> vector<4x256xf32>
    %78 = arith.addf %66, %77 : vector<4x256xf32>
    %c241_i32 = arith.constant 241 : i32
    %79 = tpu.dynamic_rotate %1 by %c241_i32 dim 1 : vector<8x256xf32>, i32 -> vector<8x256xf32>
    %c15_i32_34 = arith.constant 15 : i32
    %80 = vector.broadcast %c15_i32_34 : i32 to vector<1x256xi32>
    %81 = arith.cmpi slt, %4, %80 : vector<1x256xi32>
    %c1_i32_35 = arith.constant 1 : i32
    %82 = vector.broadcast %c1_i32_35 : i32 to vector<1x256xi32>
    %83 = arith.cmpi sge, %6, %82 : vector<1x256xi32>
    %84 = arith.andi %81, %83 : vector<1x256xi1>
    %cst_36 = arith.constant 0.000000e+00 : f32
    %85 = vector.shape_cast %84 : vector<1x256xi1> to vector<1x256xi1>
    %86 = vector.broadcast %85 : vector<1x256xi1> to vector<8x256xi1>
    %87 = vector.broadcast %cst_36 : f32 to vector<8x256xf32>
    %88 = arith.select %86, %79, %87 : vector<8x256xi1>, vector<8x256xf32>
    %c6 = arith.constant 6 : index
    %c0_37 = arith.constant 0 : index
    %c0_38 = arith.constant 0 : index
    %89 = vector.load %arg2[%c6, %c0_37, %c0_38] : memref<9x4x8xbf16, #tpu.memory_space<vmem>>, vector<1x4x8xbf16>
    %90 = vector.shape_cast %89 : vector<1x4x8xbf16> to vector<4x8xbf16>
    %91 = arith.truncf %88 : vector<8x256xf32> to vector<8x256xbf16>
    %cst_39 = arith.constant dense<0.000000e+00> : vector<4x256xf32>
    %92 = tpu.matmul %90, %91, %cst_39 {dimension_numbers = #tpu.dot_dimension_numbers<[1], [0], [0], [1], [0, 0, 1, 1], [], []>} : vector<4x8xbf16>, vector<8x256xbf16>, vector<4x256xf32> -> vector<4x256xf32>
    %93 = arith.addf %78, %92 : vector<4x256xf32>
    %c240_i32 = arith.constant 240 : i32
    %94 = tpu.dynamic_rotate %1 by %c240_i32 dim 1 : vector<8x256xf32>, i32 -> vector<8x256xf32>
    %c15_i32_40 = arith.constant 15 : i32
    %95 = vector.broadcast %c15_i32_40 : i32 to vector<1x256xi32>
    %96 = arith.cmpi slt, %4, %95 : vector<1x256xi32>
    %cst_41 = arith.constant 0.000000e+00 : f32
    %97 = vector.shape_cast %96 : vector<1x256xi1> to vector<1x256xi1>
    %98 = vector.broadcast %97 : vector<1x256xi1> to vector<8x256xi1>
    %99 = vector.broadcast %cst_41 : f32 to vector<8x256xf32>
    %100 = arith.select %98, %94, %99 : vector<8x256xi1>, vector<8x256xf32>
    %c7 = arith.constant 7 : index
    %c0_42 = arith.constant 0 : index
    %c0_43 = arith.constant 0 : index
    %101 = vector.load %arg2[%c7, %c0_42, %c0_43] : memref<9x4x8xbf16, #tpu.memory_space<vmem>>, vector<1x4x8xbf16>
    %102 = vector.shape_cast %101 : vector<1x4x8xbf16> to vector<4x8xbf16>
    %103 = arith.truncf %100 : vector<8x256xf32> to vector<8x256xbf16>
    %cst_44 = arith.constant dense<0.000000e+00> : vector<4x256xf32>
    %104 = tpu.matmul %102, %103, %cst_44 {dimension_numbers = #tpu.dot_dimension_numbers<[1], [0], [0], [1], [0, 0, 1, 1], [], []>} : vector<4x8xbf16>, vector<8x256xbf16>, vector<4x256xf32> -> vector<4x256xf32>
    %105 = arith.addf %93, %104 : vector<4x256xf32>
    %c239_i32 = arith.constant 239 : i32
    %106 = tpu.dynamic_rotate %1 by %c239_i32 dim 1 : vector<8x256xf32>, i32 -> vector<8x256xf32>
    %c15_i32_45 = arith.constant 15 : i32
    %107 = vector.broadcast %c15_i32_45 : i32 to vector<1x256xi32>
    %108 = arith.cmpi slt, %4, %107 : vector<1x256xi32>
    %c15_i32_46 = arith.constant 15 : i32
    %109 = vector.broadcast %c15_i32_46 : i32 to vector<1x256xi32>
    %110 = arith.cmpi slt, %6, %109 : vector<1x256xi32>
    %111 = arith.andi %108, %110 : vector<1x256xi1>
    %cst_47 = arith.constant 0.000000e+00 : f32
    %112 = vector.shape_cast %111 : vector<1x256xi1> to vector<1x256xi1>
    %113 = vector.broadcast %112 : vector<1x256xi1> to vector<8x256xi1>
    %114 = vector.broadcast %cst_47 : f32 to vector<8x256xf32>
    %115 = arith.select %113, %106, %114 : vector<8x256xi1>, vector<8x256xf32>
    %c8 = arith.constant 8 : index
    %c0_48 = arith.constant 0 : index
    %c0_49 = arith.constant 0 : index
    %116 = vector.load %arg2[%c8, %c0_48, %c0_49] : memref<9x4x8xbf16, #tpu.memory_space<vmem>>, vector<1x4x8xbf16>
    %117 = vector.shape_cast %116 : vector<1x4x8xbf16> to vector<4x8xbf16>
    %118 = arith.truncf %115 : vector<8x256xf32> to vector<8x256xbf16>
    %cst_50 = arith.constant dense<0.000000e+00> : vector<4x256xf32>
    %119 = tpu.matmul %117, %118, %cst_50 {dimension_numbers = #tpu.dot_dimension_numbers<[1], [0], [0], [1], [0, 0, 1, 1], [], []>} : vector<4x8xbf16>, vector<8x256xbf16>, vector<4x256xf32> -> vector<4x256xf32>
    %120 = arith.addf %105, %119 : vector<4x256xf32>
    %c0_51 = arith.constant 0 : index
    %c0_52 = arith.constant 0 : index
    %121 = vector.load %arg3[%c0_51, %c0_52] : memref<4x1xf32, #tpu.memory_space<vmem>>, vector<4x1xf32>
    %122 = vector.broadcast %121 : vector<4x1xf32> to vector<4x256xf32>
    %123 = arith.addf %120, %122 : vector<4x256xf32>
    %c0_53 = arith.constant 0 : index
    %c0_54 = arith.constant 0 : index
    %c0_55 = arith.constant 0 : index
    %124 = vector.load %arg4[%c0_53, %c0_54, %c0_55] : memref<1x4x256xf32, #tpu.memory_space<vmem>>, vector<1x4x256xf32>
    %125 = vector.shape_cast %124 : vector<1x4x256xf32> to vector<4x256xf32>
    %126 = vector.shape_cast %123 : vector<4x256xf32> to vector<1x4x256xf32>
    tpu.vector_store %arg4[%c0_53, %c0_54, %c0_55], %126 {strides = array<i32>} : memref<1x4x256xf32, #tpu.memory_space<vmem>>, vector<1x4x256xf32>,
    return
  }
  func.func @transform_0(%arg0: i32) -> (i32, i32, i32) {
    %c0_i32 = arith.constant 0 : i32
    %c0_i32_0 = arith.constant 0 : i32
    %c0_i32_1 = arith.constant 0 : i32
    return %arg0, %c0_i32, %c0_i32_0 : i32, i32, i32
  }
  func.func @transform_1(%arg0: i32) -> (i32, i32, i32) {
    %c0_i32 = arith.constant 0 : i32
    %c0_i32_0 = arith.constant 0 : i32
    %c0_i32_1 = arith.constant 0 : i32
    %c0_i32_2 = arith.constant 0 : i32
    return %c0_i32, %c0_i32_0, %c0_i32_1 : i32, i32, i32
  }
  func.func @transform_2(%arg0: i32) -> (i32, i32) {
    %c0_i32 = arith.constant 0 : i32
    %c0_i32_0 = arith.constant 0 : i32
    %c0_i32_1 = arith.constant 0 : i32
    return %c0_i32, %c0_i32_0 : i32, i32
  }
  func.func @transform_3(%arg0: i32) -> (i32, i32, i32) {
    %c0_i32 = arith.constant 0 : i32
    %c0_i32_0 = arith.constant 0 : i32
    %c0_i32_1 = arith.constant 0 : i32
    return %arg0, %c0_i32, %c0_i32_0 : i32, i32, i32
  }
}

module attributes {stable_mosaic.version = 11 : i64} {
  func.func @kernel(%arg0: i32, %arg1: memref<1x4x256xf32, #tpu.memory_space<vmem>>, %arg2: memref<9x8x4xbf16, #tpu.memory_space<vmem>>, %arg3: memref<8x1xf32, #tpu.memory_space<vmem>>, %arg4: memref<4x1xf32, #tpu.memory_space<vmem>>, %arg5: memref<4x1xf32, #tpu.memory_space<vmem>>, %arg6: memref<1x8x256xf32, #tpu.memory_space<vmem>>) attributes {dimension_semantics = [#tpu.dimension_semantics<parallel>], iteration_bounds = array<i64: 2>, scalar_prefetch = 0 : i64, scratch_operands = 0 : i64, tpu.core_type = #tpu.core_type<tc>, window_params = [{transform_indices = @transform_0, window_bounds = array<i64: 1, 4, 256>}, {pipeline_mode = #tpu.pipeline_mode<synchronous>, transform_indices = @transform_1, window_bounds = array<i64: 9, 8, 4>}, {pipeline_mode = #tpu.pipeline_mode<synchronous>, transform_indices = @transform_2, window_bounds = array<i64: 8, 1>}, {pipeline_mode = #tpu.pipeline_mode<synchronous>, transform_indices = @transform_3, window_bounds = array<i64: 4, 1>}, {pipeline_mode = #tpu.pipeline_mode<synchronous>, transform_indices = @transform_4, window_bounds = array<i64: 4, 1>}, {transform_indices = @transform_5, window_bounds = array<i64: 1, 8, 256>}]} {
    %c0 = arith.constant 0 : index
    %c0_0 = arith.constant 0 : index
    %c0_1 = arith.constant 0 : index
    %0 = vector.load %arg1[%c0, %c0_0, %c0_1] : memref<1x4x256xf32, #tpu.memory_space<vmem>>, vector<1x4x256xf32>
    %1 = vector.shape_cast %0 : vector<1x4x256xf32> to vector<4x256xf32>
    %c0_2 = arith.constant 0 : index
    %c0_3 = arith.constant 0 : index
    %2 = vector.load %arg4[%c0_2, %c0_3] : memref<4x1xf32, #tpu.memory_space<vmem>>, vector<4x1xf32>
    %c0_4 = arith.constant 0 : index
    %c0_5 = arith.constant 0 : index
    %3 = vector.load %arg5[%c0_4, %c0_5] : memref<4x1xf32, #tpu.memory_space<vmem>>, vector<4x1xf32>
    %cst = arith.constant dense<0.000000e+00> : vector<256xf32>
    %4 = vector.multi_reduction <add>, %1, %cst [0] : vector<4x256xf32> to vector<256xf32>
    %5 = vector.shape_cast %4 : vector<256xf32> to vector<1x256xf32>
    %cst_6 = arith.constant 4.000000e+00 : f32
    %6 = vector.broadcast %cst_6 : f32 to vector<1x256xf32>
    %7 = arith.divf %5, %6 : vector<1x256xf32>
    %8 = vector.broadcast %7 : vector<1x256xf32> to vector<4x256xf32>
    %9 = arith.subf %1, %8 : vector<4x256xf32>
    %10 = arith.mulf %9, %9 : vector<4x256xf32>
    %cst_7 = arith.constant dense<0.000000e+00> : vector<256xf32>
    %11 = vector.multi_reduction <add>, %10, %cst_7 [0] : vector<4x256xf32> to vector<256xf32>
    %12 = vector.shape_cast %11 : vector<256xf32> to vector<1x256xf32>
    %cst_8 = arith.constant 4.000000e+00 : f32
    %13 = vector.broadcast %cst_8 : f32 to vector<1x256xf32>
    %14 = arith.divf %12, %13 : vector<1x256xf32>
    %cst_9 = arith.constant 9.99999997E-7 : f32
    %15 = vector.broadcast %cst_9 : f32 to vector<1x256xf32>
    %16 = arith.addf %14, %15 : vector<1x256xf32>
    %17 = math.rsqrt %16 : vector<1x256xf32>
    %18 = vector.broadcast %17 : vector<1x256xf32> to vector<4x256xf32>
    %19 = arith.mulf %9, %18 : vector<4x256xf32>
    %20 = vector.broadcast %2 : vector<4x1xf32> to vector<4x256xf32>
    %21 = arith.mulf %20, %19 : vector<4x256xf32>
    %22 = vector.broadcast %3 : vector<4x1xf32> to vector<4x256xf32>
    %23 = arith.addf %21, %22 : vector<4x256xf32>
    %24 = tpu.iota {dimensions = array<i32: 1>} : vector<1x256xi32>
    %c4_i32 = arith.constant 4 : i32
    %25 = vector.broadcast %c4_i32 : i32 to vector<1x256xi32>
    %26 = arith.shrsi %24, %25 : vector<1x256xi32>
    %c15_i32 = arith.constant 15 : i32
    %27 = vector.broadcast %c15_i32 : i32 to vector<1x256xi32>
    %28 = arith.andi %24, %27 : vector<1x256xi32>
    %cst_10 = arith.constant 0.000000e+00 : f32
    %29 = vector.broadcast %cst_10 : f32 to vector<8x256xf32>
    %c17_i32 = arith.constant 17 : i32
    %30 = tpu.dynamic_rotate %23 by %c17_i32 dim 1 : vector<4x256xf32>, i32 -> vector<4x256xf32>
    %c1_i32 = arith.constant 1 : i32
    %31 = vector.broadcast %c1_i32 : i32 to vector<1x256xi32>
    %32 = arith.cmpi sge, %26, %31 : vector<1x256xi32>
    %c1_i32_11 = arith.constant 1 : i32
    %33 = vector.broadcast %c1_i32_11 : i32 to vector<1x256xi32>
    %34 = arith.cmpi sge, %28, %33 : vector<1x256xi32>
    %35 = arith.andi %32, %34 : vector<1x256xi1>
    %cst_12 = arith.constant 0.000000e+00 : f32
    %36 = vector.shape_cast %35 : vector<1x256xi1> to vector<1x256xi1>
    %37 = vector.broadcast %36 : vector<1x256xi1> to vector<4x256xi1>
    %38 = vector.broadcast %cst_12 : f32 to vector<4x256xf32>
    %39 = arith.select %37, %30, %38 : vector<4x256xi1>, vector<4x256xf32>
    %c0_13 = arith.constant 0 : index
    %c0_14 = arith.constant 0 : index
    %c0_15 = arith.constant 0 : index
    %40 = vector.load %arg2[%c0_13, %c0_14, %c0_15] : memref<9x8x4xbf16, #tpu.memory_space<vmem>>, vector<1x8x4xbf16>
    %41 = vector.shape_cast %40 : vector<1x8x4xbf16> to vector<8x4xbf16>
    %42 = arith.truncf %39 : vector<4x256xf32> to vector<4x256xbf16>
    %cst_16 = arith.constant dense<0.000000e+00> : vector<8x256xf32>
    %43 = tpu.matmul %41, %42, %cst_16 {dimension_numbers = #tpu.dot_dimension_numbers<[1], [0], [0], [1], [0, 0, 1, 1], [], []>} : vector<8x4xbf16>, vector<4x256xbf16>, vector<8x256xf32> -> vector<8x256xf32>
    %44 = arith.addf %29, %43 : vector<8x256xf32>
    %c16_i32 = arith.constant 16 : i32
    %45 = tpu.dynamic_rotate %23 by %c16_i32 dim 1 : vector<4x256xf32>, i32 -> vector<4x256xf32>
    %c1_i32_17 = arith.constant 1 : i32
    %46 = vector.broadcast %c1_i32_17 : i32 to vector<1x256xi32>
    %47 = arith.cmpi sge, %26, %46 : vector<1x256xi32>
    %cst_18 = arith.constant 0.000000e+00 : f32
    %48 = vector.shape_cast %47 : vector<1x256xi1> to vector<1x256xi1>
    %49 = vector.broadcast %48 : vector<1x256xi1> to vector<4x256xi1>
    %50 = vector.broadcast %cst_18 : f32 to vector<4x256xf32>
    %51 = arith.select %49, %45, %50 : vector<4x256xi1>, vector<4x256xf32>
    %c1 = arith.constant 1 : index
    %c0_19 = arith.constant 0 : index
    %c0_20 = arith.constant 0 : index
    %52 = vector.load %arg2[%c1, %c0_19, %c0_20] : memref<9x8x4xbf16, #tpu.memory_space<vmem>>, vector<1x8x4xbf16>
    %53 = vector.shape_cast %52 : vector<1x8x4xbf16> to vector<8x4xbf16>
    %54 = arith.truncf %51 : vector<4x256xf32> to vector<4x256xbf16>
    %cst_21 = arith.constant dense<0.000000e+00> : vector<8x256xf32>
    %55 = tpu.matmul %53, %54, %cst_21 {dimension_numbers = #tpu.dot_dimension_numbers<[1], [0], [0], [1], [0, 0, 1, 1], [], []>} : vector<8x4xbf16>, vector<4x256xbf16>, vector<8x256xf32> -> vector<8x256xf32>
    %56 = arith.addf %44, %55 : vector<8x256xf32>
    %c15_i32_22 = arith.constant 15 : i32
    %57 = tpu.dynamic_rotate %23 by %c15_i32_22 dim 1 : vector<4x256xf32>, i32 -> vector<4x256xf32>
    %c1_i32_23 = arith.constant 1 : i32
    %58 = vector.broadcast %c1_i32_23 : i32 to vector<1x256xi32>
    %59 = arith.cmpi sge, %26, %58 : vector<1x256xi32>
    %c15_i32_24 = arith.constant 15 : i32
    %60 = vector.broadcast %c15_i32_24 : i32 to vector<1x256xi32>
    %61 = arith.cmpi slt, %28, %60 : vector<1x256xi32>
    %62 = arith.andi %59, %61 : vector<1x256xi1>
    %cst_25 = arith.constant 0.000000e+00 : f32
    %63 = vector.shape_cast %62 : vector<1x256xi1> to vector<1x256xi1>
    %64 = vector.broadcast %63 : vector<1x256xi1> to vector<4x256xi1>
    %65 = vector.broadcast %cst_25 : f32 to vector<4x256xf32>
    %66 = arith.select %64, %57, %65 : vector<4x256xi1>, vector<4x256xf32>
    %c2 = arith.constant 2 : index
    %c0_26 = arith.constant 0 : index
    %c0_27 = arith.constant 0 : index
    %67 = vector.load %arg2[%c2, %c0_26, %c0_27] : memref<9x8x4xbf16, #tpu.memory_space<vmem>>, vector<1x8x4xbf16>
    %68 = vector.shape_cast %67 : vector<1x8x4xbf16> to vector<8x4xbf16>
    %69 = arith.truncf %66 : vector<4x256xf32> to vector<4x256xbf16>
    %cst_28 = arith.constant dense<0.000000e+00> : vector<8x256xf32>
    %70 = tpu.matmul %68, %69, %cst_28 {dimension_numbers = #tpu.dot_dimension_numbers<[1], [0], [0], [1], [0, 0, 1, 1], [], []>} : vector<8x4xbf16>, vector<4x256xbf16>, vector<8x256xf32> -> vector<8x256xf32>
    %71 = arith.addf %56, %70 : vector<8x256xf32>
    %c1_i32_29 = arith.constant 1 : i32
    %72 = tpu.dynamic_rotate %23 by %c1_i32_29 dim 1 : vector<4x256xf32>, i32 -> vector<4x256xf32>
    %c1_i32_30 = arith.constant 1 : i32
    %73 = vector.broadcast %c1_i32_30 : i32 to vector<1x256xi32>
    %74 = arith.cmpi sge, %28, %73 : vector<1x256xi32>
    %cst_31 = arith.constant 0.000000e+00 : f32
    %75 = vector.shape_cast %74 : vector<1x256xi1> to vector<1x256xi1>
    %76 = vector.broadcast %75 : vector<1x256xi1> to vector<4x256xi1>
    %77 = vector.broadcast %cst_31 : f32 to vector<4x256xf32>
    %78 = arith.select %76, %72, %77 : vector<4x256xi1>, vector<4x256xf32>
    %c3 = arith.constant 3 : index
    %c0_32 = arith.constant 0 : index
    %c0_33 = arith.constant 0 : index
    %79 = vector.load %arg2[%c3, %c0_32, %c0_33] : memref<9x8x4xbf16, #tpu.memory_space<vmem>>, vector<1x8x4xbf16>
    %80 = vector.shape_cast %79 : vector<1x8x4xbf16> to vector<8x4xbf16>
    %81 = arith.truncf %78 : vector<4x256xf32> to vector<4x256xbf16>
    %cst_34 = arith.constant dense<0.000000e+00> : vector<8x256xf32>
    %82 = tpu.matmul %80, %81, %cst_34 {dimension_numbers = #tpu.dot_dimension_numbers<[1], [0], [0], [1], [0, 0, 1, 1], [], []>} : vector<8x4xbf16>, vector<4x256xbf16>, vector<8x256xf32> -> vector<8x256xf32>
    %83 = arith.addf %71, %82 : vector<8x256xf32>
    %c4 = arith.constant 4 : index
    %c0_35 = arith.constant 0 : index
    %c0_36 = arith.constant 0 : index
    %84 = vector.load %arg2[%c4, %c0_35, %c0_36] : memref<9x8x4xbf16, #tpu.memory_space<vmem>>, vector<1x8x4xbf16>
    %85 = vector.shape_cast %84 : vector<1x8x4xbf16> to vector<8x4xbf16>
    %86 = arith.truncf %23 : vector<4x256xf32> to vector<4x256xbf16>
    %cst_37 = arith.constant dense<0.000000e+00> : vector<8x256xf32>
    %87 = tpu.matmul %85, %86, %cst_37 {dimension_numbers = #tpu.dot_dimension_numbers<[1], [0], [0], [1], [0, 0, 1, 1], [], []>} : vector<8x4xbf16>, vector<4x256xbf16>, vector<8x256xf32> -> vector<8x256xf32>
    %88 = arith.addf %83, %87 : vector<8x256xf32>
    %c255_i32 = arith.constant 255 : i32
    %89 = tpu.dynamic_rotate %23 by %c255_i32 dim 1 : vector<4x256xf32>, i32 -> vector<4x256xf32>
    %c15_i32_38 = arith.constant 15 : i32
    %90 = vector.broadcast %c15_i32_38 : i32 to vector<1x256xi32>
    %91 = arith.cmpi slt, %28, %90 : vector<1x256xi32>
    %cst_39 = arith.constant 0.000000e+00 : f32
    %92 = vector.shape_cast %91 : vector<1x256xi1> to vector<1x256xi1>
    %93 = vector.broadcast %92 : vector<1x256xi1> to vector<4x256xi1>
    %94 = vector.broadcast %cst_39 : f32 to vector<4x256xf32>
    %95 = arith.select %93, %89, %94 : vector<4x256xi1>, vector<4x256xf32>
    %c5 = arith.constant 5 : index
    %c0_40 = arith.constant 0 : index
    %c0_41 = arith.constant 0 : index
    %96 = vector.load %arg2[%c5, %c0_40, %c0_41] : memref<9x8x4xbf16, #tpu.memory_space<vmem>>, vector<1x8x4xbf16>
    %97 = vector.shape_cast %96 : vector<1x8x4xbf16> to vector<8x4xbf16>
    %98 = arith.truncf %95 : vector<4x256xf32> to vector<4x256xbf16>
    %cst_42 = arith.constant dense<0.000000e+00> : vector<8x256xf32>
    %99 = tpu.matmul %97, %98, %cst_42 {dimension_numbers = #tpu.dot_dimension_numbers<[1], [0], [0], [1], [0, 0, 1, 1], [], []>} : vector<8x4xbf16>, vector<4x256xbf16>, vector<8x256xf32> -> vector<8x256xf32>
    %100 = arith.addf %88, %99 : vector<8x256xf32>
    %c241_i32 = arith.constant 241 : i32
    %101 = tpu.dynamic_rotate %23 by %c241_i32 dim 1 : vector<4x256xf32>, i32 -> vector<4x256xf32>
    %c15_i32_43 = arith.constant 15 : i32
    %102 = vector.broadcast %c15_i32_43 : i32 to vector<1x256xi32>
    %103 = arith.cmpi slt, %26, %102 : vector<1x256xi32>
    %c1_i32_44 = arith.constant 1 : i32
    %104 = vector.broadcast %c1_i32_44 : i32 to vector<1x256xi32>
    %105 = arith.cmpi sge, %28, %104 : vector<1x256xi32>
    %106 = arith.andi %103, %105 : vector<1x256xi1>
    %cst_45 = arith.constant 0.000000e+00 : f32
    %107 = vector.shape_cast %106 : vector<1x256xi1> to vector<1x256xi1>
    %108 = vector.broadcast %107 : vector<1x256xi1> to vector<4x256xi1>
    %109 = vector.broadcast %cst_45 : f32 to vector<4x256xf32>
    %110 = arith.select %108, %101, %109 : vector<4x256xi1>, vector<4x256xf32>
    %c6 = arith.constant 6 : index
    %c0_46 = arith.constant 0 : index
    %c0_47 = arith.constant 0 : index
    %111 = vector.load %arg2[%c6, %c0_46, %c0_47] : memref<9x8x4xbf16, #tpu.memory_space<vmem>>, vector<1x8x4xbf16>
    %112 = vector.shape_cast %111 : vector<1x8x4xbf16> to vector<8x4xbf16>
    %113 = arith.truncf %110 : vector<4x256xf32> to vector<4x256xbf16>
    %cst_48 = arith.constant dense<0.000000e+00> : vector<8x256xf32>
    %114 = tpu.matmul %112, %113, %cst_48 {dimension_numbers = #tpu.dot_dimension_numbers<[1], [0], [0], [1], [0, 0, 1, 1], [], []>} : vector<8x4xbf16>, vector<4x256xbf16>, vector<8x256xf32> -> vector<8x256xf32>
    %115 = arith.addf %100, %114 : vector<8x256xf32>
    %c240_i32 = arith.constant 240 : i32
    %116 = tpu.dynamic_rotate %23 by %c240_i32 dim 1 : vector<4x256xf32>, i32 -> vector<4x256xf32>
    %c15_i32_49 = arith.constant 15 : i32
    %117 = vector.broadcast %c15_i32_49 : i32 to vector<1x256xi32>
    %118 = arith.cmpi slt, %26, %117 : vector<1x256xi32>
    %cst_50 = arith.constant 0.000000e+00 : f32
    %119 = vector.shape_cast %118 : vector<1x256xi1> to vector<1x256xi1>
    %120 = vector.broadcast %119 : vector<1x256xi1> to vector<4x256xi1>
    %121 = vector.broadcast %cst_50 : f32 to vector<4x256xf32>
    %122 = arith.select %120, %116, %121 : vector<4x256xi1>, vector<4x256xf32>
    %c7 = arith.constant 7 : index
    %c0_51 = arith.constant 0 : index
    %c0_52 = arith.constant 0 : index
    %123 = vector.load %arg2[%c7, %c0_51, %c0_52] : memref<9x8x4xbf16, #tpu.memory_space<vmem>>, vector<1x8x4xbf16>
    %124 = vector.shape_cast %123 : vector<1x8x4xbf16> to vector<8x4xbf16>
    %125 = arith.truncf %122 : vector<4x256xf32> to vector<4x256xbf16>
    %cst_53 = arith.constant dense<0.000000e+00> : vector<8x256xf32>
    %126 = tpu.matmul %124, %125, %cst_53 {dimension_numbers = #tpu.dot_dimension_numbers<[1], [0], [0], [1], [0, 0, 1, 1], [], []>} : vector<8x4xbf16>, vector<4x256xbf16>, vector<8x256xf32> -> vector<8x256xf32>
    %127 = arith.addf %115, %126 : vector<8x256xf32>
    %c239_i32 = arith.constant 239 : i32
    %128 = tpu.dynamic_rotate %23 by %c239_i32 dim 1 : vector<4x256xf32>, i32 -> vector<4x256xf32>
    %c15_i32_54 = arith.constant 15 : i32
    %129 = vector.broadcast %c15_i32_54 : i32 to vector<1x256xi32>
    %130 = arith.cmpi slt, %26, %129 : vector<1x256xi32>
    %c15_i32_55 = arith.constant 15 : i32
    %131 = vector.broadcast %c15_i32_55 : i32 to vector<1x256xi32>
    %132 = arith.cmpi slt, %28, %131 : vector<1x256xi32>
    %133 = arith.andi %130, %132 : vector<1x256xi1>
    %cst_56 = arith.constant 0.000000e+00 : f32
    %134 = vector.shape_cast %133 : vector<1x256xi1> to vector<1x256xi1>
    %135 = vector.broadcast %134 : vector<1x256xi1> to vector<4x256xi1>
    %136 = vector.broadcast %cst_56 : f32 to vector<4x256xf32>
    %137 = arith.select %135, %128, %136 : vector<4x256xi1>, vector<4x256xf32>
    %c8 = arith.constant 8 : index
    %c0_57 = arith.constant 0 : index
    %c0_58 = arith.constant 0 : index
    %138 = vector.load %arg2[%c8, %c0_57, %c0_58] : memref<9x8x4xbf16, #tpu.memory_space<vmem>>, vector<1x8x4xbf16>
    %139 = vector.shape_cast %138 : vector<1x8x4xbf16> to vector<8x4xbf16>
    %140 = arith.truncf %137 : vector<4x256xf32> to vector<4x256xbf16>
    %cst_59 = arith.constant dense<0.000000e+00> : vector<8x256xf32>
    %141 = tpu.matmul %139, %140, %cst_59 {dimension_numbers = #tpu.dot_dimension_numbers<[1], [0], [0], [1], [0, 0, 1, 1], [], []>} : vector<8x4xbf16>, vector<4x256xbf16>, vector<8x256xf32> -> vector<8x256xf32>
    %142 = arith.addf %127, %141 : vector<8x256xf32>
    %c0_60 = arith.constant 0 : index
    %c0_61 = arith.constant 0 : index
    %143 = vector.load %arg3[%c0_60, %c0_61] : memref<8x1xf32, #tpu.memory_space<vmem>>, vector<8x1xf32>
    %144 = vector.broadcast %143 : vector<8x1xf32> to vector<8x256xf32>
    %145 = arith.addf %142, %144 : vector<8x256xf32>
    %cst_62 = arith.constant 5.000000e-01 : f32
    %146 = vector.broadcast %cst_62 : f32 to vector<8x256xf32>
    %147 = arith.mulf %146, %145 : vector<8x256xf32>
    %cst_63 = arith.constant 4.471500e-02 : f32
    %148 = vector.broadcast %cst_63 : f32 to vector<8x256xf32>
    %149 = arith.mulf %148, %145 : vector<8x256xf32>
    %150 = arith.mulf %149, %145 : vector<8x256xf32>
    %151 = arith.mulf %150, %145 : vector<8x256xf32>
    %152 = arith.addf %145, %151 : vector<8x256xf32>
    %cst_64 = arith.constant 0.797884583 : f32
    %153 = vector.broadcast %cst_64 : f32 to vector<8x256xf32>
    %154 = arith.mulf %153, %152 : vector<8x256xf32>
    %155 = math.tanh %154 : vector<8x256xf32>
    %cst_65 = arith.constant 1.000000e+00 : f32
    %156 = vector.broadcast %cst_65 : f32 to vector<8x256xf32>
    %157 = arith.addf %156, %155 : vector<8x256xf32>
    %158 = arith.mulf %147, %157 : vector<8x256xf32>
    %c0_66 = arith.constant 0 : index
    %c0_67 = arith.constant 0 : index
    %c0_68 = arith.constant 0 : index
    %159 = vector.load %arg6[%c0_66, %c0_67, %c0_68] : memref<1x8x256xf32, #tpu.memory_space<vmem>>, vector<1x8x256xf32>
    %160 = vector.shape_cast %159 : vector<1x8x256xf32> to vector<8x256xf32>
    %161 = vector.shape_cast %158 : vector<8x256xf32> to vector<1x8x256xf32>
    tpu.vector_store %arg6[%c0_66, %c0_67, %c0_68], %161 {strides = array<i32>} : memref<1x8x256xf32, #tpu.memory_space<vmem>>, vector<1x8x256xf32>,
    return
  }
  func.func @transform_0(%arg0: i32) -> (i32, i32, i32) {
    %c0_i32 = arith.constant 0 : i32
    %c0_i32_0 = arith.constant 0 : i32
    %c0_i32_1 = arith.constant 0 : i32
    return %arg0, %c0_i32, %c0_i32_0 : i32, i32, i32
  }
  func.func @transform_1(%arg0: i32) -> (i32, i32, i32) {
    %c0_i32 = arith.constant 0 : i32
    %c0_i32_0 = arith.constant 0 : i32
    %c0_i32_1 = arith.constant 0 : i32
    %c0_i32_2 = arith.constant 0 : i32
    return %c0_i32, %c0_i32_0, %c0_i32_1 : i32, i32, i32
  }
  func.func @transform_2(%arg0: i32) -> (i32, i32) {
    %c0_i32 = arith.constant 0 : i32
    %c0_i32_0 = arith.constant 0 : i32
    %c0_i32_1 = arith.constant 0 : i32
    return %c0_i32, %c0_i32_0 : i32, i32
  }
  func.func @transform_3(%arg0: i32) -> (i32, i32) {
    %c0_i32 = arith.constant 0 : i32
    %c0_i32_0 = arith.constant 0 : i32
    %c0_i32_1 = arith.constant 0 : i32
    return %c0_i32, %c0_i32_0 : i32, i32
  }
  func.func @transform_4(%arg0: i32) -> (i32, i32) {
    %c0_i32 = arith.constant 0 : i32
    %c0_i32_0 = arith.constant 0 : i32
    %c0_i32_1 = arith.constant 0 : i32
    return %c0_i32, %c0_i32_0 : i32, i32
  }
  func.func @transform_5(%arg0: i32) -> (i32, i32, i32) {
    %c0_i32 = arith.constant 0 : i32
    %c0_i32_0 = arith.constant 0 : i32
    %c0_i32_1 = arith.constant 0 : i32
    return %arg0, %c0_i32, %c0_i32_0 : i32, i32, i32
  }
}

module attributes {stable_mosaic.version = 11 : i64} {
  func.func @_conv1x1_residual_kernel(%arg0: i32, %arg1: memref<1x8x256xf32, #tpu.memory_space<vmem>>, %arg2: memref<1x4x256xf32, #tpu.memory_space<vmem>>, %arg3: memref<4x8xbf16, #tpu.memory_space<vmem>>, %arg4: memref<4x1xf32, #tpu.memory_space<vmem>>, %arg5: memref<1x4x256xf32, #tpu.memory_space<vmem>>) attributes {dimension_semantics = [#tpu.dimension_semantics<parallel>], iteration_bounds = array<i64: 2>, scalar_prefetch = 0 : i64, scratch_operands = 0 : i64, tpu.core_type = #tpu.core_type<tc>, window_params = [{transform_indices = @transform_0, window_bounds = array<i64: 1, 8, 256>}, {transform_indices = @transform_1, window_bounds = array<i64: 1, 4, 256>}, {pipeline_mode = #tpu.pipeline_mode<synchronous>, transform_indices = @transform_2, window_bounds = array<i64: 4, 8>}, {pipeline_mode = #tpu.pipeline_mode<synchronous>, transform_indices = @transform_3, window_bounds = array<i64: 4, 1>}, {transform_indices = @transform_4, window_bounds = array<i64: 1, 4, 256>}]} {
    %c0 = arith.constant 0 : index
    %c0_0 = arith.constant 0 : index
    %0 = vector.load %arg3[%c0, %c0_0] : memref<4x8xbf16, #tpu.memory_space<vmem>>, vector<4x8xbf16>
    %c0_1 = arith.constant 0 : index
    %c0_2 = arith.constant 0 : index
    %c0_3 = arith.constant 0 : index
    %1 = vector.load %arg1[%c0_1, %c0_2, %c0_3] : memref<1x8x256xf32, #tpu.memory_space<vmem>>, vector<1x8x256xf32>
    %2 = vector.shape_cast %1 : vector<1x8x256xf32> to vector<8x256xf32>
    %3 = arith.truncf %2 : vector<8x256xf32> to vector<8x256xbf16>
    %cst = arith.constant dense<0.000000e+00> : vector<4x256xf32>
    %4 = tpu.matmul %0, %3, %cst {dimension_numbers = #tpu.dot_dimension_numbers<[1], [0], [0], [1], [0, 0, 1, 1], [], []>} : vector<4x8xbf16>, vector<8x256xbf16>, vector<4x256xf32> -> vector<4x256xf32>
    %c0_4 = arith.constant 0 : index
    %c0_5 = arith.constant 0 : index
    %5 = vector.load %arg4[%c0_4, %c0_5] : memref<4x1xf32, #tpu.memory_space<vmem>>, vector<4x1xf32>
    %6 = vector.broadcast %5 : vector<4x1xf32> to vector<4x256xf32>
    %7 = arith.addf %4, %6 : vector<4x256xf32>
    %c0_6 = arith.constant 0 : index
    %c0_7 = arith.constant 0 : index
    %c0_8 = arith.constant 0 : index
    %8 = vector.load %arg2[%c0_6, %c0_7, %c0_8] : memref<1x4x256xf32, #tpu.memory_space<vmem>>, vector<1x4x256xf32>
    %9 = vector.shape_cast %8 : vector<1x4x256xf32> to vector<4x256xf32>
    %10 = arith.addf %7, %9 : vector<4x256xf32>
    %c0_9 = arith.constant 0 : index
    %c0_10 = arith.constant 0 : index
    %c0_11 = arith.constant 0 : index
    %11 = vector.load %arg5[%c0_9, %c0_10, %c0_11] : memref<1x4x256xf32, #tpu.memory_space<vmem>>, vector<1x4x256xf32>
    %12 = vector.shape_cast %11 : vector<1x4x256xf32> to vector<4x256xf32>
    %13 = vector.shape_cast %10 : vector<4x256xf32> to vector<1x4x256xf32>
    tpu.vector_store %arg5[%c0_9, %c0_10, %c0_11], %13 {strides = array<i32>} : memref<1x4x256xf32, #tpu.memory_space<vmem>>, vector<1x4x256xf32>,
    return
  }
  func.func @transform_0(%arg0: i32) -> (i32, i32, i32) {
    %c0_i32 = arith.constant 0 : i32
    %c0_i32_0 = arith.constant 0 : i32
    %c0_i32_1 = arith.constant 0 : i32
    return %arg0, %c0_i32, %c0_i32_0 : i32, i32, i32
  }
  func.func @transform_1(%arg0: i32) -> (i32, i32, i32) {
    %c0_i32 = arith.constant 0 : i32
    %c0_i32_0 = arith.constant 0 : i32
    %c0_i32_1 = arith.constant 0 : i32
    return %arg0, %c0_i32, %c0_i32_0 : i32, i32, i32
  }
  func.func @transform_2(%arg0: i32) -> (i32, i32) {
    %c0_i32 = arith.constant 0 : i32
    %c0_i32_0 = arith.constant 0 : i32
    %c0_i32_1 = arith.constant 0 : i32
    return %c0_i32, %c0_i32_0 : i32, i32
  }
  func.func @transform_3(%arg0: i32) -> (i32, i32) {
    %c0_i32 = arith.constant 0 : i32
    %c0_i32_0 = arith.constant 0 : i32
    %c0_i32_1 = arith.constant 0 : i32
    return %c0_i32, %c0_i32_0 : i32, i32
  }
  func.func @transform_4(%arg0: i32) -> (i32, i32, i32) {
    %c0_i32 = arith.constant 0 : i32
    %c0_i32_0 = arith.constant 0 : i32
    %c0_i32_1 = arith.constant 0 : i32
    return %arg0, %c0_i32, %c0_i32_0 : i32, i32, i32
  }
}

</mosaic_0001>

<llo_original>
// kernel: _lambda_.7
$region0: #{_lambda_.7}
  #allocation0 [shape = 'u32[]', space=smem, size = 0x4, offset = 0x4, fixed_abs, tag = 'smem constant byte address 0x4 - core index']
  #allocation1 [shape = 'u32[144,128]{1,0:T(1,128)}', space=vmem, size = 0x12000, scoped, tag = 'internal scratch']
  #allocation2 [shape = 'f32[1,1]{1,0:T(1,128)S(1)}', space=vmem, size = 0x200, scoped, tag = 'scoped memory for _lambda_.7']
  %s0 = inlined_call_operand.vmem [shape: f32[2,4,256], index: 0, kind: input, shape index: {}]
  %s1 = inlined_call_operand.vmem [shape: f32[4,1], index: 1, kind: input, shape index: {}]
  %s2 = inlined_call_operand.vmem [shape: f32[4,1], index: 2, kind: input, shape index: {}]
  %s3 = inlined_call_operand.vmem [shape: bf16[2,4], index: 3, kind: input, shape index: {}]
  %s4 = inlined_call_operand.vmem [shape: f32[2,1], index: 4, kind: input, shape index: {}]
  %s5 = inlined_call_operand.vmem [shape: bf16[4,2], index: 5, kind: input, shape index: {}]
  %s6 = inlined_call_operand.vmem [shape: f32[4,1], index: 6, kind: input, shape index: {}]
  %s7 = inlined_call_operand.vmem [shape: f32[4,1], index: 7, kind: input, shape index: {}]
  %s8 = inlined_call_operand.<no memory space> [shape: f32[1,1], index: 8, kind: input, shape index: {}]
  %s9 = inlined_call_operand.vmem [shape: f32[3,4,1], index: 9, kind: input, shape index: {}]
  %s10 = inlined_call_operand.vmem [shape: f32[3,4,1], index: 10, kind: input, shape index: {}]
  %s11 = inlined_call_operand.vmem [shape: bf16[4,4], index: 11, kind: input, shape index: {}]
  %s12 = inlined_call_operand.vmem [shape: f32[4,1], index: 12, kind: input, shape index: {}]
  %s13 = inlined_call_operand.vmem [shape: f32[2,4,256], index: 13, kind: output, shape index: {}]
  %s14 = sld [smem:[#allocation0]]
  $region85: #{_lambda_.7} parent=0
    _
  %s16 = ssub.s32 1, %s14
  %s17 = scalar_select 0, %s16, %s14
  %v18 = vstv %s8
  %19 = vst [vmem:[#allocation2] sm:$0x1] %v18
  loop: start=0, step=1, limit=4
  $region2: #{_lambda_.7} parent=0 // loop_pre_header
    _
  $region3: #{_lambda_.7} parent=0 // loop_header
    %s21 = sphi 0, %s25
    %p22 = scmp.ge.s32.totalorder %s21, 4
    %s31 = sphi 0, %s33
    %s34 = sphi 0, %s31
    %s35 = sphi 0, %s34
    %s51 = sphi 0, %s35
    %s55 = sphi 0, %s55
    %s57 = sphi 0, %s55
    %s58 = sphi 0, %s57
    %s72 = sphi 0, %s58
    %s76 = sphi 0, %s76
    %s78 = sphi 0, %s76
    %s79 = sphi 0, %s78
    %s93 = sphi 0, %s79
    %s97 = sphi 0, %s97
    %s99 = sphi 0, %s97
    %s100 = sphi 0, %s99
    %s114 = sphi 0, %s100
    %s118 = sphi 0, %s118
    %s120 = sphi 0, %s118
    %s121 = sphi 0, %s120
    %s135 = sphi 0, %s121
    %s139 = sphi 0, %s139
    %s141 = sphi 0, %s139
    %s142 = sphi 0, %s141
    %s156 = sphi 0, %s142
    %s160 = sphi 0, %s160
    %s162 = sphi 0, %s160
    %s163 = sphi 0, %s162
    %s177 = sphi 0, %s163
    %s181 = sphi 0, %s181
    %s183 = sphi 0, %s181
    %s184 = sphi 0, %s183
    %s198 = sphi 0, %s184
    %s202 = sphi 0, %s202
    %s204 = sphi 0, %s202
    %s205 = sphi 0, %s204
    %s219 = sphi 0, %s205
    %s223 = sphi 0, %s223
    %s225 = sphi 0, %s223
    %s226 = sphi 0, %s225
    %s240 = sphi 0, %s226
    %s244 = sphi 0, %s244
    %s246 = sphi 0, %s244
    %s247 = sphi 0, %s246
    %s261 = sphi 0, %s247
    %s265 = sphi 0, %s265
    %s267 = sphi 0, %s265
    %s268 = sphi 0, %s267
    %s282 = sphi 0, %s268
    %s286 = sphi 0, %s286
    %s288 = sphi 0, %s286
    %s289 = sphi 0, %s288
    %s303 = sphi 0, %s289
    %s309 = sphi 0, %s311
    %s312 = sphi 0, %s309
    %s313 = sphi 0, %s312
    %s329 = sphi 0, %s313
  $region4: #{_lambda_.7} parent=0 // loop_header_branch
    %24 = sbr.rel (%p22) target = $region8
  $region5: #{_lambda_.7} parent=0 // loop_body
    %s26 = ssub.s32 %s21, 1
    %s27 = ssub.s32 %s21, 2
    %s28 = sadd.s32 %s21, 1
    %s29 = ssub.s32 %s21, %s28
    %p30 = scmp.eq.s32.totalorder %s29, 0
    %s32 = sadd.s32 %s31, 1
    %s33 = scalar_select %p30, %s31, %s32
    %p36 = pneg %p30
    %p37 = scmp.eq.s32.totalorder %s21, 1
    %p38 = por %p36, %p37
    %p39 = scmp.ne.s32.totalorder %s31, %s34
    %p40 = scmp.eq.s32.totalorder %s21, 0
    %p41 = por %p39, %p40
    %p42 = scmp.ne.s32.totalorder %s31, %s34
    %p43 = scmp.eq.s32.totalorder %s26, 1
    %p44 = por %p42, %p43
    %p45 = scmp.ne.s32.totalorder %s34, %s35
    %p46 = scmp.eq.s32.totalorder %s26, 0
    %p47 = por %p45, %p46
    %p48 = scmp.ne.s32.totalorder %s34, %s35
    %p49 = scmp.eq.s32.totalorder %s27, 1
    %p50 = por %p48, %p49
    %p52 = scmp.ne.s32.totalorder %s35, %s51
    %p53 = scmp.eq.s32.totalorder %s27, 0
    %p54 = por %p52, %p53
    %s56 = sadd.s32 %s55, 1
    %p59 = scmp.eq.s32.totalorder %s21, 1
    %p60 = scmp.ne.s32.totalorder %s55, %s57
    %p61 = scmp.eq.s32.totalorder %s21, 0
    %p62 = por %p60, %p61
    %p63 = scmp.ne.s32.totalorder %s55, %s57
    %p64 = scmp.eq.s32.totalorder %s26, 1
    %p65 = por %p63, %p64
    %p66 = scmp.ne.s32.totalorder %s57, %s58
    %p67 = scmp.eq.s32.totalorder %s26, 0
    %p68 = por %p66, %p67
    %p69 = scmp.ne.s32.totalorder %s57, %s58
    %p70 = scmp.eq.s32.totalorder %s27, 1
    %p71 = por %p69, %p70
    %p73 = scmp.ne.s32.totalorder %s58, %s72
    %p74 = scmp.eq.s32.totalorder %s27, 0
    %p75 = por %p73, %p74
    %s77 = sadd.s32 %s76, 1
    %p80 = scmp.eq.s32.totalorder %s21, 1
    %p81 = scmp.ne.s32.totalorder %s76, %s78
    %p82 = scmp.eq.s32.totalorder %s21, 0
    %p83 = por %p81, %p82
    %p84 = scmp.ne.s32.totalorder %s76, %s78
    %p85 = scmp.eq.s32.totalorder %s26, 1
    %p86 = por %p84, %p85
    %p87 = scmp.ne.s32.totalorder %s78, %s79
    %p88 = scmp.eq.s32.totalorder %s26, 0
    %p89 = por %p87, %p88
    %p90 = scmp.ne.s32.totalorder %s78, %s79
    %p91 = scmp.eq.s32.totalorder %s27, 1
    %p92 = por %p90, %p91
    %p94 = scmp.ne.s32.totalorder %s79, %s93
    %p95 = scmp.eq.s32.totalorder %s27, 0
    %p96 = por %p94, %p95
    %s98 = sadd.s32 %s97, 1
    %p101 = scmp.eq.s32.totalorder %s21, 1
    %p102 = scmp.ne.s32.totalorder %s97, %s99
    %p103 = scmp.eq.s32.totalorder %s21, 0
    %p104 = por %p102, %p103
    %p105 = scmp.ne.s32.totalorder %s97, %s99
    %p106 = scmp.eq.s32.totalorder %s26, 1
    %p107 = por %p105, %p106
    %p108 = scmp.ne.s32.totalorder %s99, %s100
    %p109 = scmp.eq.s32.totalorder %s26, 0
    %p110 = por %p108, %p109
    %p111 = scmp.ne.s32.totalorder %s99, %s100
    %p112 = scmp.eq.s32.totalorder %s27, 1
    %p113 = por %p111, %p112
    %p115 = scmp.ne.s32.totalorder %s100, %s114
    %p116 = scmp.eq.s32.totalorder %s27, 0
    %p117 = por %p115, %p116
    %s119 = sadd.s32 %s118, 1
    %p122 = scmp.eq.s32.totalorder %s21, 1
    %p123 = scmp.ne.s32.totalorder %s118, %s120
    %p124 = scmp.eq.s32.totalorder %s21, 0
    %p125 = por %p123, %p124
    %p126 = scmp.ne.s32.totalorder %s118, %s120
    %p127 = scmp.eq.s32.totalorder %s26, 1
    %p128 = por %p126, %p127
    %p129 = scmp.ne.s32.totalorder %s120, %s121
    %p130 = scmp.eq.s32.totalorder %s26, 0
    %p131 = por %p129, %p130
    %p132 = scmp.ne.s32.totalorder %s120, %s121
    %p133 = scmp.eq.s32.totalorder %s27, 1
    %p134 = por %p132, %p133
    %p136 = scmp.ne.s32.totalorder %s121, %s135
    %p137 = scmp.eq.s32.totalorder %s27, 0
    %p138 = por %p136, %p137
    %s140 = sadd.s32 %s139, 1
    %p143 = scmp.eq.s32.totalorder %s21, 1
    %p144 = scmp.ne.s32.totalorder %s139, %s141
    %p145 = scmp.eq.s32.totalorder %s21, 0
    %p146 = por %p144, %p145
    %p147 = scmp.ne.s32.totalorder %s139, %s141
    %p148 = scmp.eq.s32.totalorder %s26, 1
    %p149 = por %p147, %p148
    %p150 = scmp.ne.s32.totalorder %s141, %s142
    %p151 = scmp.eq.s32.totalorder %s26, 0
    %p152 = por %p150, %p151
    %p153 = scmp.ne.s32.totalorder %s141, %s142
    %p154 = scmp.eq.s32.totalorder %s27, 1
    %p155 = por %p153, %p154
    %p157 = scmp.ne.s32.totalorder %s142, %s156
    %p158 = scmp.eq.s32.totalorder %s27, 0
    %p159 = por %p157, %p158
    %s161 = sadd.s32 %s160, 1
    %p164 = scmp.eq.s32.totalorder %s21, 1
    %p165 = scmp.ne.s32.totalorder %s160, %s162
    %p166 = scmp.eq.s32.totalorder %s21, 0
    %p167 = por %p165, %p166
    %p168 = scmp.ne.s32.totalorder %s160, %s162
    %p169 = scmp.eq.s32.totalorder %s26, 1
    %p170 = por %p168, %p169
    %p171 = scmp.ne.s32.totalorder %s162, %s163
    %p172 = scmp.eq.s32.totalorder %s26, 0
    %p173 = por %p171, %p172
    %p174 = scmp.ne.s32.totalorder %s162, %s163
    %p175 = scmp.eq.s32.totalorder %s27, 1
    %p176 = por %p174, %p175
    %p178 = scmp.ne.s32.totalorder %s163, %s177
    %p179 = scmp.eq.s32.totalorder %s27, 0
    %p180 = por %p178, %p179
    %s182 = sadd.s32 %s181, 1
    %p185 = scmp.eq.s32.totalorder %s21, 1
    %p186 = scmp.ne.s32.totalorder %s181, %s183
    %p187 = scmp.eq.s32.totalorder %s21, 0
    %p188 = por %p186, %p187
    %p189 = scmp.ne.s32.totalorder %s181, %s183
    %p190 = scmp.eq.s32.totalorder %s26, 1
    %p191 = por %p189, %p190
    %p192 = scmp.ne.s32.totalorder %s183, %s184
    %p193 = scmp.eq.s32.totalorder %s26, 0
    %p194 = por %p192, %p193
    %p195 = scmp.ne.s32.totalorder %s183, %s184
    %p196 = scmp.eq.s32.totalorder %s27, 1
    %p197 = por %p195, %p196
    %p199 = scmp.ne.s32.totalorder %s184, %s198
    %p200 = scmp.eq.s32.totalorder %s27, 0
    %p201 = por %p199, %p200
    %s203 = sadd.s32 %s202, 1
    %p206 = scmp.eq.s32.totalorder %s21, 1
    %p207 = scmp.ne.s32.totalorder %s202, %s204
    %p208 = scmp.eq.s32.totalorder %s21, 0
    %p209 = por %p207, %p208
    %p210 = scmp.ne.s32.totalorder %s202, %s204
    %p211 = scmp.eq.s32.totalorder %s26, 1
    %p212 = por %p210, %p211
    %p213 = scmp.ne.s32.totalorder %s204, %s205
    %p214 = scmp.eq.s32.totalorder %s26, 0
    %p215 = por %p213, %p214
    %p216 = scmp.ne.s32.totalorder %s204, %s205
    %p217 = scmp.eq.s32.totalorder %s27, 1
    %p218 = por %p216, %p217
    %p220 = scmp.ne.s32.totalorder %s205, %s219
    %p221 = scmp.eq.s32.totalorder %s27, 0
    %p222 = por %p220, %p221
    %s224 = sadd.s32 %s223, 1
    %p227 = scmp.eq.s32.totalorder %s21, 1
    %p228 = scmp.ne.s32.totalorder %s223, %s225
    %p229 = scmp.eq.s32.totalorder %s21, 0
    %p230 = por %p228, %p229
    %p231 = scmp.ne.s32.totalorder %s223, %s225
    %p232 = scmp.eq.s32.totalorder %s26, 1
    %p233 = por %p231, %p232
    %p234 = scmp.ne.s32.totalorder %s225, %s226
    %p235 = scmp.eq.s32.totalorder %s26, 0
    %p236 = por %p234, %p235
    %p237 = scmp.ne.s32.totalorder %s225, %s226
    %p238 = scmp.eq.s32.totalorder %s27, 1
    %p239 = por %p237, %p238
    %p241 = scmp.ne.s32.totalorder %s226, %s240
    %p242 = scmp.eq.s32.totalorder %s27, 0
    %p243 = por %p241, %p242
    %s245 = sadd.s32 %s244, 1
    %p248 = scmp.eq.s32.totalorder %s21, 1
    %p249 = scmp.ne.s32.totalorder %s244, %s246
    %p250 = scmp.eq.s32.totalorder %s21, 0
    %p251 = por %p249, %p250
    %p252 = scmp.ne.s32.totalorder %s244, %s246
    %p253 = scmp.eq.s32.totalorder %s26, 1
    %p254 = por %p252, %p253
    %p255 = scmp.ne.s32.totalorder %s246, %s247
    %p256 = scmp.eq.s32.totalorder %s26, 0
    %p257 = por %p255, %p256
    %p258 = scmp.ne.s32.totalorder %s246, %s247
    %p259 = scmp.eq.s32.totalorder %s27, 1
    %p260 = por %p258, %p259
    %p262 = scmp.ne.s32.totalorder %s247, %s261
    %p263 = scmp.eq.s32.totalorder %s27, 0
    %p264 = por %p262, %p263
    %s266 = sadd.s32 %s265, 1
    %p269 = scmp.eq.s32.totalorder %s21, 1
    %p270 = scmp.ne.s32.totalorder %s265, %s267
    %p271 = scmp.eq.s32.totalorder %s21, 0
    %p272 = por %p270, %p271
    %p273 = scmp.ne.s32.totalorder %s265, %s267
    %p274 = scmp.eq.s32.totalorder %s26, 1
    %p275 = por %p273, %p274
    %p276 = scmp.ne.s32.totalorder %s267, %s268
    %p277 = scmp.eq.s32.totalorder %s26, 0
    %p278 = por %p276, %p277
    %p279 = scmp.ne.s32.totalorder %s267, %s268
    %p280 = scmp.eq.s32.totalorder %s27, 1
    %p281 = por %p279, %p280
    %p283 = scmp.ne.s32.totalorder %s268, %s282
    %p284 = scmp.eq.s32.totalorder %s27, 0
    %p285 = por %p283, %p284
    %s287 = sadd.s32 %s286, 1
    %p290 = scmp.eq.s32.totalorder %s21, 1
    %p291 = scmp.ne.s32.totalorder %s286, %s288
    %p292 = scmp.eq.s32.totalorder %s21, 0
    %p293 = por %p291, %p292
    %p294 = scmp.ne.s32.totalorder %s286, %s288
    %p295 = scmp.eq.s32.totalorder %s26, 1
    %p296 = por %p294, %p295
    %p297 = scmp.ne.s32.totalorder %s288, %s289
    %p298 = scmp.eq.s32.totalorder %s26, 0
    %p299 = por %p297, %p298
    %p300 = scmp.ne.s32.totalorder %s288, %s289
    %p301 = scmp.eq.s32.totalorder %s27, 1
    %p302 = por %p300, %p301
    %p304 = scmp.ne.s32.totalorder %s289, %s303
    %p305 = scmp.eq.s32.totalorder %s27, 0
    %p306 = por %p304, %p305
    %s307 = ssub.s32 %s21, %s28
    %p308 = scmp.eq.s32.totalorder %s307, 0
    %s310 = sadd.s32 %s309, 1
    %s311 = scalar_select %p308, %s309, %s310
    %p314 = pneg %p308
    %p315 = scmp.eq.s32.totalorder %s21, 1
    %p316 = por %p314, %p315
    %p317 = scmp.ne.s32.totalorder %s309, %s312
    %p318 = scmp.eq.s32.totalorder %s21, 0
    %p319 = por %p317, %p318
    %p320 = scmp.ne.s32.totalorder %s309, %s312
    %p321 = scmp.eq.s32.totalorder %s26, 1
    %p322 = por %p320, %p321
    %p323 = scmp.ne.s32.totalorder %s312, %s313
    %p324 = scmp.eq.s32.totalorder %s26, 0
    %p325 = por %p323, %p324
    %p326 = scmp.ne.s32.totalorder %s312, %s313
    %p327 = scmp.eq.s32.totalorder %s27, 1
    %p328 = por %p326, %p327
    %p330 = scmp.ne.s32.totalorder %s313, %s329
    %p331 = scmp.eq.s32.totalorder %s27, 0
    %p332 = por %p330, %p331
    %p333 = scmp.le.s32.totalorder 1, %s21
    %p334 = scmp.lt.s32.totalorder %s21, 3
    %p335 = pnand %p333, %p334
    %p336 = pneg %p335
    // Predicated region
    $region9: #{_lambda_.7} parent=5 // pred_check
      _
    $region10: #{_lambda_.7} parent=5 // pred_check_branch
      %338 = sbr.rel (%p335) target = $region12
    $region11: #{_lambda_.7} parent=5 // pred_region
      %s339 = ssub.s32 %s21, 1
      // Predicated region
      $region13: #{_lambda_.7} parent=11 // pred_check
        %p340 = pneg %p68
      $region14: #{_lambda_.7} parent=11 // pred_check_branch
        %342 = sbr.rel (%p340) target = $region16
      $region15: #{_lambda_.7} parent=11 // pred_region
        _
      $region16: #{_lambda_.7} parent=11 // pred_fallthru
        _
      // Predicated region
      $region17: #{_lambda_.7} parent=11 // pred_check
        %p343 = pneg %p89
      $region18: #{_lambda_.7} parent=11 // pred_check_branch
        %345 = sbr.rel (%p343) target = $region20
      $region19: #{_lambda_.7} parent=11 // pred_region
        _
      $region20: #{_lambda_.7} parent=11 // pred_fallthru
        _
      // Predicated region
      $region21: #{_lambda_.7} parent=11 // pred_check
        %p346 = pneg %p110
      $region22: #{_lambda_.7} parent=11 // pred_check_branch
        %348 = sbr.rel (%p346) target = $region24
      $region23: #{_lambda_.7} parent=11 // pred_region
        _
      $region24: #{_lambda_.7} parent=11 // pred_fallthru
        _
      // Predicated region
      $region25: #{_lambda_.7} parent=11 // pred_check
        %p349 = pneg %p131
      $region26: #{_lambda_.7} parent=11 // pred_check_branch
        %351 = sbr.rel (%p349) target = $region28
      $region27: #{_lambda_.7} parent=11 // pred_region
        _
      $region28: #{_lambda_.7} parent=11 // pred_fallthru
        _
      // Predicated region
      $region29: #{_lambda_.7} parent=11 // pred_check
        %p352 = pneg %p152
      $region30: #{_lambda_.7} parent=11 // pred_check_branch
        %354 = sbr.rel (%p352) target = $region32
      $region31: #{_lambda_.7} parent=11 // pred_region
        _
      $region32: #{_lambda_.7} parent=11 // pred_fallthru
        _
      // Predicated region
      $region33: #{_lambda_.7} parent=11 // pred_check
        %p355 = pneg %p173
      $region34: #{_lambda_.7} parent=11 // pred_check_branch
        %357 = sbr.rel (%p355) target = $region36
      $region35: #{_lambda_.7} parent=11 // pred_region
        _
      $region36: #{_lambda_.7} parent=11 // pred_fallthru
        _
      // Predicated region
      $region37: #{_lambda_.7} parent=11 // pred_check
        %p358 = pneg %p194
      $region38: #{_lambda_.7} parent=11 // pred_check_branch
        %360 = sbr.rel (%p358) target = $region40
      $region39: #{_lambda_.7} parent=11 // pred_region
        _
      $region40: #{_lambda_.7} parent=11 // pred_fallthru
        _
      // Predicated region
      $region41: #{_lambda_.7} parent=11 // pred_check
        %p361 = pneg %p215
      $region42: #{_lambda_.7} parent=11 // pred_check_branch
        %363 = sbr.rel (%p361) target = $region44
      $region43: #{_lambda_.7} parent=11 // pred_region
        _
      $region44: #{_lambda_.7} parent=11 // pred_fallthru
        _
      // Predicated region
      $region45: #{_lambda_.7} parent=11 // pred_check
        %p364 = pneg %p236
      $region46: #{_lambda_.7} parent=11 // pred_check_branch
        %366 = sbr.rel (%p364) target = $region48
      $region47: #{_lambda_.7} parent=11 // pred_region
        _
      $region48: #{_lambda_.7} parent=11 // pred_fallthru
        _
      // Predicated region
      $region49: #{_lambda_.7} parent=11 // pred_check
        %p367 = pneg %p257
      $region50: #{_lambda_.7} parent=11 // pred_check_branch
        %369 = sbr.rel (%p367) target = $region52
      $region51: #{_lambda_.7} parent=11 // pred_region
        _
      $region52: #{_lambda_.7} parent=11 // pred_fallthru
        _
      // Predicated region
      $region53: #{_lambda_.7} parent=11 // pred_check
        %p370 = pneg %p278
      $region54: #{_lambda_.7} parent=11 // pred_check_branch
        %372 = sbr.rel (%p370) target = $region56
      $region55: #{_lambda_.7} parent=11 // pred_region
        _
      $region56: #{_lambda_.7} parent=11 // pred_fallthru
        _
      // Predicated region
      $region57: #{_lambda_.7} parent=11 // pred_check
        %p373 = pneg %p299
      $region58: #{_lambda_.7} parent=11 // pred_check_branch
        %375 = sbr.rel (%p373) target = $region60
      $region59: #{_lambda_.7} parent=11 // pred_region
        _
      $region60: #{_lambda_.7} parent=11 // pred_fallthru
        _
    $region12: #{_lambda_.7} parent=5 // pred_fallthru
      _
    %p376 = scmp.lt.s32.totalorder %s21, 2
    // Predicated region
    $region61: #{_lambda_.7} parent=5 // pred_check
      %p377 = pneg %p376
    $region62: #{_lambda_.7} parent=5 // pred_check_branch
      %379 = sbr.rel (%p377) target = $region64
    $region63: #{_lambda_.7} parent=5 // pred_region
      // Predicated region
      $region65: #{_lambda_.7} parent=63 // pred_check
        %p380 = pneg %p41
      $region66: #{_lambda_.7} parent=63 // pred_check_branch
        %382 = sbr.rel (%p380) target = $region68
      $region67: #{_lambda_.7} parent=63 // pred_region
        %p383 = scmp.lt.s32.totalorder %s21, 1
        %s384 = scalar_select %p383, %s21, 1
        %s385 = smul.addr %s384, 2
        %s386 = smul.addr %s385, 4
        %s387 = scalar_lea.vmem %s0, %s386
      $region68: #{_lambda_.7} parent=63 // pred_fallthru
        _
    $region64: #{_lambda_.7} parent=5 // pred_fallthru
      _
    %p388 = scmp.le.s32.totalorder 1, %s21
    %p389 = scmp.lt.s32.totalorder %s21, 3
    %p390 = pnand %p388, %p389
    %p391 = pneg %p390
    // Predicated region
    $region69: #{_lambda_.7} parent=5 // pred_check
      _
    $region70: #{_lambda_.7} parent=5 // pred_check_branch
      %393 = sbr.rel (%p390) target = $region72
    $region71: #{_lambda_.7} parent=5 // pred_region
      %s394 = ssub.s32 %s21, 1
      %p395 = scmp.lt.s32.totalorder %s26, 1
      %s396 = scalar_select %p395, %s26, 1
      %s397 = smul.addr %s396, 2
      %s398 = smul.addr %s397, 4
      %s399 = scalar_lea.vmem %s0, %s398
      %p400 = pneg %p47
      %p401 = pneg %p44
      %p402 = pneg %p68
      %p403 = pneg %p65
      %p404 = pneg %p89
      %p405 = pneg %p86
      %p406 = pneg %p110
      %p407 = pneg %p107
      %p408 = pneg %p131
      %p409 = pneg %p128
      %p410 = pneg %p152
      %p411 = pneg %p149
      %p412 = pneg %p173
      %p413 = pneg %p170
      %p414 = pneg %p194
      %p415 = pneg %p191
      %p416 = pneg %p215
      %p417 = pneg %p212
      %p418 = pneg %p236
      %p419 = pneg %p233
      %p420 = pneg %p257
      %p421 = pneg %p254
      %p422 = pneg %p278
      %p423 = pneg %p275
      %p424 = pneg %p299
      %p425 = pneg %p296
      %p426 = pneg %p325
      %p427 = pneg %p322
      %p428 = scmp.lt.s32.totalorder %s26, 1
      %s429 = scalar_select %p428, %s26, 1
      %s430 = smul.addr %s429, 2
      %s431 = smul.addr %s430, 4
      %s432 = scalar_lea.vmem %s13, %s431
      %p433 = scmp.lt.s32.totalorder %s26, 1
      %s434 = scalar_select %p433, %s26, 1
      %s435 = smul.addr %s434, 2
      %s436 = smul.addr %s435, 4
      %s437 = scalar_lea.vmem %s0, %s436
      %p438 = scmp.lt.s32.totalorder %s26, 1
      %s439 = scalar_select %p438, %s26, 1
      %s440 = smul.addr %s439, 2
      %s441 = smul.addr %s440, 4
      %s442 = scalar_lea.vmem %s13, %s441
      %v444 = vld [vmem:[%s437] sm:$0xff]
      %v445 = vld [vmem:[%s1] sm:$0xf]
      %v446 = vld [vmem:[%s2] sm:$0xf]
      %v448 = vcombine.high %v444, %v444
      %vm450 = vcmask 1043456
      %v451 = vsel %vm450, %v444, 0.0
      %v452 = vrot.slane %v451, 4
      %v453 = vadd.f32 %v451, %v452
      %v454 = vrot.slane %v453, 2
      %v455 = vadd.f32 %v453, %v454
      %v456 = vrot.slane %v455, 1
      %v457 = vadd.f32 %v455, %v456
      %v458 = vsel %vm450, %v448, 0.0
      %v459 = vrot.slane %v458, 4
      %v460 = vadd.f32 %v458, %v459
      %v461 = vrot.slane %v460, 2
      %v462 = vadd.f32 %v460, %v461
      %v463 = vrot.slane %v462, 1
      %v464 = vadd.f32 %v462, %v463
      %v465 = vrcp.pop 4.0
      %v466 = vmul.f32 %v457, %v465
      %v467 = vmul.f32 %v464, %v465
      %v470 = vcombine.low %v466, %v467
      %v472 = vsub.f32 %v444, %v470
      %v473 = vmul.f32 %v472, %v472
      %v475 = vcombine.high %v473, %v473
      %v477 = vsel %vm450, %v473, 0.0
      %v478 = vrot.slane %v477, 4
      %v479 = vadd.f32 %v477, %v478
      %v480 = vrot.slane %v479, 2
      %v481 = vadd.f32 %v479, %v480
      %v482 = vrot.slane %v481, 1
      %v483 = vadd.f32 %v481, %v482
      %v484 = vsel %vm450, %v475, 0.0
      %v485 = vrot.slane %v484, 4
      %v486 = vadd.f32 %v484, %v485
      %v487 = vrot.slane %v486, 2
      %v488 = vadd.f32 %v486, %v487
      %v489 = vrot.slane %v488, 1
      %v490 = vadd.f32 %v488, %v489
      %v491 = vmul.f32 %v483, %v465
      %v492 = vmul.f32 %v490, %v465
      %v493 = vadd.f32 %v491, 1e-06
      %v494 = vadd.f32 %v492, 1e-06
      %v495 = vrsqrt.pop %v493
      %v496 = vrsqrt.pop %v494
      %v499 = vcombine.low %v495, %v496
      %v501 = vmul.f32 %v472, %v499
      %503 = vset.pattern.permute.xlu0 0
      %504 = vperm.xlu0 %503, %v445
      %v505 = vpop.permute.xlu0 %504
      %v508 = vcombine.high %v501, %v501
      %v510 = vmul.f32 %v505, %v501
      %v511 = vmul.f32 %v505, %v508
      %513 = vset.pattern.permute.xlu0 0
      %514 = vperm.xlu0 %513, %v446
      %v515 = vpop.permute.xlu0 %514
      %v517 = vadd.f32 %v510, %v515
      %v518 = vadd.f32 %v511, %v515
      %519 = vrot.lane.b32.xlu0 %v517, 16
      %v520 = vpop.permute.xlu0 %519
      %521 = vrot.lane.b32.xlu0 %v518, 16
      %v522 = vpop.permute.xlu0 %521
      %v523 = vlaneseq
      %v524 = vand.u32 %v523, 127
      %vm525 = vcmp.lt.s32.totalorder %v524, 16
      %v526 = vsel %vm525, %v520, %v522
      %v527 = vsel %vm525, %v522, %v520
      %v528 = vld [vmem:[%s3] sm:$0x1]
      %v529 = vpack.c.bf16 %v527, %v527
      %v530 = vpack.c.bf16 %v526, %v526
      %v531 = vld [vmem:[%s4] sm:$0x3]
      %533 = vset.pattern.permute.xlu0 0
      %534 = vperm.xlu0 %533, %v531
      %v535 = vpop.permute.xlu0 %534
      %vm537 = vcmask 31744
      %v539 = vsel %vm537, %v528, 0
      %vm541 = vcmask 1041408
      %v543 = vsel %vm541, %v529, 0
      %v546 = vsel %vm541, %v530, 0
      %548 = vmatprep.subr.bf16.mxu0 0
      %549 = vmatpush1.bf16.msra.mxu0 0
      %550 = vmatprep.subr.bf16.mxu0 0
      %551 = vmatpush1.bf16.msra.mxu0 0
      %552 = vmatprep.subr.bf16.mxu0 0
      %553 = vmatpush1.bf16.msra.mxu0 0
      %554 = vmatprep.subr.bf16.mxu0 0
      %555 = vmatpush1.bf16.msra.mxu0 0
      %556 = vmatprep.subr.bf16.mxu0 0
      %557 = vmatpush1.bf16.msra.mxu0 0
      %558 = vmatprep.subr.bf16.mxu0 0
      %559 = vmatpush1.bf16.msra.mxu0 0
      %560 = vmatprep.subr.bf16.mxu0 0
      %561 = vmatpush1.bf16.msra.mxu0 0
      %562 = vmatprep.subr.bf16.mxu0 %v546
      %563 = vmatpush1.bf16.msra.mxu0 %v543
      %564 = vmatprep.subr.bf16.mxu0 0
      %565 = vmatpush2.bf16.msra.mxu0 0
      %566 = vmatprep.subr.bf16.mxu0 0
      %567 = vmatpush2.bf16.msra.mxu0 0
      %568 = vmatprep.subr.bf16.mxu0 0
      %569 = vmatpush2.bf16.msra.mxu0 0
      %570 = vmatprep.subr.bf16.mxu0 0
      %571 = vmatpush2.bf16.msra.mxu0 0
      %572 = vmatprep.subr.bf16.mxu0 0
      %573 = vmatpush2.bf16.msra.mxu0 0
      %574 = vmatprep.subr.bf16.mxu0 0
      %575 = vmatpush2.bf16.msra.mxu0 0
      %576 = vmatprep.subr.bf16.mxu0 0
      %577 = vmatpush2.bf16.msra.mxu0 0
      %578 = vmatprep.subr.bf16.mxu0 0
      %579 = vmatpush2.bf16.msra.mxu0 0
      %580 = vmatprep.mubr.bf16.mxu0 0
      %581 = vmatmul.mubr.bf16.gmra.mxu0 %v539
      %v582 = vpop.f32.mrf.mxu0
      %v583 = vadd.f32 %v535, %v582
      %v584 = vpop.f32.mrf.mxu0
      %v585 = vadd.f32 %v535, %v584
      %v586 = vpop.f32.mrf.mxu0
      %v587 = vpop.f32.mrf.mxu0
      %588 = vdwg.mxu0
      %v589 = vmax.f32 %v583, 0.0
      %v590 = vmax.f32 %v585, 0.0
      %v591 = vld [vmem:[%s5] sm:$0x3]
      %v592 = vpack.c.bf16 %v589, %v589
      %v593 = vpack.c.bf16 %v590, %v590
      %v594 = vld [vmem:[%s6] sm:$0xf]
      %596 = vset.pattern.permute.xlu0 0
      %597 = vperm.xlu0 %596, %v594
      %v598 = vpop.permute.xlu0 %597
      %vm600 = vcmask 15360
      %v602 = vsel %vm600, %v591, 0
      %vm604 = vcmask 1040384
      %v606 = vsel %vm604, %v592, 0
      %v609 = vsel %vm604, %v593, 0
      %611 = vmatprep.subr.bf16.mxu0 0
      %612 = vmatpush1.bf16.msra.mxu0 0
      %613 = vmatprep.subr.bf16.mxu0 0
      %614 = vmatpush1.bf16.msra.mxu0 0
      %615 = vmatprep.subr.bf16.mxu0 0
      %616 = vmatpush1.bf16.msra.mxu0 0
      %617 = vmatprep.subr.bf16.mxu0 0
      %618 = vmatpush1.bf16.msra.mxu0 0
      %619 = vmatprep.subr.bf16.mxu0 0
      %620 = vmatpush1.bf16.msra.mxu0 0
      %621 = vmatprep.subr.bf16.mxu0 0
      %622 = vmatpush1.bf16.msra.mxu0 0
      %623 = vmatprep.subr.bf16.mxu0 0
      %624 = vmatpush1.bf16.msra.mxu0 0
      %625 = vmatprep.subr.bf16.mxu0 %v609
      %626 = vmatpush1.bf16.msra.mxu0 %v606
      %627 = vmatprep.subr.bf16.mxu0 0
      %628 = vmatpush2.bf16.msra.mxu0 0
      %629 = vmatprep.subr.bf16.mxu0 0
      %630 = vmatpush2.bf16.msra.mxu0 0
      %631 = vmatprep.subr.bf16.mxu0 0
      %632 = vmatpush2.bf16.msra.mxu0 0
      %633 = vmatprep.subr.bf16.mxu0 0
      %634 = vmatpush2.bf16.msra.mxu0 0
      %635 = vmatprep.subr.bf16.mxu0 0
      %636 = vmatpush2.bf16.msra.mxu0 0
      %637 = vmatprep.subr.bf16.mxu0 0
      %638 = vmatpush2.bf16.msra.mxu0 0
      %639 = vmatprep.subr.bf16.mxu0 0
      %640 = vmatpush2.bf16.msra.mxu0 0
      %641 = vmatprep.subr.bf16.mxu0 0
      %642 = vmatpush2.bf16.msra.mxu0 0
      %643 = vmatprep.mubr.bf16.mxu0 0
      %644 = vmatmul.mubr.bf16.gmra.mxu0 %v602
      %v645 = vpop.f32.mrf.mxu0
      %v646 = vadd.f32 %v598, %v645
      %v647 = vpop.f32.mrf.mxu0
      %v648 = vadd.f32 %v598, %v647
      %v649 = vpop.f32.mrf.mxu0
      %v650 = vpop.f32.mrf.mxu0
      %651 = vdwg.mxu0
      %652 = vrot.lane.b32.xlu0 %v646, 112
      %v653 = vpop.permute.xlu0 %652
      %654 = vrot.lane.b32.xlu0 %v648, 112
      %v655 = vpop.permute.xlu0 %654
      %vm656 = vcmp.lt.s32.totalorder %v524, 112
      %v657 = vsel %vm656, %v653, %v655
      %v658 = vsel %vm656, %v655, %v653
      %v659 = vsel %vm450, %v657, 0.0
      %v660 = vsel %vm450, %v658, 0.0
      %v661 = vadd.f32 %v659, %v660
      %662 = vadd.xlane.f32.xlu0 %v661
      %v663 = vpop.xlane.xlu0 %662
      %v664 = vrcp.pop 256.0
      %v665 = vmul.f32 %v663, %v664
      %v666 = vld [vmem:[%s7] sm:$0xf]
      %v667 = vmul.f32 %v666, %v665
      %vm668 = vcmask 3072
      %v669 = vsel %vm668, %v667, 0.0
      %v670 = vrot.slane %v669, 4
      %v671 = vadd.f32 %v669, %v670
      %v672 = vrot.slane %v671, 2
      %v673 = vadd.f32 %v671, %v672
      %v674 = vrot.slane %v673, 1
      %v675 = vadd.f32 %v673, %v674
      %v676 = vld [vmem:[#allocation2] sm:$0x1]
      %v677 = vadd.f32 %v675, %v676
      %v678 = vmul.f32 %v677, 0.5
      %v679 = vmul.f32 %v677, 0.044715
      %v680 = vmul.f32 %v679, %v677
      %v681 = vmul.f32 %v680, %v677
      %v682 = vadd.f32 %v677, %v681
      %v683 = vmul.f32 %v682, 0.7978846
      %v684 = vtanh.pop %v683
      %v685 = vadd.f32 %v684, 1.0
      %v686 = vmul.f32 %v678, %v685
      %v687 = vld [vmem:[%s9] sm:$0xf]
      %v688 = vlaneseq
      %v689 = vshrl.u32 %v688, 7
      %v690 = vsub.s32 0, %v689
      %v691 = vrot.slane %v686, %v690
      %v692 = vmul.f32 %v687, %v691
      %v693 = vadd.f32 %v692, 0.0
      %v694 = vld [vmem:[%s10] sm:$0xf]
      %v695 = vadd.f32 %v693, %v694
      %s696 = scalar_lea.vmem %s9, 4
      %v697 = vld [vmem:[%s696] sm:$0xf]
      %v698 = vmul.f32 %v697, %v691
      %v699 = vadd.f32 %v698, 0.0
      %s700 = scalar_lea.vmem %s10, 4
      %v701 = vld [vmem:[%s700] sm:$0xf]
      %v702 = vadd.f32 %v699, %v701
      %s703 = scalar_lea.vmem %s9, 8
      %v704 = vld [vmem:[%s703] sm:$0xf]
      %v705 = vmul.f32 %v704, %v691
      %v706 = vadd.f32 %v705, 0.0
      %s707 = scalar_lea.vmem %s10, 8
      %v708 = vld [vmem:[%s707] sm:$0xf]
      %v709 = vadd.f32 %v706, %v708
      %v710 = vmax.f32 %v695, %v702
      %v711 = vmax.f32 %v710, %v709
      %v712 = vsub.f32 %v695, %v711
      %v713 = vmul.f32 %v712, 1.442695
      %v714 = vpow.pop %v713
      %v715 = vsub.f32 %v702, %v711
      %v716 = vmul.f32 %v715, 1.442695
      %v717 = vpow.pop %v716
      %v718 = vsub.f32 %v709, %v711
      %v719 = vmul.f32 %v718, 1.442695
      %v720 = vpow.pop %v719
      %v721 = vadd.f32 %v714, %v717
      %v722 = vadd.f32 %v721, %v720
      %v723 = vrcp.pop %v722
      %v724 = vmul.f32 %v714, %v723
      %726 = vset.pattern.permute.xlu0 0
      %727 = vperm.xlu0 %726, %v724
      %v728 = vpop.permute.xlu0 %727
      %v730 = vmul.f32 %v657, %v728
      %v731 = vmul.f32 %v658, %v728
      %v732 = vld [vmem:[%s11] sm:$0x3]
      %v733 = vpack.c.bf16 %v730, %v730
      %v734 = vpack.c.bf16 %v731, %v731
      %v735 = vld [vmem:[%s12] sm:$0xf]
      %737 = vset.pattern.permute.xlu0 0
      %738 = vperm.xlu0 %737, %v735
      %v739 = vpop.permute.xlu0 %738
      %v742 = vsel %vm537, %v732, 0
      %v745 = vsel %vm541, %v733, 0
      %v748 = vsel %vm541, %v734, 0
      %750 = vmatprep.subr.bf16.mxu0 0
      %751 = vmatpush1.bf16.msra.mxu0 0
      %752 = vmatprep.subr.bf16.mxu0 0
      %753 = vmatpush1.bf16.msra.mxu0 0
      %754 = vmatprep.subr.bf16.mxu0 0
      %755 = vmatpush1.bf16.msra.mxu0 0
      %756 = vmatprep.subr.bf16.mxu0 0
      %757 = vmatpush1.bf16.msra.mxu0 0
      %758 = vmatprep.subr.bf16.mxu0 0
      %759 = vmatpush1.bf16.msra.mxu0 0
      %760 = vmatprep.subr.bf16.mxu0 0
      %761 = vmatpush1.bf16.msra.mxu0 0
      %762 = vmatprep.subr.bf16.mxu0 0
      %763 = vmatpush1.bf16.msra.mxu0 0
      %764 = vmatprep.subr.bf16.mxu0 %v748
      %765 = vmatpush1.bf16.msra.mxu0 %v745
      %766 = vmatprep.subr.bf16.mxu0 0
      %767 = vmatpush2.bf16.msra.mxu0 0
      %768 = vmatprep.subr.bf16.mxu0 0
      %769 = vmatpush2.bf16.msra.mxu0 0
      %770 = vmatprep.subr.bf16.mxu0 0
      %771 = vmatpush2.bf16.msra.mxu0 0
      %772 = vmatprep.subr.bf16.mxu0 0
      %773 = vmatpush2.bf16.msra.mxu0 0
      %774 = vmatprep.subr.bf16.mxu0 0
      %775 = vmatpush2.bf16.msra.mxu0 0
      %776 = vmatprep.subr.bf16.mxu0 0
      %777 = vmatpush2.bf16.msra.mxu0 0
      %778 = vmatprep.subr.bf16.mxu0 0
      %779 = vmatpush2.bf16.msra.mxu0 0
      %780 = vmatprep.subr.bf16.mxu0 0
      %781 = vmatpush2.bf16.msra.mxu0 0
      %782 = vmatprep.mubr.bf16.mxu0 0
      %783 = vmatmul.mubr.bf16.gmra.mxu0 %v742
      %v784 = vpop.f32.mrf.mxu0
      %v785 = vadd.f32 %v739, %v784
      %v786 = vpop.f32.mrf.mxu0
      %v787 = vadd.f32 %v739, %v786
      %v788 = vpop.f32.mrf.mxu0
      %v789 = vpop.f32.mrf.mxu0
      %790 = vdwg.mxu0
      %v793 = vcombine.low %v785, %v787
      %795 = vst [vmem:[%s442] sm:$0xff] %v793
      %p796 = scmp.lt.s32.totalorder %s26, 1
      %s797 = scalar_select %p796, %s26, 1
      %s798 = smul.addr %s797, 2
      %s799 = smul.addr %s798, 4
      %s800 = scalar_lea.vmem %s13, %s799
      // Predicated region
      $region73: #{_lambda_.7} parent=71 // pred_check
        %p801 = pneg %p322
      $region74: #{_lambda_.7} parent=71 // pred_check_branch
        %803 = sbr.rel (%p801) target = $region76
      $region75: #{_lambda_.7} parent=71 // pred_region
        _
      $region76: #{_lambda_.7} parent=71 // pred_fallthru
        _
    $region72: #{_lambda_.7} parent=5 // pred_fallthru
      _
    %p804 = scmp.le.s32.totalorder 2, %s21
    // Predicated region
    $region77: #{_lambda_.7} parent=5 // pred_check
      %p805 = pneg %p804
    $region78: #{_lambda_.7} parent=5 // pred_check_branch
      %807 = sbr.rel (%p805) target = $region80
    $region79: #{_lambda_.7} parent=5 // pred_region
      %s808 = ssub.s32 %s21, 2
      // Predicated region
      $region81: #{_lambda_.7} parent=79 // pred_check
        %p809 = pneg %p328
      $region82: #{_lambda_.7} parent=79 // pred_check_branch
        %811 = sbr.rel (%p809) target = $region84
      $region83: #{_lambda_.7} parent=79 // pred_region
        %p812 = scmp.lt.s32.totalorder %s27, 1
        %s813 = scalar_select %p812, %s27, 1
        %s814 = smul.addr %s813, 2
        %s815 = smul.addr %s814, 4
        %s816 = scalar_lea.vmem %s13, %s815
      $region84: #{_lambda_.7} parent=79 // pred_fallthru
        _
    $region80: #{_lambda_.7} parent=5 // pred_fallthru
      _
  $region6: #{_lambda_.7} parent=0 // loop_footer
    %s25 = sadd.s32 1, %s21
  $region7: #{_lambda_.7} parent=0 // loop_footer_branch
    %20 = sbr.rel target = $region3
  $region8: #{_lambda_.7} parent=0 // loop_exit
    _

// kernel: _lambda_.8
$region0: #{_lambda_.8}
  #allocation0 [shape = 'u32[]', space=smem, size = 0x4, offset = 0x4, fixed_abs, tag = 'smem constant byte address 0x4 - core index']
  #allocation1 [shape = 'u32[144,128]{1,0:T(1,128)}', space=vmem, size = 0x12000, scoped, tag = 'internal scratch']
  %s0 = inlined_call_operand.vmem [shape: f32[2,4,256], index: 0, kind: input, shape index: {}]
  %s1 = inlined_call_operand.vmem [shape: f32[2,4,256], index: 1, kind: input, shape index: {}]
  %s2 = inlined_call_operand.vmem [shape: f32[4,1], index: 2, kind: input, shape index: {}, may-alias: {2,3}]
  %s3 = inlined_call_operand.vmem [shape: f32[4,1], index: 3, kind: input, shape index: {}, may-alias: {2,3}]
  %s4 = inlined_call_operand.vmem [shape: bf16[8,4], index: 4, kind: input, shape index: {}]
  %s5 = inlined_call_operand.vmem [shape: f32[8,1], index: 5, kind: input, shape index: {}]
  %s6 = inlined_call_operand.vmem [shape: f32[2,8,256], index: 6, kind: output, shape index: {}]
  %s7 = sld [smem:[#allocation0]]
  $region57: #{_lambda_.8} parent=0
    _
  %s9 = ssub.s32 1, %s7
  %s10 = scalar_select 0, %s9, %s7
  loop: start=0, step=1, limit=4
  $region2: #{_lambda_.8} parent=0 // loop_pre_header
    _
  $region3: #{_lambda_.8} parent=0 // loop_header
    %s12 = sphi 0, %s16
    %p13 = scmp.ge.s32.totalorder %s12, 4
    %s22 = sphi 0, %s24
    %s25 = sphi 0, %s22
    %s26 = sphi 0, %s25
    %s42 = sphi 0, %s26
    %s48 = sphi 0, %s50
    %s51 = sphi 0, %s48
    %s52 = sphi 0, %s51
    %s68 = sphi 0, %s52
    %s72 = sphi 0, %s72
    %s74 = sphi 0, %s72
    %s75 = sphi 0, %s74
    %s89 = sphi 0, %s75
    %s93 = sphi 0, %s93
    %s95 = sphi 0, %s93
    %s96 = sphi 0, %s95
    %s110 = sphi 0, %s96
    %s114 = sphi 0, %s114
    %s116 = sphi 0, %s114
    %s117 = sphi 0, %s116
    %s131 = sphi 0, %s117
    %s135 = sphi 0, %s135
    %s137 = sphi 0, %s135
    %s138 = sphi 0, %s137
    %s152 = sphi 0, %s138
    %s158 = sphi 0, %s160
    %s161 = sphi 0, %s158
    %s162 = sphi 0, %s161
    %s178 = sphi 0, %s162
  $region4: #{_lambda_.8} parent=0 // loop_header_branch
    %15 = sbr.rel (%p13) target = $region8
  $region5: #{_lambda_.8} parent=0 // loop_body
    %s17 = ssub.s32 %s12, 1
    %s18 = ssub.s32 %s12, 2
    %s19 = sadd.s32 %s12, 1
    %s20 = ssub.s32 %s12, %s19
    %p21 = scmp.eq.s32.totalorder %s20, 0
    %s23 = sadd.s32 %s22, 1
    %s24 = scalar_select %p21, %s22, %s23
    %p27 = pneg %p21
    %p28 = scmp.eq.s32.totalorder %s12, 1
    %p29 = por %p27, %p28
    %p30 = scmp.ne.s32.totalorder %s22, %s25
    %p31 = scmp.eq.s32.totalorder %s12, 0
    %p32 = por %p30, %p31
    %p33 = scmp.ne.s32.totalorder %s22, %s25
    %p34 = scmp.eq.s32.totalorder %s17, 1
    %p35 = por %p33, %p34
    %p36 = scmp.ne.s32.totalorder %s25, %s26
    %p37 = scmp.eq.s32.totalorder %s17, 0
    %p38 = por %p36, %p37
    %p39 = scmp.ne.s32.totalorder %s25, %s26
    %p40 = scmp.eq.s32.totalorder %s18, 1
    %p41 = por %p39, %p40
    %p43 = scmp.ne.s32.totalorder %s26, %s42
    %p44 = scmp.eq.s32.totalorder %s18, 0
    %p45 = por %p43, %p44
    %s46 = ssub.s32 %s12, %s19
    %p47 = scmp.eq.s32.totalorder %s46, 0
    %s49 = sadd.s32 %s48, 1
    %s50 = scalar_select %p47, %s48, %s49
    %p53 = pneg %p47
    %p54 = scmp.eq.s32.totalorder %s12, 1
    %p55 = por %p53, %p54
    %p56 = scmp.ne.s32.totalorder %s48, %s51
    %p57 = scmp.eq.s32.totalorder %s12, 0
    %p58 = por %p56, %p57
    %p59 = scmp.ne.s32.totalorder %s48, %s51
    %p60 = scmp.eq.s32.totalorder %s17, 1
    %p61 = por %p59, %p60
    %p62 = scmp.ne.s32.totalorder %s51, %s52
    %p63 = scmp.eq.s32.totalorder %s17, 0
    %p64 = por %p62, %p63
    %p65 = scmp.ne.s32.totalorder %s51, %s52
    %p66 = scmp.eq.s32.totalorder %s18, 1
    %p67 = por %p65, %p66
    %p69 = scmp.ne.s32.totalorder %s52, %s68
    %p70 = scmp.eq.s32.totalorder %s18, 0
    %p71 = por %p69, %p70
    %s73 = sadd.s32 %s72, 1
    %p76 = scmp.eq.s32.totalorder %s12, 1
    %p77 = scmp.ne.s32.totalorder %s72, %s74
    %p78 = scmp.eq.s32.totalorder %s12, 0
    %p79 = por %p77, %p78
    %p80 = scmp.ne.s32.totalorder %s72, %s74
    %p81 = scmp.eq.s32.totalorder %s17, 1
    %p82 = por %p80, %p81
    %p83 = scmp.ne.s32.totalorder %s74, %s75
    %p84 = scmp.eq.s32.totalorder %s17, 0
    %p85 = por %p83, %p84
    %p86 = scmp.ne.s32.totalorder %s74, %s75
    %p87 = scmp.eq.s32.totalorder %s18, 1
    %p88 = por %p86, %p87
    %p90 = scmp.ne.s32.totalorder %s75, %s89
    %p91 = scmp.eq.s32.totalorder %s18, 0
    %p92 = por %p90, %p91
    %s94 = sadd.s32 %s93, 1
    %p97 = scmp.eq.s32.totalorder %s12, 1
    %p98 = scmp.ne.s32.totalorder %s93, %s95
    %p99 = scmp.eq.s32.totalorder %s12, 0
    %p100 = por %p98, %p99
    %p101 = scmp.ne.s32.totalorder %s93, %s95
    %p102 = scmp.eq.s32.totalorder %s17, 1
    %p103 = por %p101, %p102
    %p104 = scmp.ne.s32.totalorder %s95, %s96
    %p105 = scmp.eq.s32.totalorder %s17, 0
    %p106 = por %p104, %p105
    %p107 = scmp.ne.s32.totalorder %s95, %s96
    %p108 = scmp.eq.s32.totalorder %s18, 1
    %p109 = por %p107, %p108
    %p111 = scmp.ne.s32.totalorder %s96, %s110
    %p112 = scmp.eq.s32.totalorder %s18, 0
    %p113 = por %p111, %p112
    %s115 = sadd.s32 %s114, 1
    %p118 = scmp.eq.s32.totalorder %s12, 1
    %p119 = scmp.ne.s32.totalorder %s114, %s116
    %p120 = scmp.eq.s32.totalorder %s12, 0
    %p121 = por %p119, %p120
    %p122 = scmp.ne.s32.totalorder %s114, %s116
    %p123 = scmp.eq.s32.totalorder %s17, 1
    %p124 = por %p122, %p123
    %p125 = scmp.ne.s32.totalorder %s116, %s117
    %p126 = scmp.eq.s32.totalorder %s17, 0
    %p127 = por %p125, %p126
    %p128 = scmp.ne.s32.totalorder %s116, %s117
    %p129 = scmp.eq.s32.totalorder %s18, 1
    %p130 = por %p128, %p129
    %p132 = scmp.ne.s32.totalorder %s117, %s131
    %p133 = scmp.eq.s32.totalorder %s18, 0
    %p134 = por %p132, %p133
    %s136 = sadd.s32 %s135, 1
    %p139 = scmp.eq.s32.totalorder %s12, 1
    %p140 = scmp.ne.s32.totalorder %s135, %s137
    %p141 = scmp.eq.s32.totalorder %s12, 0
    %p142 = por %p140, %p141
    %p143 = scmp.ne.s32.totalorder %s135, %s137
    %p144 = scmp.eq.s32.totalorder %s17, 1
    %p145 = por %p143, %p144
    %p146 = scmp.ne.s32.totalorder %s137, %s138
    %p147 = scmp.eq.s32.totalorder %s17, 0
    %p148 = por %p146, %p147
    %p149 = scmp.ne.s32.totalorder %s137, %s138
    %p150 = scmp.eq.s32.totalorder %s18, 1
    %p151 = por %p149, %p150
    %p153 = scmp.ne.s32.totalorder %s138, %s152
    %p154 = scmp.eq.s32.totalorder %s18, 0
    %p155 = por %p153, %p154
    %s156 = ssub.s32 %s12, %s19
    %p157 = scmp.eq.s32.totalorder %s156, 0
    %s159 = sadd.s32 %s158, 1
    %s160 = scalar_select %p157, %s158, %s159
    %p163 = pneg %p157
    %p164 = scmp.eq.s32.totalorder %s12, 1
    %p165 = por %p163, %p164
    %p166 = scmp.ne.s32.totalorder %s158, %s161
    %p167 = scmp.eq.s32.totalorder %s12, 0
    %p168 = por %p166, %p167
    %p169 = scmp.ne.s32.totalorder %s158, %s161
    %p170 = scmp.eq.s32.totalorder %s17, 1
    %p171 = por %p169, %p170
    %p172 = scmp.ne.s32.totalorder %s161, %s162
    %p173 = scmp.eq.s32.totalorder %s17, 0
    %p174 = por %p172, %p173
    %p175 = scmp.ne.s32.totalorder %s161, %s162
    %p176 = scmp.eq.s32.totalorder %s18, 1
    %p177 = por %p175, %p176
    %p179 = scmp.ne.s32.totalorder %s162, %s178
    %p180 = scmp.eq.s32.totalorder %s18, 0
    %p181 = por %p179, %p180
    %p182 = scmp.le.s32.totalorder 1, %s12
    %p183 = scmp.lt.s32.totalorder %s12, 3
    %p184 = pnand %p182, %p183
    %p185 = pneg %p184
    // Predicated region
    $region9: #{_lambda_.8} parent=5 // pred_check
      _
    $region10: #{_lambda_.8} parent=5 // pred_check_branch
      %187 = sbr.rel (%p184) target = $region12
    $region11: #{_lambda_.8} parent=5 // pred_region
      %s188 = ssub.s32 %s12, 1
      // Predicated region
      $region13: #{_lambda_.8} parent=11 // pred_check
        %p189 = pneg %p85
      $region14: #{_lambda_.8} parent=11 // pred_check_branch
        %191 = sbr.rel (%p189) target = $region16
      $region15: #{_lambda_.8} parent=11 // pred_region
        _
      $region16: #{_lambda_.8} parent=11 // pred_fallthru
        _
      // Predicated region
      $region17: #{_lambda_.8} parent=11 // pred_check
        %p192 = pneg %p106
      $region18: #{_lambda_.8} parent=11 // pred_check_branch
        %194 = sbr.rel (%p192) target = $region20
      $region19: #{_lambda_.8} parent=11 // pred_region
        _
      $region20: #{_lambda_.8} parent=11 // pred_fallthru
        _
      // Predicated region
      $region21: #{_lambda_.8} parent=11 // pred_check
        %p195 = pneg %p127
      $region22: #{_lambda_.8} parent=11 // pred_check_branch
        %197 = sbr.rel (%p195) target = $region24
      $region23: #{_lambda_.8} parent=11 // pred_region
        _
      $region24: #{_lambda_.8} parent=11 // pred_fallthru
        _
      // Predicated region
      $region25: #{_lambda_.8} parent=11 // pred_check
        %p198 = pneg %p148
      $region26: #{_lambda_.8} parent=11 // pred_check_branch
        %200 = sbr.rel (%p198) target = $region28
      $region27: #{_lambda_.8} parent=11 // pred_region
        _
      $region28: #{_lambda_.8} parent=11 // pred_fallthru
        _
    $region12: #{_lambda_.8} parent=5 // pred_fallthru
      _
    %p201 = scmp.lt.s32.totalorder %s12, 2
    // Predicated region
    $region29: #{_lambda_.8} parent=5 // pred_check
      %p202 = pneg %p201
    $region30: #{_lambda_.8} parent=5 // pred_check_branch
      %204 = sbr.rel (%p202) target = $region32
    $region31: #{_lambda_.8} parent=5 // pred_region
      // Predicated region
      $region33: #{_lambda_.8} parent=31 // pred_check
        %p205 = pneg %p32
      $region34: #{_lambda_.8} parent=31 // pred_check_branch
        %207 = sbr.rel (%p205) target = $region36
      $region35: #{_lambda_.8} parent=31 // pred_region
        %p208 = scmp.lt.s32.totalorder %s12, 1
        %s209 = scalar_select %p208, %s12, 1
        %s210 = smul.addr %s209, 2
        %s211 = smul.addr %s210, 4
        %s212 = scalar_lea.vmem %s0, %s211
      $region36: #{_lambda_.8} parent=31 // pred_fallthru
        _
      // Predicated region
      $region37: #{_lambda_.8} parent=31 // pred_check
        %p213 = pneg %p58
      $region38: #{_lambda_.8} parent=31 // pred_check_branch
        %215 = sbr.rel (%p213) target = $region40
      $region39: #{_lambda_.8} parent=31 // pred_region
        %p216 = scmp.lt.s32.totalorder %s12, 1
        %s217 = scalar_select %p216, %s12, 1
        %s218 = smul.addr %s217, 2
        %s219 = smul.addr %s218, 4
        %s220 = scalar_lea.vmem %s1, %s219
      $region40: #{_lambda_.8} parent=31 // pred_fallthru
        _
    $region32: #{_lambda_.8} parent=5 // pred_fallthru
      _
    %p221 = scmp.le.s32.totalorder 1, %s12
    %p222 = scmp.lt.s32.totalorder %s12, 3
    %p223 = pnand %p221, %p222
    %p224 = pneg %p223
    // Predicated region
    $region41: #{_lambda_.8} parent=5 // pred_check
      _
    $region42: #{_lambda_.8} parent=5 // pred_check_branch
      %226 = sbr.rel (%p223) target = $region44
    $region43: #{_lambda_.8} parent=5 // pred_region
      %s227 = ssub.s32 %s12, 1
      %p228 = scmp.lt.s32.totalorder %s17, 1
      %s229 = scalar_select %p228, %s17, 1
      %s230 = smul.addr %s229, 2
      %s231 = smul.addr %s230, 4
      %s232 = scalar_lea.vmem %s0, %s231
      %p233 = pneg %p38
      %p234 = pneg %p35
      %p235 = scmp.lt.s32.totalorder %s17, 1
      %s236 = scalar_select %p235, %s17, 1
      %s237 = smul.addr %s236, 2
      %s238 = smul.addr %s237, 4
      %s239 = scalar_lea.vmem %s1, %s238
      %p240 = pneg %p64
      %p241 = pneg %p61
      %p242 = pneg %p85
      %p243 = pneg %p82
      %p244 = pneg %p106
      %p245 = pneg %p103
      %p246 = pneg %p127
      %p247 = pneg %p124
      %p248 = pneg %p148
      %p249 = pneg %p145
      %p250 = pneg %p174
      %p251 = pneg %p171
      %p252 = scmp.lt.s32.totalorder %s17, 1
      %s253 = scalar_select %p252, %s17, 1
      %s254 = smul.addr %s253, 2
      %s255 = smul.addr %s254, 8
      %s256 = scalar_lea.vmem %s6, %s255
      %p257 = scmp.lt.s32.totalorder %s17, 1
      %s258 = scalar_select %p257, %s17, 1
      %s259 = smul.addr %s258, 2
      %s260 = smul.addr %s259, 4
      %s261 = scalar_lea.vmem %s0, %s260
      %p262 = scmp.lt.s32.totalorder %s17, 1
      %s263 = scalar_select %p262, %s17, 1
      %s264 = smul.addr %s263, 2
      %s265 = smul.addr %s264, 4
      %s266 = scalar_lea.vmem %s1, %s265
      %p267 = scmp.lt.s32.totalorder %s17, 1
      %s268 = scalar_select %p267, %s17, 1
      %s269 = smul.addr %s268, 2
      %s270 = smul.addr %s269, 8
      %s271 = scalar_lea.vmem %s6, %s270
      %v273 = vld [vmem:[%s261] sm:$0xff]
      %v274 = vld [vmem:[%s2] sm:$0xf]
      %276 = vset.pattern.permute.xlu0 0
      %277 = vperm.xlu0 %276, %v274
      %v278 = vpop.permute.xlu0 %277
      %v280 = vunpack.c.l.s4 839922192
      %v281 = vunpack.c.0.s8 %v280
      %v282 = vlaneseq
      %v283 = vshrl.u32 %v282, 7
      %v284 = vsub.s32 %v281, %v283
      %v285 = vrot.slane %v278, %v284
      %v287 = vmul.f32 %v273, %v285
      %v288 = vld [vmem:[%s266] sm:$0xff]
      %v289 = vld [vmem:[%s3] sm:$0xf]
      %291 = vset.pattern.permute.xlu0 0
      %292 = vperm.xlu0 %291, %v289
      %v293 = vpop.permute.xlu0 %292
      %v295 = vunpack.c.l.s4 839922192
      %v296 = vunpack.c.0.s8 %v295
      %v297 = vlaneseq
      %v298 = vshrl.u32 %v297, 7
      %v299 = vsub.s32 %v296, %v298
      %v300 = vrot.slane %v293, %v299
      %v302 = vmul.f32 %v288, %v300
      %v303 = vadd.f32 %v287, %v302
      %v304 = vld [vmem:[%s4] sm:$0xf]
      %v306 = vcombine.high %v303, %v303
      %v308 = vpack.c.bf16 %v303, %v303
      %v309 = vpack.c.bf16 %v306, %v306
      %v310 = vld [vmem:[%s5] sm:$0xff]
      %312 = vset.pattern.permute.xlu0 0
      %313 = vperm.xlu0 %312, %v310
      %v314 = vpop.permute.xlu0 %313
      %vm316 = vcmask 31744
      %v318 = vsel %vm316, %v304, 0
      %vm320 = vcmask 1041408
      %v322 = vsel %vm320, %v308, 0
      %v325 = vsel %vm320, %v309, 0
      %327 = vmatprep.subr.bf16.mxu0 0
      %328 = vmatpush1.bf16.msra.mxu0 0
      %329 = vmatprep.subr.bf16.mxu0 0
      %330 = vmatpush1.bf16.msra.mxu0 0
      %331 = vmatprep.subr.bf16.mxu0 0
      %332 = vmatpush1.bf16.msra.mxu0 0
      %333 = vmatprep.subr.bf16.mxu0 0
      %334 = vmatpush1.bf16.msra.mxu0 0
      %335 = vmatprep.subr.bf16.mxu0 0
      %336 = vmatpush1.bf16.msra.mxu0 0
      %337 = vmatprep.subr.bf16.mxu0 0
      %338 = vmatpush1.bf16.msra.mxu0 0
      %339 = vmatprep.subr.bf16.mxu0 0
      %340 = vmatpush1.bf16.msra.mxu0 0
      %341 = vmatprep.subr.bf16.mxu0 %v325
      %342 = vmatpush1.bf16.msra.mxu0 %v322
      %343 = vmatprep.subr.bf16.mxu0 0
      %344 = vmatpush2.bf16.msra.mxu0 0
      %345 = vmatprep.subr.bf16.mxu0 0
      %346 = vmatpush2.bf16.msra.mxu0 0
      %347 = vmatprep.subr.bf16.mxu0 0
      %348 = vmatpush2.bf16.msra.mxu0 0
      %349 = vmatprep.subr.bf16.mxu0 0
      %350 = vmatpush2.bf16.msra.mxu0 0
      %351 = vmatprep.subr.bf16.mxu0 0
      %352 = vmatpush2.bf16.msra.mxu0 0
      %353 = vmatprep.subr.bf16.mxu0 0
      %354 = vmatpush2.bf16.msra.mxu0 0
      %355 = vmatprep.subr.bf16.mxu0 0
      %356 = vmatpush2.bf16.msra.mxu0 0
      %357 = vmatprep.subr.bf16.mxu0 0
      %358 = vmatpush2.bf16.msra.mxu0 0
      %359 = vmatprep.mubr.bf16.mxu0 0
      %360 = vmatmul.mubr.bf16.gmra.mxu0 %v318
      %v361 = vpop.f32.mrf.mxu0
      %v362 = vadd.f32 %v314, %v361
      %v363 = vpop.f32.mrf.mxu0
      %v364 = vadd.f32 %v314, %v363
      %v365 = vpop.f32.mrf.mxu0
      %v366 = vpop.f32.mrf.mxu0
      %367 = vdwg.mxu0
      %368 = vst [vmem:[%s271] sm:$0xff] %v362
      %369 = vst [vmem:[%s271 + $0x8] sm:$0xff] %v364
      %p370 = scmp.lt.s32.totalorder %s17, 1
      %s371 = scalar_select %p370, %s17, 1
      %s372 = smul.addr %s371, 2
      %s373 = smul.addr %s372, 8
      %s374 = scalar_lea.vmem %s6, %s373
      // Predicated region
      $region45: #{_lambda_.8} parent=43 // pred_check
        %p375 = pneg %p171
      $region46: #{_lambda_.8} parent=43 // pred_check_branch
        %377 = sbr.rel (%p375) target = $region48
      $region47: #{_lambda_.8} parent=43 // pred_region
        _
      $region48: #{_lambda_.8} parent=43 // pred_fallthru
        _
    $region44: #{_lambda_.8} parent=5 // pred_fallthru
      _
    %p378 = scmp.le.s32.totalorder 2, %s12
    // Predicated region
    $region49: #{_lambda_.8} parent=5 // pred_check
      %p379 = pneg %p378
    $region50: #{_lambda_.8} parent=5 // pred_check_branch
      %381 = sbr.rel (%p379) target = $region52
    $region51: #{_lambda_.8} parent=5 // pred_region
      %s382 = ssub.s32 %s12, 2
      // Predicated region
      $region53: #{_lambda_.8} parent=51 // pred_check
        %p383 = pneg %p177
      $region54: #{_lambda_.8} parent=51 // pred_check_branch
        %385 = sbr.rel (%p383) target = $region56
      $region55: #{_lambda_.8} parent=51 // pred_region
        %p386 = scmp.lt.s32.totalorder %s18, 1
        %s387 = scalar_select %p386, %s18, 1
        %s388 = smul.addr %s387, 2
        %s389 = smul.addr %s388, 8
        %s390 = scalar_lea.vmem %s6, %s389
      $region56: #{_lambda_.8} parent=51 // pred_fallthru
        _
    $region52: #{_lambda_.8} parent=5 // pred_fallthru
      _
  $region6: #{_lambda_.8} parent=0 // loop_footer
    %s16 = sadd.s32 1, %s12
  $region7: #{_lambda_.8} parent=0 // loop_footer_branch
    %11 = sbr.rel target = $region3
  $region8: #{_lambda_.8} parent=0 // loop_exit
    _

// kernel: _lambda_.6
$region0: #{_lambda_.6}
  #allocation0 [shape = 'u32[]', space=smem, size = 0x4, offset = 0x4, fixed_abs, tag = 'smem constant byte address 0x4 - core index']
  #allocation1 [shape = 'u32[144,128]{1,0:T(1,128)}', space=vmem, size = 0x12000, scoped, tag = 'internal scratch']
  #allocation2 [shape = 'f32[1,1]{1,0:T(1,128)S(1)}', space=vmem, size = 0x200, scoped, tag = 'scoped memory for _lambda_.6']
  %s0 = inlined_call_operand.vmem [shape: f32[2,4,256], index: 0, kind: input, shape index: {}]
  %s1 = inlined_call_operand.vmem [shape: f32[4,1], index: 1, kind: input, shape index: {}]
  %s2 = inlined_call_operand.vmem [shape: f32[4,1], index: 2, kind: input, shape index: {}]
  %s3 = inlined_call_operand.vmem [shape: bf16[2,4], index: 3, kind: input, shape index: {}]
  %s4 = inlined_call_operand.vmem [shape: f32[2,1], index: 4, kind: input, shape index: {}]
  %s5 = inlined_call_operand.vmem [shape: bf16[4,2], index: 5, kind: input, shape index: {}]
  %s6 = inlined_call_operand.vmem [shape: f32[4,1], index: 6, kind: input, shape index: {}]
  %s7 = inlined_call_operand.vmem [shape: f32[4,1], index: 7, kind: input, shape index: {}]
  %s8 = inlined_call_operand.<no memory space> [shape: f32[1,1], index: 8, kind: input, shape index: {}]
  %s9 = inlined_call_operand.vmem [shape: f32[3,4,1], index: 9, kind: input, shape index: {}]
  %s10 = inlined_call_operand.vmem [shape: f32[3,4,1], index: 10, kind: input, shape index: {}]
  %s11 = inlined_call_operand.vmem [shape: bf16[4,4], index: 11, kind: input, shape index: {}]
  %s12 = inlined_call_operand.vmem [shape: f32[4,1], index: 12, kind: input, shape index: {}]
  %s13 = inlined_call_operand.vmem [shape: f32[2,4,256], index: 13, kind: output, shape index: {}]
  %s14 = sld [smem:[#allocation0]]
  $region85: #{_lambda_.6} parent=0
    _
  %s16 = ssub.s32 1, %s14
  %s17 = scalar_select 0, %s16, %s14
  %v18 = vstv %s8
  %19 = vst [vmem:[#allocation2] sm:$0x1] %v18
  loop: start=0, step=1, limit=4
  $region2: #{_lambda_.6} parent=0 // loop_pre_header
    _
  $region3: #{_lambda_.6} parent=0 // loop_header
    %s21 = sphi 0, %s25
    %p22 = scmp.ge.s32.totalorder %s21, 4
    %s31 = sphi 0, %s33
    %s34 = sphi 0, %s31
    %s35 = sphi 0, %s34
    %s51 = sphi 0, %s35
    %s55 = sphi 0, %s55
    %s57 = sphi 0, %s55
    %s58 = sphi 0, %s57
    %s72 = sphi 0, %s58
    %s76 = sphi 0, %s76
    %s78 = sphi 0, %s76
    %s79 = sphi 0, %s78
    %s93 = sphi 0, %s79
    %s97 = sphi 0, %s97
    %s99 = sphi 0, %s97
    %s100 = sphi 0, %s99
    %s114 = sphi 0, %s100
    %s118 = sphi 0, %s118
    %s120 = sphi 0, %s118
    %s121 = sphi 0, %s120
    %s135 = sphi 0, %s121
    %s139 = sphi 0, %s139
    %s141 = sphi 0, %s139
    %s142 = sphi 0, %s141
    %s156 = sphi 0, %s142
    %s160 = sphi 0, %s160
    %s162 = sphi 0, %s160
    %s163 = sphi 0, %s162
    %s177 = sphi 0, %s163
    %s181 = sphi 0, %s181
    %s183 = sphi 0, %s181
    %s184 = sphi 0, %s183
    %s198 = sphi 0, %s184
    %s202 = sphi 0, %s202
    %s204 = sphi 0, %s202
    %s205 = sphi 0, %s204
    %s219 = sphi 0, %s205
    %s223 = sphi 0, %s223
    %s225 = sphi 0, %s223
    %s226 = sphi 0, %s225
    %s240 = sphi 0, %s226
    %s244 = sphi 0, %s244
    %s246 = sphi 0, %s244
    %s247 = sphi 0, %s246
    %s261 = sphi 0, %s247
    %s265 = sphi 0, %s265
    %s267 = sphi 0, %s265
    %s268 = sphi 0, %s267
    %s282 = sphi 0, %s268
    %s286 = sphi 0, %s286
    %s288 = sphi 0, %s286
    %s289 = sphi 0, %s288
    %s303 = sphi 0, %s289
    %s309 = sphi 0, %s311
    %s312 = sphi 0, %s309
    %s313 = sphi 0, %s312
    %s329 = sphi 0, %s313
  $region4: #{_lambda_.6} parent=0 // loop_header_branch
    %24 = sbr.rel (%p22) target = $region8
  $region5: #{_lambda_.6} parent=0 // loop_body
    %s26 = ssub.s32 %s21, 1
    %s27 = ssub.s32 %s21, 2
    %s28 = sadd.s32 %s21, 1
    %s29 = ssub.s32 %s21, %s28
    %p30 = scmp.eq.s32.totalorder %s29, 0
    %s32 = sadd.s32 %s31, 1
    %s33 = scalar_select %p30, %s31, %s32
    %p36 = pneg %p30
    %p37 = scmp.eq.s32.totalorder %s21, 1
    %p38 = por %p36, %p37
    %p39 = scmp.ne.s32.totalorder %s31, %s34
    %p40 = scmp.eq.s32.totalorder %s21, 0
    %p41 = por %p39, %p40
    %p42 = scmp.ne.s32.totalorder %s31, %s34
    %p43 = scmp.eq.s32.totalorder %s26, 1
    %p44 = por %p42, %p43
    %p45 = scmp.ne.s32.totalorder %s34, %s35
    %p46 = scmp.eq.s32.totalorder %s26, 0
    %p47 = por %p45, %p46
    %p48 = scmp.ne.s32.totalorder %s34, %s35
    %p49 = scmp.eq.s32.totalorder %s27, 1
    %p50 = por %p48, %p49
    %p52 = scmp.ne.s32.totalorder %s35, %s51
    %p53 = scmp.eq.s32.totalorder %s27, 0
    %p54 = por %p52, %p53
    %s56 = sadd.s32 %s55, 1
    %p59 = scmp.eq.s32.totalorder %s21, 1
    %p60 = scmp.ne.s32.totalorder %s55, %s57
    %p61 = scmp.eq.s32.totalorder %s21, 0
    %p62 = por %p60, %p61
    %p63 = scmp.ne.s32.totalorder %s55, %s57
    %p64 = scmp.eq.s32.totalorder %s26, 1
    %p65 = por %p63, %p64
    %p66 = scmp.ne.s32.totalorder %s57, %s58
    %p67 = scmp.eq.s32.totalorder %s26, 0
    %p68 = por %p66, %p67
    %p69 = scmp.ne.s32.totalorder %s57, %s58
    %p70 = scmp.eq.s32.totalorder %s27, 1
    %p71 = por %p69, %p70
    %p73 = scmp.ne.s32.totalorder %s58, %s72
    %p74 = scmp.eq.s32.totalorder %s27, 0
    %p75 = por %p73, %p74
    %s77 = sadd.s32 %s76, 1
    %p80 = scmp.eq.s32.totalorder %s21, 1
    %p81 = scmp.ne.s32.totalorder %s76, %s78
    %p82 = scmp.eq.s32.totalorder %s21, 0
    %p83 = por %p81, %p82
    %p84 = scmp.ne.s32.totalorder %s76, %s78
    %p85 = scmp.eq.s32.totalorder %s26, 1
    %p86 = por %p84, %p85
    %p87 = scmp.ne.s32.totalorder %s78, %s79
    %p88 = scmp.eq.s32.totalorder %s26, 0
    %p89 = por %p87, %p88
    %p90 = scmp.ne.s32.totalorder %s78, %s79
    %p91 = scmp.eq.s32.totalorder %s27, 1
    %p92 = por %p90, %p91
    %p94 = scmp.ne.s32.totalorder %s79, %s93
    %p95 = scmp.eq.s32.totalorder %s27, 0
    %p96 = por %p94, %p95
    %s98 = sadd.s32 %s97, 1
    %p101 = scmp.eq.s32.totalorder %s21, 1
    %p102 = scmp.ne.s32.totalorder %s97, %s99
    %p103 = scmp.eq.s32.totalorder %s21, 0
    %p104 = por %p102, %p103
    %p105 = scmp.ne.s32.totalorder %s97, %s99
    %p106 = scmp.eq.s32.totalorder %s26, 1
    %p107 = por %p105, %p106
    %p108 = scmp.ne.s32.totalorder %s99, %s100
    %p109 = scmp.eq.s32.totalorder %s26, 0
    %p110 = por %p108, %p109
    %p111 = scmp.ne.s32.totalorder %s99, %s100
    %p112 = scmp.eq.s32.totalorder %s27, 1
    %p113 = por %p111, %p112
    %p115 = scmp.ne.s32.totalorder %s100, %s114
    %p116 = scmp.eq.s32.totalorder %s27, 0
    %p117 = por %p115, %p116
    %s119 = sadd.s32 %s118, 1
    %p122 = scmp.eq.s32.totalorder %s21, 1
    %p123 = scmp.ne.s32.totalorder %s118, %s120
    %p124 = scmp.eq.s32.totalorder %s21, 0
    %p125 = por %p123, %p124
    %p126 = scmp.ne.s32.totalorder %s118, %s120
    %p127 = scmp.eq.s32.totalorder %s26, 1
    %p128 = por %p126, %p127
    %p129 = scmp.ne.s32.totalorder %s120, %s121
    %p130 = scmp.eq.s32.totalorder %s26, 0
    %p131 = por %p129, %p130
    %p132 = scmp.ne.s32.totalorder %s120, %s121
    %p133 = scmp.eq.s32.totalorder %s27, 1
    %p134 = por %p132, %p133
    %p136 = scmp.ne.s32.totalorder %s121, %s135
    %p137 = scmp.eq.s32.totalorder %s27, 0
    %p138 = por %p136, %p137
    %s140 = sadd.s32 %s139, 1
    %p143 = scmp.eq.s32.totalorder %s21, 1
    %p144 = scmp.ne.s32.totalorder %s139, %s141
    %p145 = scmp.eq.s32.totalorder %s21, 0
    %p146 = por %p144, %p145
    %p147 = scmp.ne.s32.totalorder %s139, %s141
    %p148 = scmp.eq.s32.totalorder %s26, 1
    %p149 = por %p147, %p148
    %p150 = scmp.ne.s32.totalorder %s141, %s142
    %p151 = scmp.eq.s32.totalorder %s26, 0
    %p152 = por %p150, %p151
    %p153 = scmp.ne.s32.totalorder %s141, %s142
    %p154 = scmp.eq.s32.totalorder %s27, 1
    %p155 = por %p153, %p154
    %p157 = scmp.ne.s32.totalorder %s142, %s156
    %p158 = scmp.eq.s32.totalorder %s27, 0
    %p159 = por %p157, %p158
    %s161 = sadd.s32 %s160, 1
    %p164 = scmp.eq.s32.totalorder %s21, 1
    %p165 = scmp.ne.s32.totalorder %s160, %s162
    %p166 = scmp.eq.s32.totalorder %s21, 0
    %p167 = por %p165, %p166
    %p168 = scmp.ne.s32.totalorder %s160, %s162
    %p169 = scmp.eq.s32.totalorder %s26, 1
    %p170 = por %p168, %p169
    %p171 = scmp.ne.s32.totalorder %s162, %s163
    %p172 = scmp.eq.s32.totalorder %s26, 0
    %p173 = por %p171, %p172
    %p174 = scmp.ne.s32.totalorder %s162, %s163
    %p175 = scmp.eq.s32.totalorder %s27, 1
    %p176 = por %p174, %p175
    %p178 = scmp.ne.s32.totalorder %s163, %s177
    %p179 = scmp.eq.s32.totalorder %s27, 0
    %p180 = por %p178, %p179
    %s182 = sadd.s32 %s181, 1
    %p185 = scmp.eq.s32.totalorder %s21, 1
    %p186 = scmp.ne.s32.totalorder %s181, %s183
    %p187 = scmp.eq.s32.totalorder %s21, 0
    %p188 = por %p186, %p187
    %p189 = scmp.ne.s32.totalorder %s181, %s183
    %p190 = scmp.eq.s32.totalorder %s26, 1
    %p191 = por %p189, %p190
    %p192 = scmp.ne.s32.totalorder %s183, %s184
    %p193 = scmp.eq.s32.totalorder %s26, 0
    %p194 = por %p192, %p193
    %p195 = scmp.ne.s32.totalorder %s183, %s184
    %p196 = scmp.eq.s32.totalorder %s27, 1
    %p197 = por %p195, %p196
    %p199 = scmp.ne.s32.totalorder %s184, %s198
    %p200 = scmp.eq.s32.totalorder %s27, 0
    %p201 = por %p199, %p200
    %s203 = sadd.s32 %s202, 1
    %p206 = scmp.eq.s32.totalorder %s21, 1
    %p207 = scmp.ne.s32.totalorder %s202, %s204
    %p208 = scmp.eq.s32.totalorder %s21, 0
    %p209 = por %p207, %p208
    %p210 = scmp.ne.s32.totalorder %s202, %s204
    %p211 = scmp.eq.s32.totalorder %s26, 1
    %p212 = por %p210, %p211
    %p213 = scmp.ne.s32.totalorder %s204, %s205
    %p214 = scmp.eq.s32.totalorder %s26, 0
    %p215 = por %p213, %p214
    %p216 = scmp.ne.s32.totalorder %s204, %s205
    %p217 = scmp.eq.s32.totalorder %s27, 1
    %p218 = por %p216, %p217
    %p220 = scmp.ne.s32.totalorder %s205, %s219
    %p221 = scmp.eq.s32.totalorder %s27, 0
    %p222 = por %p220, %p221
    %s224 = sadd.s32 %s223, 1
    %p227 = scmp.eq.s32.totalorder %s21, 1
    %p228 = scmp.ne.s32.totalorder %s223, %s225
    %p229 = scmp.eq.s32.totalorder %s21, 0
    %p230 = por %p228, %p229
    %p231 = scmp.ne.s32.totalorder %s223, %s225
    %p232 = scmp.eq.s32.totalorder %s26, 1
    %p233 = por %p231, %p232
    %p234 = scmp.ne.s32.totalorder %s225, %s226
    %p235 = scmp.eq.s32.totalorder %s26, 0
    %p236 = por %p234, %p235
    %p237 = scmp.ne.s32.totalorder %s225, %s226
    %p238 = scmp.eq.s32.totalorder %s27, 1
    %p239 = por %p237, %p238
    %p241 = scmp.ne.s32.totalorder %s226, %s240
    %p242 = scmp.eq.s32.totalorder %s27, 0
    %p243 = por %p241, %p242
    %s245 = sadd.s32 %s244, 1
    %p248 = scmp.eq.s32.totalorder %s21, 1
    %p249 = scmp.ne.s32.totalorder %s244, %s246
    %p250 = scmp.eq.s32.totalorder %s21, 0
    %p251 = por %p249, %p250
    %p252 = scmp.ne.s32.totalorder %s244, %s246
    %p253 = scmp.eq.s32.totalorder %s26, 1
    %p254 = por %p252, %p253
    %p255 = scmp.ne.s32.totalorder %s246, %s247
    %p256 = scmp.eq.s32.totalorder %s26, 0
    %p257 = por %p255, %p256
    %p258 = scmp.ne.s32.totalorder %s246, %s247
    %p259 = scmp.eq.s32.totalorder %s27, 1
    %p260 = por %p258, %p259
    %p262 = scmp.ne.s32.totalorder %s247, %s261
    %p263 = scmp.eq.s32.totalorder %s27, 0
    %p264 = por %p262, %p263
    %s266 = sadd.s32 %s265, 1
    %p269 = scmp.eq.s32.totalorder %s21, 1
    %p270 = scmp.ne.s32.totalorder %s265, %s267
    %p271 = scmp.eq.s32.totalorder %s21, 0
    %p272 = por %p270, %p271
    %p273 = scmp.ne.s32.totalorder %s265, %s267
    %p274 = scmp.eq.s32.totalorder %s26, 1
    %p275 = por %p273, %p274
    %p276 = scmp.ne.s32.totalorder %s267, %s268
    %p277 = scmp.eq.s32.totalorder %s26, 0
    %p278 = por %p276, %p277
    %p279 = scmp.ne.s32.totalorder %s267, %s268
    %p280 = scmp.eq.s32.totalorder %s27, 1
    %p281 = por %p279, %p280
    %p283 = scmp.ne.s32.totalorder %s268, %s282
    %p284 = scmp.eq.s32.totalorder %s27, 0
    %p285 = por %p283, %p284
    %s287 = sadd.s32 %s286, 1
    %p290 = scmp.eq.s32.totalorder %s21, 1
    %p291 = scmp.ne.s32.totalorder %s286, %s288
    %p292 = scmp.eq.s32.totalorder %s21, 0
    %p293 = por %p291, %p292
    %p294 = scmp.ne.s32.totalorder %s286, %s288
    %p295 = scmp.eq.s32.totalorder %s26, 1
    %p296 = por %p294, %p295
    %p297 = scmp.ne.s32.totalorder %s288, %s289
    %p298 = scmp.eq.s32.totalorder %s26, 0
    %p299 = por %p297, %p298
    %p300 = scmp.ne.s32.totalorder %s288, %s289
    %p301 = scmp.eq.s32.totalorder %s27, 1
    %p302 = por %p300, %p301
    %p304 = scmp.ne.s32.totalorder %s289, %s303
    %p305 = scmp.eq.s32.totalorder %s27, 0
    %p306 = por %p304, %p305
    %s307 = ssub.s32 %s21, %s28
    %p308 = scmp.eq.s32.totalorder %s307, 0
    %s310 = sadd.s32 %s309, 1
    %s311 = scalar_select %p308, %s309, %s310
    %p314 = pneg %p308
    %p315 = scmp.eq.s32.totalorder %s21, 1
    %p316 = por %p314, %p315
    %p317 = scmp.ne.s32.totalorder %s309, %s312
    %p318 = scmp.eq.s32.totalorder %s21, 0
    %p319 = por %p317, %p318
    %p320 = scmp.ne.s32.totalorder %s309, %s312
    %p321 = scmp.eq.s32.totalorder %s26, 1
    %p322 = por %p320, %p321
    %p323 = scmp.ne.s32.totalorder %s312, %s313
    %p324 = scmp.eq.s32.totalorder %s26, 0
    %p325 = por %p323, %p324
    %p326 = scmp.ne.s32.totalorder %s312, %s313
    %p327 = scmp.eq.s32.totalorder %s27, 1
    %p328 = por %p326, %p327
    %p330 = scmp.ne.s32.totalorder %s313, %s329
    %p331 = scmp.eq.s32.totalorder %s27, 0
    %p332 = por %p330, %p331
    %p333 = scmp.le.s32.totalorder 1, %s21
    %p334 = scmp.lt.s32.totalorder %s21, 3
    %p335 = pnand %p333, %p334
    %p336 = pneg %p335
    // Predicated region
    $region9: #{_lambda_.6} parent=5 // pred_check
      _
    $region10: #{_lambda_.6} parent=5 // pred_check_branch
      %338 = sbr.rel (%p335) target = $region12
    $region11: #{_lambda_.6} parent=5 // pred_region
      %s339 = ssub.s32 %s21, 1
      // Predicated region
      $region13: #{_lambda_.6} parent=11 // pred_check
        %p340 = pneg %p68
      $region14: #{_lambda_.6} parent=11 // pred_check_branch
        %342 = sbr.rel (%p340) target = $region16
      $region15: #{_lambda_.6} parent=11 // pred_region
        _
      $region16: #{_lambda_.6} parent=11 // pred_fallthru
        _
      // Predicated region
      $region17: #{_lambda_.6} parent=11 // pred_check
        %p343 = pneg %p89
      $region18: #{_lambda_.6} parent=11 // pred_check_branch
        %345 = sbr.rel (%p343) target = $region20
      $region19: #{_lambda_.6} parent=11 // pred_region
        _
      $region20: #{_lambda_.6} parent=11 // pred_fallthru
        _
      // Predicated region
      $region21: #{_lambda_.6} parent=11 // pred_check
        %p346 = pneg %p110
      $region22: #{_lambda_.6} parent=11 // pred_check_branch
        %348 = sbr.rel (%p346) target = $region24
      $region23: #{_lambda_.6} parent=11 // pred_region
        _
      $region24: #{_lambda_.6} parent=11 // pred_fallthru
        _
      // Predicated region
      $region25: #{_lambda_.6} parent=11 // pred_check
        %p349 = pneg %p131
      $region26: #{_lambda_.6} parent=11 // pred_check_branch
        %351 = sbr.rel (%p349) target = $region28
      $region27: #{_lambda_.6} parent=11 // pred_region
        _
      $region28: #{_lambda_.6} parent=11 // pred_fallthru
        _
      // Predicated region
      $region29: #{_lambda_.6} parent=11 // pred_check
        %p352 = pneg %p152
      $region30: #{_lambda_.6} parent=11 // pred_check_branch
        %354 = sbr.rel (%p352) target = $region32
      $region31: #{_lambda_.6} parent=11 // pred_region
        _
      $region32: #{_lambda_.6} parent=11 // pred_fallthru
        _
      // Predicated region
      $region33: #{_lambda_.6} parent=11 // pred_check
        %p355 = pneg %p173
      $region34: #{_lambda_.6} parent=11 // pred_check_branch
        %357 = sbr.rel (%p355) target = $region36
      $region35: #{_lambda_.6} parent=11 // pred_region
        _
      $region36: #{_lambda_.6} parent=11 // pred_fallthru
        _
      // Predicated region
      $region37: #{_lambda_.6} parent=11 // pred_check
        %p358 = pneg %p194
      $region38: #{_lambda_.6} parent=11 // pred_check_branch
        %360 = sbr.rel (%p358) target = $region40
      $region39: #{_lambda_.6} parent=11 // pred_region
        _
      $region40: #{_lambda_.6} parent=11 // pred_fallthru
        _
      // Predicated region
      $region41: #{_lambda_.6} parent=11 // pred_check
        %p361 = pneg %p215
      $region42: #{_lambda_.6} parent=11 // pred_check_branch
        %363 = sbr.rel (%p361) target = $region44
      $region43: #{_lambda_.6} parent=11 // pred_region
        _
      $region44: #{_lambda_.6} parent=11 // pred_fallthru
        _
      // Predicated region
      $region45: #{_lambda_.6} parent=11 // pred_check
        %p364 = pneg %p236
      $region46: #{_lambda_.6} parent=11 // pred_check_branch
        %366 = sbr.rel (%p364) target = $region48
      $region47: #{_lambda_.6} parent=11 // pred_region
        _
      $region48: #{_lambda_.6} parent=11 // pred_fallthru
        _
      // Predicated region
      $region49: #{_lambda_.6} parent=11 // pred_check
        %p367 = pneg %p257
      $region50: #{_lambda_.6} parent=11 // pred_check_branch
        %369 = sbr.rel (%p367) target = $region52
      $region51: #{_lambda_.6} parent=11 // pred_region
        _
      $region52: #{_lambda_.6} parent=11 // pred_fallthru
        _
      // Predicated region
      $region53: #{_lambda_.6} parent=11 // pred_check
        %p370 = pneg %p278
      $region54: #{_lambda_.6} parent=11 // pred_check_branch
        %372 = sbr.rel (%p370) target = $region56
      $region55: #{_lambda_.6} parent=11 // pred_region
        _
      $region56: #{_lambda_.6} parent=11 // pred_fallthru
        _
      // Predicated region
      $region57: #{_lambda_.6} parent=11 // pred_check
        %p373 = pneg %p299
      $region58: #{_lambda_.6} parent=11 // pred_check_branch
        %375 = sbr.rel (%p373) target = $region60
      $region59: #{_lambda_.6} parent=11 // pred_region
        _
      $region60: #{_lambda_.6} parent=11 // pred_fallthru
        _
    $region12: #{_lambda_.6} parent=5 // pred_fallthru
      _
    %p376 = scmp.lt.s32.totalorder %s21, 2
    // Predicated region
    $region61: #{_lambda_.6} parent=5 // pred_check
      %p377 = pneg %p376
    $region62: #{_lambda_.6} parent=5 // pred_check_branch
      %379 = sbr.rel (%p377) target = $region64
    $region63: #{_lambda_.6} parent=5 // pred_region
      // Predicated region
      $region65: #{_lambda_.6} parent=63 // pred_check
        %p380 = pneg %p41
      $region66: #{_lambda_.6} parent=63 // pred_check_branch
        %382 = sbr.rel (%p380) target = $region68
      $region67: #{_lambda_.6} parent=63 // pred_region
        %p383 = scmp.lt.s32.totalorder %s21, 1
        %s384 = scalar_select %p383, %s21, 1
        %s385 = smul.addr %s384, 2
        %s386 = smul.addr %s385, 4
        %s387 = scalar_lea.vmem %s0, %s386
      $region68: #{_lambda_.6} parent=63 // pred_fallthru
        _
    $region64: #{_lambda_.6} parent=5 // pred_fallthru
      _
    %p388 = scmp.le.s32.totalorder 1, %s21
    %p389 = scmp.lt.s32.totalorder %s21, 3
    %p390 = pnand %p388, %p389
    %p391 = pneg %p390
    // Predicated region
    $region69: #{_lambda_.6} parent=5 // pred_check
      _
    $region70: #{_lambda_.6} parent=5 // pred_check_branch
      %393 = sbr.rel (%p390) target = $region72
    $region71: #{_lambda_.6} parent=5 // pred_region
      %s394 = ssub.s32 %s21, 1
      %p395 = scmp.lt.s32.totalorder %s26, 1
      %s396 = scalar_select %p395, %s26, 1
      %s397 = smul.addr %s396, 2
      %s398 = smul.addr %s397, 4
      %s399 = scalar_lea.vmem %s0, %s398
      %p400 = pneg %p47
      %p401 = pneg %p44
      %p402 = pneg %p68
      %p403 = pneg %p65
      %p404 = pneg %p89
      %p405 = pneg %p86
      %p406 = pneg %p110
      %p407 = pneg %p107
      %p408 = pneg %p131
      %p409 = pneg %p128
      %p410 = pneg %p152
      %p411 = pneg %p149
      %p412 = pneg %p173
      %p413 = pneg %p170
      %p414 = pneg %p194
      %p415 = pneg %p191
      %p416 = pneg %p215
      %p417 = pneg %p212
      %p418 = pneg %p236
      %p419 = pneg %p233
      %p420 = pneg %p257
      %p421 = pneg %p254
      %p422 = pneg %p278
      %p423 = pneg %p275
      %p424 = pneg %p299
      %p425 = pneg %p296
      %p426 = pneg %p325
      %p427 = pneg %p322
      %p428 = scmp.lt.s32.totalorder %s26, 1
      %s429 = scalar_select %p428, %s26, 1
      %s430 = smul.addr %s429, 2
      %s431 = smul.addr %s430, 4
      %s432 = scalar_lea.vmem %s13, %s431
      %p433 = scmp.lt.s32.totalorder %s26, 1
      %s434 = scalar_select %p433, %s26, 1
      %s435 = smul.addr %s434, 2
      %s436 = smul.addr %s435, 4
      %s437 = scalar_lea.vmem %s0, %s436
      %p438 = scmp.lt.s32.totalorder %s26, 1
      %s439 = scalar_select %p438, %s26, 1
      %s440 = smul.addr %s439, 2
      %s441 = smul.addr %s440, 4
      %s442 = scalar_lea.vmem %s13, %s441
      %v444 = vlaneseq
      %v445 = vand.u32 %v444, 127
      %v446 = vadd.s32 %v445, 128
      %v447 = vand.u32 %v445, 15
      %v448 = vand.u32 %v446, 15
      %v449 = vld [vmem:[%s437] sm:$0xff]
      %v450 = vld [vmem:[%s1] sm:$0xf]
      %v451 = vld [vmem:[%s2] sm:$0xf]
      %v453 = vcombine.high %v449, %v449
      %vm455 = vcmask 1043456
      %v456 = vsel %vm455, %v449, 0.0
      %v457 = vrot.slane %v456, 4
      %v458 = vadd.f32 %v456, %v457
      %v459 = vrot.slane %v458, 2
      %v460 = vadd.f32 %v458, %v459
      %v461 = vrot.slane %v460, 1
      %v462 = vadd.f32 %v460, %v461
      %v463 = vsel %vm455, %v453, 0.0
      %v464 = vrot.slane %v463, 4
      %v465 = vadd.f32 %v463, %v464
      %v466 = vrot.slane %v465, 2
      %v467 = vadd.f32 %v465, %v466
      %v468 = vrot.slane %v467, 1
      %v469 = vadd.f32 %v467, %v468
      %v470 = vrcp.pop 4.0
      %v471 = vmul.f32 %v462, %v470
      %v472 = vmul.f32 %v469, %v470
      %v475 = vcombine.low %v471, %v472
      %v477 = vsub.f32 %v449, %v475
      %v478 = vmul.f32 %v477, %v477
      %v480 = vcombine.high %v478, %v478
      %v482 = vsel %vm455, %v478, 0.0
      %v483 = vrot.slane %v482, 4
      %v484 = vadd.f32 %v482, %v483
      %v485 = vrot.slane %v484, 2
      %v486 = vadd.f32 %v484, %v485
      %v487 = vrot.slane %v486, 1
      %v488 = vadd.f32 %v486, %v487
      %v489 = vsel %vm455, %v480, 0.0
      %v490 = vrot.slane %v489, 4
      %v491 = vadd.f32 %v489, %v490
      %v492 = vrot.slane %v491, 2
      %v493 = vadd.f32 %v491, %v492
      %v494 = vrot.slane %v493, 1
      %v495 = vadd.f32 %v493, %v494
      %v496 = vmul.f32 %v488, %v470
      %v497 = vmul.f32 %v495, %v470
      %v498 = vadd.f32 %v496, 1e-06
      %v499 = vadd.f32 %v497, 1e-06
      %v500 = vrsqrt.pop %v498
      %v501 = vrsqrt.pop %v499
      %v504 = vcombine.low %v500, %v501
      %v506 = vmul.f32 %v477, %v504
      %508 = vset.pattern.permute.xlu0 0
      %509 = vperm.xlu0 %508, %v450
      %v510 = vpop.permute.xlu0 %509
      %v513 = vcombine.high %v506, %v506
      %v515 = vmul.f32 %v510, %v506
      %v516 = vmul.f32 %v510, %v513
      %518 = vset.pattern.permute.xlu0 0
      %519 = vperm.xlu0 %518, %v451
      %v520 = vpop.permute.xlu0 %519
      %v522 = vadd.f32 %v515, %v520
      %v523 = vadd.f32 %v516, %v520
      %vm524 = vcmp.lt.s32.totalorder %v447, 1
      %vm525 = vcmp.lt.s32.totalorder %v448, 1
      %526 = vrot.lane.b32.xlu0 %v522, 113
      %v527 = vpop.permute.xlu0 %526
      %528 = vrot.lane.b32.xlu0 %v523, 113
      %v529 = vpop.permute.xlu0 %528
      %vm530 = vcmp.lt.s32.totalorder %v445, 113
      %v531 = vsel %vm530, %v527, %v529
      %v532 = vsel %vm530, %v529, %v527
      %533 = vrot.lane.b32.xlu0 %v522, 1
      %v534 = vpop.permute.xlu0 %533
      %535 = vrot.lane.b32.xlu0 %v523, 1
      %v536 = vpop.permute.xlu0 %535
      %vm537 = vcmp.lt.s32.totalorder %v445, 1
      %v538 = vsel %vm537, %v534, %v536
      %v539 = vsel %vm537, %v536, %v534
      %v540 = vsel %vm524, 1, 0
      %v541 = vsel %vm525, 1, 0
      %vm542 = vcmp.eq.s32.totalorder %v540, 1
      %vm543 = vcmp.eq.s32.totalorder %v541, 1
      %v544 = vsel %vm542, %v531, %v539
      %v545 = vsel %vm543, %v532, %v538
      %v546 = vld [vmem:[%s3] sm:$0x1]
      %v547 = vpack.c.bf16 %v544, %v544
      %v548 = vpack.c.bf16 %v545, %v545
      %v549 = vld [vmem:[%s4] sm:$0x3]
      %551 = vset.pattern.permute.xlu0 0
      %552 = vperm.xlu0 %551, %v549
      %v553 = vpop.permute.xlu0 %552
      %vm555 = vcmask 31744
      %v557 = vsel %vm555, %v546, 0
      %vm559 = vcmask 1041408
      %v561 = vsel %vm559, %v547, 0
      %v564 = vsel %vm559, %v548, 0
      %566 = vmatprep.subr.bf16.mxu0 0
      %567 = vmatpush1.bf16.msra.mxu0 0
      %568 = vmatprep.subr.bf16.mxu0 0
      %569 = vmatpush1.bf16.msra.mxu0 0
      %570 = vmatprep.subr.bf16.mxu0 0
      %571 = vmatpush1.bf16.msra.mxu0 0
      %572 = vmatprep.subr.bf16.mxu0 0
      %573 = vmatpush1.bf16.msra.mxu0 0
      %574 = vmatprep.subr.bf16.mxu0 0
      %575 = vmatpush1.bf16.msra.mxu0 0
      %576 = vmatprep.subr.bf16.mxu0 0
      %577 = vmatpush1.bf16.msra.mxu0 0
      %578 = vmatprep.subr.bf16.mxu0 0
      %579 = vmatpush1.bf16.msra.mxu0 0
      %580 = vmatprep.subr.bf16.mxu0 %v564
      %581 = vmatpush1.bf16.msra.mxu0 %v561
      %582 = vmatprep.subr.bf16.mxu0 0
      %583 = vmatpush2.bf16.msra.mxu0 0
      %584 = vmatprep.subr.bf16.mxu0 0
      %585 = vmatpush2.bf16.msra.mxu0 0
      %586 = vmatprep.subr.bf16.mxu0 0
      %587 = vmatpush2.bf16.msra.mxu0 0
      %588 = vmatprep.subr.bf16.mxu0 0
      %589 = vmatpush2.bf16.msra.mxu0 0
      %590 = vmatprep.subr.bf16.mxu0 0
      %591 = vmatpush2.bf16.msra.mxu0 0
      %592 = vmatprep.subr.bf16.mxu0 0
      %593 = vmatpush2.bf16.msra.mxu0 0
      %594 = vmatprep.subr.bf16.mxu0 0
      %595 = vmatpush2.bf16.msra.mxu0 0
      %596 = vmatprep.subr.bf16.mxu0 0
      %597 = vmatpush2.bf16.msra.mxu0 0
      %598 = vmatprep.mubr.bf16.mxu0 0
      %599 = vmatmul.mubr.bf16.gmra.mxu0 %v557
      %v600 = vpop.f32.mrf.mxu0
      %v601 = vadd.f32 %v553, %v600
      %v602 = vpop.f32.mrf.mxu0
      %v603 = vadd.f32 %v553, %v602
      %v604 = vpop.f32.mrf.mxu0
      %v605 = vpop.f32.mrf.mxu0
      %606 = vdwg.mxu0
      %v607 = vmax.f32 %v601, 0.0
      %v608 = vmax.f32 %v603, 0.0
      %v609 = vld [vmem:[%s5] sm:$0x3]
      %v610 = vpack.c.bf16 %v607, %v607
      %v611 = vpack.c.bf16 %v608, %v608
      %v612 = vld [vmem:[%s6] sm:$0xf]
      %614 = vset.pattern.permute.xlu0 0
      %615 = vperm.xlu0 %614, %v612
      %v616 = vpop.permute.xlu0 %615
      %vm618 = vcmask 15360
      %v620 = vsel %vm618, %v609, 0
      %vm622 = vcmask 1040384
      %v624 = vsel %vm622, %v610, 0
      %v627 = vsel %vm622, %v611, 0
      %629 = vmatprep.subr.bf16.mxu0 0
      %630 = vmatpush1.bf16.msra.mxu0 0
      %631 = vmatprep.subr.bf16.mxu0 0
      %632 = vmatpush1.bf16.msra.mxu0 0
      %633 = vmatprep.subr.bf16.mxu0 0
      %634 = vmatpush1.bf16.msra.mxu0 0
      %635 = vmatprep.subr.bf16.mxu0 0
      %636 = vmatpush1.bf16.msra.mxu0 0
      %637 = vmatprep.subr.bf16.mxu0 0
      %638 = vmatpush1.bf16.msra.mxu0 0
      %639 = vmatprep.subr.bf16.mxu0 0
      %640 = vmatpush1.bf16.msra.mxu0 0
      %641 = vmatprep.subr.bf16.mxu0 0
      %642 = vmatpush1.bf16.msra.mxu0 0
      %643 = vmatprep.subr.bf16.mxu0 %v627
      %644 = vmatpush1.bf16.msra.mxu0 %v624
      %645 = vmatprep.subr.bf16.mxu0 0
      %646 = vmatpush2.bf16.msra.mxu0 0
      %647 = vmatprep.subr.bf16.mxu0 0
      %648 = vmatpush2.bf16.msra.mxu0 0
      %649 = vmatprep.subr.bf16.mxu0 0
      %650 = vmatpush2.bf16.msra.mxu0 0
      %651 = vmatprep.subr.bf16.mxu0 0
      %652 = vmatpush2.bf16.msra.mxu0 0
      %653 = vmatprep.subr.bf16.mxu0 0
      %654 = vmatpush2.bf16.msra.mxu0 0
      %655 = vmatprep.subr.bf16.mxu0 0
      %656 = vmatpush2.bf16.msra.mxu0 0
      %657 = vmatprep.subr.bf16.mxu0 0
      %658 = vmatpush2.bf16.msra.mxu0 0
      %659 = vmatprep.subr.bf16.mxu0 0
      %660 = vmatpush2.bf16.msra.mxu0 0
      %661 = vmatprep.mubr.bf16.mxu0 0
      %662 = vmatmul.mubr.bf16.gmra.mxu0 %v620
      %v663 = vpop.f32.mrf.mxu0
      %v664 = vadd.f32 %v616, %v663
      %v665 = vpop.f32.mrf.mxu0
      %v666 = vadd.f32 %v616, %v665
      %v667 = vpop.f32.mrf.mxu0
      %v668 = vpop.f32.mrf.mxu0
      %669 = vdwg.mxu0
      %vm670 = vcmp.lt.s32.totalorder %v447, 15
      %vm671 = vcmp.lt.s32.totalorder %v448, 15
      %672 = vrot.lane.b32.xlu0 %v664, 127
      %v673 = vpop.permute.xlu0 %672
      %674 = vrot.lane.b32.xlu0 %v666, 127
      %v675 = vpop.permute.xlu0 %674
      %vm676 = vcmp.lt.s32.totalorder %v445, 127
      %v677 = vsel %vm676, %v673, %v675
      %v678 = vsel %vm676, %v675, %v673
      %679 = vrot.lane.b32.xlu0 %v664, 15
      %v680 = vpop.permute.xlu0 %679
      %681 = vrot.lane.b32.xlu0 %v666, 15
      %v682 = vpop.permute.xlu0 %681
      %vm683 = vcmp.lt.s32.totalorder %v445, 15
      %v684 = vsel %vm683, %v680, %v682
      %v685 = vsel %vm683, %v682, %v680
      %v686 = vsel %vm670, 1, 0
      %v687 = vsel %vm671, 1, 0
      %vm688 = vcmp.eq.s32.totalorder %v686, 1
      %vm689 = vcmp.eq.s32.totalorder %v687, 1
      %v690 = vsel %vm688, %v677, %v685
      %v691 = vsel %vm689, %v678, %v684
      %v692 = vsel %vm455, %v690, 0.0
      %v693 = vsel %vm455, %v691, 0.0
      %v694 = vadd.f32 %v692, %v693
      %695 = vadd.xlane.f32.xlu0 %v694
      %v696 = vpop.xlane.xlu0 %695
      %v697 = vrcp.pop 256.0
      %v698 = vmul.f32 %v696, %v697
      %v699 = vld [vmem:[%s7] sm:$0xf]
      %v700 = vmul.f32 %v699, %v698
      %vm701 = vcmask 3072
      %v702 = vsel %vm701, %v700, 0.0
      %v703 = vrot.slane %v702, 4
      %v704 = vadd.f32 %v702, %v703
      %v705 = vrot.slane %v704, 2
      %v706 = vadd.f32 %v704, %v705
      %v707 = vrot.slane %v706, 1
      %v708 = vadd.f32 %v706, %v707
      %v709 = vld [vmem:[#allocation2] sm:$0x1]
      %v710 = vadd.f32 %v708, %v709
      %v711 = vmul.f32 %v710, 0.5
      %v712 = vmul.f32 %v710, 0.044715
      %v713 = vmul.f32 %v712, %v710
      %v714 = vmul.f32 %v713, %v710
      %v715 = vadd.f32 %v710, %v714
      %v716 = vmul.f32 %v715, 0.7978846
      %v717 = vtanh.pop %v716
      %v718 = vadd.f32 %v717, 1.0
      %v719 = vmul.f32 %v711, %v718
      %v720 = vld [vmem:[%s9] sm:$0xf]
      %v721 = vlaneseq
      %v722 = vshrl.u32 %v721, 7
      %v723 = vsub.s32 0, %v722
      %v724 = vrot.slane %v719, %v723
      %v725 = vmul.f32 %v720, %v724
      %v726 = vadd.f32 %v725, 0.0
      %v727 = vld [vmem:[%s10] sm:$0xf]
      %v728 = vadd.f32 %v726, %v727
      %s729 = scalar_lea.vmem %s9, 4
      %v730 = vld [vmem:[%s729] sm:$0xf]
      %v731 = vmul.f32 %v730, %v724
      %v732 = vadd.f32 %v731, 0.0
      %s733 = scalar_lea.vmem %s10, 4
      %v734 = vld [vmem:[%s733] sm:$0xf]
      %v735 = vadd.f32 %v732, %v734
      %s736 = scalar_lea.vmem %s9, 8
      %v737 = vld [vmem:[%s736] sm:$0xf]
      %v738 = vmul.f32 %v737, %v724
      %v739 = vadd.f32 %v738, 0.0
      %s740 = scalar_lea.vmem %s10, 8
      %v741 = vld [vmem:[%s740] sm:$0xf]
      %v742 = vadd.f32 %v739, %v741
      %v743 = vmax.f32 %v728, %v735
      %v744 = vmax.f32 %v743, %v742
      %v745 = vsub.f32 %v728, %v744
      %v746 = vmul.f32 %v745, 1.442695
      %v747 = vpow.pop %v746
      %v748 = vsub.f32 %v735, %v744
      %v749 = vmul.f32 %v748, 1.442695
      %v750 = vpow.pop %v749
      %v751 = vsub.f32 %v742, %v744
      %v752 = vmul.f32 %v751, 1.442695
      %v753 = vpow.pop %v752
      %v754 = vadd.f32 %v747, %v750
      %v755 = vadd.f32 %v754, %v753
      %v756 = vrcp.pop %v755
      %v757 = vmul.f32 %v750, %v756
      %759 = vset.pattern.permute.xlu0 0
      %760 = vperm.xlu0 %759, %v757
      %v761 = vpop.permute.xlu0 %760
      %v763 = vmul.f32 %v690, %v761
      %v764 = vmul.f32 %v691, %v761
      %v765 = vld [vmem:[%s11] sm:$0x3]
      %v766 = vpack.c.bf16 %v763, %v763
      %v767 = vpack.c.bf16 %v764, %v764
      %v768 = vld [vmem:[%s12] sm:$0xf]
      %770 = vset.pattern.permute.xlu0 0
      %771 = vperm.xlu0 %770, %v768
      %v772 = vpop.permute.xlu0 %771
      %v775 = vsel %vm555, %v765, 0
      %v778 = vsel %vm559, %v766, 0
      %v781 = vsel %vm559, %v767, 0
      %783 = vmatprep.subr.bf16.mxu0 0
      %784 = vmatpush1.bf16.msra.mxu0 0
      %785 = vmatprep.subr.bf16.mxu0 0
      %786 = vmatpush1.bf16.msra.mxu0 0
      %787 = vmatprep.subr.bf16.mxu0 0
      %788 = vmatpush1.bf16.msra.mxu0 0
      %789 = vmatprep.subr.bf16.mxu0 0
      %790 = vmatpush1.bf16.msra.mxu0 0
      %791 = vmatprep.subr.bf16.mxu0 0
      %792 = vmatpush1.bf16.msra.mxu0 0
      %793 = vmatprep.subr.bf16.mxu0 0
      %794 = vmatpush1.bf16.msra.mxu0 0
      %795 = vmatprep.subr.bf16.mxu0 0
      %796 = vmatpush1.bf16.msra.mxu0 0
      %797 = vmatprep.subr.bf16.mxu0 %v781
      %798 = vmatpush1.bf16.msra.mxu0 %v778
      %799 = vmatprep.subr.bf16.mxu0 0
      %800 = vmatpush2.bf16.msra.mxu0 0
      %801 = vmatprep.subr.bf16.mxu0 0
      %802 = vmatpush2.bf16.msra.mxu0 0
      %803 = vmatprep.subr.bf16.mxu0 0
      %804 = vmatpush2.bf16.msra.mxu0 0
      %805 = vmatprep.subr.bf16.mxu0 0
      %806 = vmatpush2.bf16.msra.mxu0 0
      %807 = vmatprep.subr.bf16.mxu0 0
      %808 = vmatpush2.bf16.msra.mxu0 0
      %809 = vmatprep.subr.bf16.mxu0 0
      %810 = vmatpush2.bf16.msra.mxu0 0
      %811 = vmatprep.subr.bf16.mxu0 0
      %812 = vmatpush2.bf16.msra.mxu0 0
      %813 = vmatprep.subr.bf16.mxu0 0
      %814 = vmatpush2.bf16.msra.mxu0 0
      %815 = vmatprep.mubr.bf16.mxu0 0
      %816 = vmatmul.mubr.bf16.gmra.mxu0 %v775
      %v817 = vpop.f32.mrf.mxu0
      %v818 = vadd.f32 %v772, %v817
      %v819 = vpop.f32.mrf.mxu0
      %v820 = vadd.f32 %v772, %v819
      %v821 = vpop.f32.mrf.mxu0
      %v822 = vpop.f32.mrf.mxu0
      %823 = vdwg.mxu0
      %v826 = vcombine.low %v818, %v820
      %828 = vst [vmem:[%s442] sm:$0xff] %v826
      %p829 = scmp.lt.s32.totalorder %s26, 1
      %s830 = scalar_select %p829, %s26, 1
      %s831 = smul.addr %s830, 2
      %s832 = smul.addr %s831, 4
      %s833 = scalar_lea.vmem %s13, %s832
      // Predicated region
      $region73: #{_lambda_.6} parent=71 // pred_check
        %p834 = pneg %p322
      $region74: #{_lambda_.6} parent=71 // pred_check_branch
        %836 = sbr.rel (%p834) target = $region76
      $region75: #{_lambda_.6} parent=71 // pred_region
        _
      $region76: #{_lambda_.6} parent=71 // pred_fallthru
        _
    $region72: #{_lambda_.6} parent=5 // pred_fallthru
      _
    %p837 = scmp.le.s32.totalorder 2, %s21
    // Predicated region
    $region77: #{_lambda_.6} parent=5 // pred_check
      %p838 = pneg %p837
    $region78: #{_lambda_.6} parent=5 // pred_check_branch
      %840 = sbr.rel (%p838) target = $region80
    $region79: #{_lambda_.6} parent=5 // pred_region
      %s841 = ssub.s32 %s21, 2
      // Predicated region
      $region81: #{_lambda_.6} parent=79 // pred_check
        %p842 = pneg %p328
      $region82: #{_lambda_.6} parent=79 // pred_check_branch
        %844 = sbr.rel (%p842) target = $region84
      $region83: #{_lambda_.6} parent=79 // pred_region
        %p845 = scmp.lt.s32.totalorder %s27, 1
        %s846 = scalar_select %p845, %s27, 1
        %s847 = smul.addr %s846, 2
        %s848 = smul.addr %s847, 4
        %s849 = scalar_lea.vmem %s13, %s848
      $region84: #{_lambda_.6} parent=79 // pred_fallthru
        _
    $region80: #{_lambda_.6} parent=5 // pred_fallthru
      _
  $region6: #{_lambda_.6} parent=0 // loop_footer
    %s25 = sadd.s32 1, %s21
  $region7: #{_lambda_.6} parent=0 // loop_footer_branch
    %20 = sbr.rel target = $region3
  $region8: #{_lambda_.6} parent=0 // loop_exit
    _

// kernel: _lambda_.9
$region0: #{_lambda_.9}
  #allocation0 [shape = 'u32[]', space=smem, size = 0x4, offset = 0x4, fixed_abs, tag = 'smem constant byte address 0x4 - core index']
  #allocation1 [shape = 'u32[144,128]{1,0:T(1,128)}', space=vmem, size = 0x12000, scoped, tag = 'internal scratch']
  %s0 = inlined_call_operand.vmem [shape: f32[2,8,256], index: 0, kind: input, shape index: {}]
  %s1 = inlined_call_operand.vmem [shape: bf16[9,4,8], index: 1, kind: input, shape index: {}]
  %s2 = inlined_call_operand.vmem [shape: f32[4,1], index: 2, kind: input, shape index: {}]
  %s3 = inlined_call_operand.vmem [shape: f32[2,4,256], index: 3, kind: output, shape index: {}]
  %s4 = sld [smem:[#allocation0]]
  $region45: #{_lambda_.9} parent=0
    _
  %s6 = ssub.s32 1, %s4
  %s7 = scalar_select 0, %s6, %s4
  loop: start=0, step=1, limit=4
  $region2: #{_lambda_.9} parent=0 // loop_pre_header
    _
  $region3: #{_lambda_.9} parent=0 // loop_header
    %s9 = sphi 0, %s13
    %p10 = scmp.ge.s32.totalorder %s9, 4
    %s19 = sphi 0, %s21
    %s22 = sphi 0, %s19
    %s23 = sphi 0, %s22
    %s39 = sphi 0, %s23
    %s43 = sphi 0, %s43
    %s45 = sphi 0, %s43
    %s46 = sphi 0, %s45
    %s60 = sphi 0, %s46
    %s64 = sphi 0, %s64
    %s66 = sphi 0, %s64
    %s67 = sphi 0, %s66
    %s81 = sphi 0, %s67
    %s87 = sphi 0, %s89
    %s90 = sphi 0, %s87
    %s91 = sphi 0, %s90
    %s107 = sphi 0, %s91
  $region4: #{_lambda_.9} parent=0 // loop_header_branch
    %12 = sbr.rel (%p10) target = $region8
  $region5: #{_lambda_.9} parent=0 // loop_body
    %s14 = ssub.s32 %s9, 1
    %s15 = ssub.s32 %s9, 2
    %s16 = sadd.s32 %s9, 1
    %s17 = ssub.s32 %s9, %s16
    %p18 = scmp.eq.s32.totalorder %s17, 0
    %s20 = sadd.s32 %s19, 1
    %s21 = scalar_select %p18, %s19, %s20
    %p24 = pneg %p18
    %p25 = scmp.eq.s32.totalorder %s9, 1
    %p26 = por %p24, %p25
    %p27 = scmp.ne.s32.totalorder %s19, %s22
    %p28 = scmp.eq.s32.totalorder %s9, 0
    %p29 = por %p27, %p28
    %p30 = scmp.ne.s32.totalorder %s19, %s22
    %p31 = scmp.eq.s32.totalorder %s14, 1
    %p32 = por %p30, %p31
    %p33 = scmp.ne.s32.totalorder %s22, %s23
    %p34 = scmp.eq.s32.totalorder %s14, 0
    %p35 = por %p33, %p34
    %p36 = scmp.ne.s32.totalorder %s22, %s23
    %p37 = scmp.eq.s32.totalorder %s15, 1
    %p38 = por %p36, %p37
    %p40 = scmp.ne.s32.totalorder %s23, %s39
    %p41 = scmp.eq.s32.totalorder %s15, 0
    %p42 = por %p40, %p41
    %s44 = sadd.s32 %s43, 1
    %p47 = scmp.eq.s32.totalorder %s9, 1
    %p48 = scmp.ne.s32.totalorder %s43, %s45
    %p49 = scmp.eq.s32.totalorder %s9, 0
    %p50 = por %p48, %p49
    %p51 = scmp.ne.s32.totalorder %s43, %s45
    %p52 = scmp.eq.s32.totalorder %s14, 1
    %p53 = por %p51, %p52
    %p54 = scmp.ne.s32.totalorder %s45, %s46
    %p55 = scmp.eq.s32.totalorder %s14, 0
    %p56 = por %p54, %p55
    %p57 = scmp.ne.s32.totalorder %s45, %s46
    %p58 = scmp.eq.s32.totalorder %s15, 1
    %p59 = por %p57, %p58
    %p61 = scmp.ne.s32.totalorder %s46, %s60
    %p62 = scmp.eq.s32.totalorder %s15, 0
    %p63 = por %p61, %p62
    %s65 = sadd.s32 %s64, 1
    %p68 = scmp.eq.s32.totalorder %s9, 1
    %p69 = scmp.ne.s32.totalorder %s64, %s66
    %p70 = scmp.eq.s32.totalorder %s9, 0
    %p71 = por %p69, %p70
    %p72 = scmp.ne.s32.totalorder %s64, %s66
    %p73 = scmp.eq.s32.totalorder %s14, 1
    %p74 = por %p72, %p73
    %p75 = scmp.ne.s32.totalorder %s66, %s67
    %p76 = scmp.eq.s32.totalorder %s14, 0
    %p77 = por %p75, %p76
    %p78 = scmp.ne.s32.totalorder %s66, %s67
    %p79 = scmp.eq.s32.totalorder %s15, 1
    %p80 = por %p78, %p79
    %p82 = scmp.ne.s32.totalorder %s67, %s81
    %p83 = scmp.eq.s32.totalorder %s15, 0
    %p84 = por %p82, %p83
    %s85 = ssub.s32 %s9, %s16
    %p86 = scmp.eq.s32.totalorder %s85, 0
    %s88 = sadd.s32 %s87, 1
    %s89 = scalar_select %p86, %s87, %s88
    %p92 = pneg %p86
    %p93 = scmp.eq.s32.totalorder %s9, 1
    %p94 = por %p92, %p93
    %p95 = scmp.ne.s32.totalorder %s87, %s90
    %p96 = scmp.eq.s32.totalorder %s9, 0
    %p97 = por %p95, %p96
    %p98 = scmp.ne.s32.totalorder %s87, %s90
    %p99 = scmp.eq.s32.totalorder %s14, 1
    %p100 = por %p98, %p99
    %p101 = scmp.ne.s32.totalorder %s90, %s91
    %p102 = scmp.eq.s32.totalorder %s14, 0
    %p103 = por %p101, %p102
    %p104 = scmp.ne.s32.totalorder %s90, %s91
    %p105 = scmp.eq.s32.totalorder %s15, 1
    %p106 = por %p104, %p105
    %p108 = scmp.ne.s32.totalorder %s91, %s107
    %p109 = scmp.eq.s32.totalorder %s15, 0
    %p110 = por %p108, %p109
    %p111 = scmp.le.s32.totalorder 1, %s9
    %p112 = scmp.lt.s32.totalorder %s9, 3
    %p113 = pnand %p111, %p112
    %p114 = pneg %p113
    // Predicated region
    $region9: #{_lambda_.9} parent=5 // pred_check
      _
    $region10: #{_lambda_.9} parent=5 // pred_check_branch
      %116 = sbr.rel (%p113) target = $region12
    $region11: #{_lambda_.9} parent=5 // pred_region
      %s117 = ssub.s32 %s9, 1
      // Predicated region
      $region13: #{_lambda_.9} parent=11 // pred_check
        %p118 = pneg %p56
      $region14: #{_lambda_.9} parent=11 // pred_check_branch
        %120 = sbr.rel (%p118) target = $region16
      $region15: #{_lambda_.9} parent=11 // pred_region
        _
      $region16: #{_lambda_.9} parent=11 // pred_fallthru
        _
      // Predicated region
      $region17: #{_lambda_.9} parent=11 // pred_check
        %p121 = pneg %p77
      $region18: #{_lambda_.9} parent=11 // pred_check_branch
        %123 = sbr.rel (%p121) target = $region20
      $region19: #{_lambda_.9} parent=11 // pred_region
        _
      $region20: #{_lambda_.9} parent=11 // pred_fallthru
        _
    $region12: #{_lambda_.9} parent=5 // pred_fallthru
      _
    %p124 = scmp.lt.s32.totalorder %s9, 2
    // Predicated region
    $region21: #{_lambda_.9} parent=5 // pred_check
      %p125 = pneg %p124
    $region22: #{_lambda_.9} parent=5 // pred_check_branch
      %127 = sbr.rel (%p125) target = $region24
    $region23: #{_lambda_.9} parent=5 // pred_region
      // Predicated region
      $region25: #{_lambda_.9} parent=23 // pred_check
        %p128 = pneg %p29
      $region26: #{_lambda_.9} parent=23 // pred_check_branch
        %130 = sbr.rel (%p128) target = $region28
      $region27: #{_lambda_.9} parent=23 // pred_region
        %p131 = scmp.lt.s32.totalorder %s9, 1
        %s132 = scalar_select %p131, %s9, 1
        %s133 = smul.addr %s132, 2
        %s134 = smul.addr %s133, 8
        %s135 = scalar_lea.vmem %s0, %s134
      $region28: #{_lambda_.9} parent=23 // pred_fallthru
        _
    $region24: #{_lambda_.9} parent=5 // pred_fallthru
      _
    %p136 = scmp.le.s32.totalorder 1, %s9
    %p137 = scmp.lt.s32.totalorder %s9, 3
    %p138 = pnand %p136, %p137
    %p139 = pneg %p138
    // Predicated region
    $region29: #{_lambda_.9} parent=5 // pred_check
      _
    $region30: #{_lambda_.9} parent=5 // pred_check_branch
      %141 = sbr.rel (%p138) target = $region32
    $region31: #{_lambda_.9} parent=5 // pred_region
      %s142 = ssub.s32 %s9, 1
      %p143 = scmp.lt.s32.totalorder %s14, 1
      %s144 = scalar_select %p143, %s14, 1
      %s145 = smul.addr %s144, 2
      %s146 = smul.addr %s145, 8
      %s147 = scalar_lea.vmem %s0, %s146
      %p148 = pneg %p35
      %p149 = pneg %p32
      %p150 = pneg %p56
      %p151 = pneg %p53
      %p152 = pneg %p77
      %p153 = pneg %p74
      %p154 = pneg %p103
      %p155 = pneg %p100
      %p156 = scmp.lt.s32.totalorder %s14, 1
      %s157 = scalar_select %p156, %s14, 1
      %s158 = smul.addr %s157, 2
      %s159 = smul.addr %s158, 4
      %s160 = scalar_lea.vmem %s3, %s159
      %p161 = scmp.lt.s32.totalorder %s14, 1
      %s162 = scalar_select %p161, %s14, 1
      %s163 = smul.addr %s162, 2
      %s164 = smul.addr %s163, 8
      %s165 = scalar_lea.vmem %s0, %s164
      %p166 = scmp.lt.s32.totalorder %s14, 1
      %s167 = scalar_select %p166, %s14, 1
      %s168 = smul.addr %s167, 2
      %s169 = smul.addr %s168, 4
      %s170 = scalar_lea.vmem %s3, %s169
      %v172 = vld [vmem:[%s165] sm:$0xff]
      %v173 = vld [vmem:[%s165 + $0x8] sm:$0xff]
      %v174 = vlaneseq
      %v175 = vand.u32 %v174, 127
      %v176 = vadd.s32 %v175, 128
      %v177 = vshra.s32 %v175, 4
      %v178 = vshra.s32 %v176, 4
      %v179 = vand.u32 %v175, 15
      %v180 = vand.u32 %v176, 15
      %181 = vrot.lane.b32.xlu0 %v172, 17
      %v182 = vpop.permute.xlu0 %181
      %183 = vrot.lane.b32.xlu0 %v173, 17
      %v184 = vpop.permute.xlu0 %183
      %vm185 = vcmp.lt.s32.totalorder %v175, 17
      %v186 = vsel %vm185, %v182, %v184
      %v187 = vsel %vm185, %v184, %v182
      %vm188 = vcmp.ge.s32.totalorder %v177, 1
      %vm189 = vcmp.ge.s32.totalorder %v178, 1
      %vm190 = vcmp.ge.s32.totalorder %v179, 1
      %vm191 = vcmp.ge.s32.totalorder %v180, 1
      %vm192 = vmand %vm188, %vm190
      %vm193 = vmand %vm189, %vm191
      %v194 = vsel %vm192, 1, 0
      %v195 = vsel %vm193, 1, 0
      %vm196 = vcmp.eq.s32.totalorder %v194, 1
      %vm197 = vcmp.eq.s32.totalorder %v195, 1
      %v198 = vsel %vm196, %v187, 0.0
      %v199 = vsel %vm197, %v186, 0.0
      %v200 = vld [vmem:[%s1] sm:$0x3]
      %v201 = vpack.c.bf16 %v198, %v198
      %v202 = vpack.c.bf16 %v199, %v199
      %203 = vrot.lane.b32.xlu0 %v172, 16
      %v204 = vpop.permute.xlu0 %203
      %205 = vrot.lane.b32.xlu0 %v173, 16
      %v206 = vpop.permute.xlu0 %205
      %vm207 = vcmp.lt.s32.totalorder %v175, 16
      %v208 = vsel %vm207, %v204, %v206
      %v209 = vsel %vm207, %v206, %v204
      %v210 = vsel %vm188, 1, 0
      %v211 = vsel %vm189, 1, 0
      %vm212 = vcmp.eq.s32.totalorder %v210, 1
      %vm213 = vcmp.eq.s32.totalorder %v211, 1
      %v214 = vsel %vm212, %v209, 0.0
      %v215 = vsel %vm213, %v208, 0.0
      %s216 = scalar_lea.vmem %s1, 2
      %v217 = vld [vmem:[%s216] sm:$0x3]
      %v218 = vpack.c.bf16 %v214, %v214
      %v219 = vpack.c.bf16 %v215, %v215
      %vm220 = vcmask 64512
      %v222 = vsel %vm220, %v217, 0
      %vm224 = vcmask 1043456
      %v226 = vsel %vm224, %v218, 0
      %v229 = vsel %vm224, %v219, 0
      %231 = vmatprep.subr.bf16.mxu0 0
      %232 = vmatpush1.bf16.msra.mxu0 0
      %233 = vmatprep.subr.bf16.mxu0 0
      %234 = vmatpush1.bf16.msra.mxu0 0
      %235 = vmatprep.subr.bf16.mxu0 0
      %236 = vmatpush1.bf16.msra.mxu0 0
      %237 = vmatprep.subr.bf16.mxu0 0
      %238 = vmatpush1.bf16.msra.mxu0 0
      %239 = vmatprep.subr.bf16.mxu0 0
      %240 = vmatpush1.bf16.msra.mxu0 0
      %241 = vmatprep.subr.bf16.mxu0 0
      %242 = vmatpush1.bf16.msra.mxu0 0
      %243 = vmatprep.subr.bf16.mxu0 0
      %244 = vmatpush1.bf16.msra.mxu0 0
      %245 = vmatprep.subr.bf16.mxu0 %v229
      %246 = vmatpush1.bf16.msra.mxu0 %v226
      %247 = vmatprep.subr.bf16.mxu0 0
      %248 = vmatpush2.bf16.msra.mxu0 0
      %249 = vmatprep.subr.bf16.mxu0 0
      %250 = vmatpush2.bf16.msra.mxu0 0
      %251 = vmatprep.subr.bf16.mxu0 0
      %252 = vmatpush2.bf16.msra.mxu0 0
      %253 = vmatprep.subr.bf16.mxu0 0
      %254 = vmatpush2.bf16.msra.mxu0 0
      %255 = vmatprep.subr.bf16.mxu0 0
      %256 = vmatpush2.bf16.msra.mxu0 0
      %257 = vmatprep.subr.bf16.mxu0 0
      %258 = vmatpush2.bf16.msra.mxu0 0
      %259 = vmatprep.subr.bf16.mxu0 0
      %260 = vmatpush2.bf16.msra.mxu0 0
      %261 = vmatprep.subr.bf16.mxu0 0
      %262 = vmatpush2.bf16.msra.mxu0 0
      %263 = vmatprep.mubr.bf16.mxu0 0
      %264 = vmatmul.mubr.bf16.gmra.mxu0 %v222
      %v265 = vpop.f32.mrf.mxu0
      %v266 = vadd.f32 0.0, %v265
      %v267 = vpop.f32.mrf.mxu0
      %v268 = vadd.f32 0.0, %v267
      %v269 = vpop.f32.mrf.mxu0
      %v270 = vpop.f32.mrf.mxu0
      %271 = vdwg.mxu0
      %v273 = vsel %vm220, %v200, 0
      %v276 = vsel %vm224, %v201, 0
      %v279 = vsel %vm224, %v202, 0
      %281 = vmatprep.subr.bf16.mxu0 0
      %282 = vmatpush1.bf16.msra.mxu0 0
      %283 = vmatprep.subr.bf16.mxu0 0
      %284 = vmatpush1.bf16.msra.mxu0 0
      %285 = vmatprep.subr.bf16.mxu0 0
      %286 = vmatpush1.bf16.msra.mxu0 0
      %287 = vmatprep.subr.bf16.mxu0 0
      %288 = vmatpush1.bf16.msra.mxu0 0
      %289 = vmatprep.subr.bf16.mxu0 0
      %290 = vmatpush1.bf16.msra.mxu0 0
      %291 = vmatprep.subr.bf16.mxu0 0
      %292 = vmatpush1.bf16.msra.mxu0 0
      %293 = vmatprep.subr.bf16.mxu0 0
      %294 = vmatpush1.bf16.msra.mxu0 0
      %295 = vmatprep.subr.bf16.mxu0 %v279
      %296 = vmatpush1.bf16.msra.mxu0 %v276
      %297 = vmatprep.subr.bf16.mxu0 0
      %298 = vmatpush2.bf16.msra.mxu0 0
      %299 = vmatprep.subr.bf16.mxu0 0
      %300 = vmatpush2.bf16.msra.mxu0 0
      %301 = vmatprep.subr.bf16.mxu0 0
      %302 = vmatpush2.bf16.msra.mxu0 0
      %303 = vmatprep.subr.bf16.mxu0 0
      %304 = vmatpush2.bf16.msra.mxu0 0
      %305 = vmatprep.subr.bf16.mxu0 0
      %306 = vmatpush2.bf16.msra.mxu0 0
      %307 = vmatprep.subr.bf16.mxu0 0
      %308 = vmatpush2.bf16.msra.mxu0 0
      %309 = vmatprep.subr.bf16.mxu0 0
      %310 = vmatpush2.bf16.msra.mxu0 0
      %311 = vmatprep.subr.bf16.mxu0 0
      %312 = vmatpush2.bf16.msra.mxu0 0
      %313 = vmatprep.mubr.bf16.mxu0 0
      %314 = vmatmul.mubr.bf16.gmra.mxu0 %v273
      %v315 = vpop.f32.mrf.mxu0
      %v316 = vadd.f32 %v266, %v315
      %v317 = vpop.f32.mrf.mxu0
      %v318 = vadd.f32 %v268, %v317
      %v319 = vpop.f32.mrf.mxu0
      %v320 = vpop.f32.mrf.mxu0
      %321 = vdwg.mxu0
      %322 = vrot.lane.b32.xlu0 %v172, 15
      %v323 = vpop.permute.xlu0 %322
      %324 = vrot.lane.b32.xlu0 %v173, 15
      %v325 = vpop.permute.xlu0 %324
      %vm326 = vcmp.lt.s32.totalorder %v175, 15
      %v327 = vsel %vm326, %v323, %v325
      %v328 = vsel %vm326, %v325, %v323
      %vm329 = vcmp.lt.s32.totalorder %v179, 15
      %vm330 = vcmp.lt.s32.totalorder %v180, 15
      %vm331 = vmand %vm188, %vm329
      %vm332 = vmand %vm189, %vm330
      %v333 = vsel %vm331, 1, 0
      %v334 = vsel %vm332, 1, 0
      %vm335 = vcmp.eq.s32.totalorder %v333, 1
      %vm336 = vcmp.eq.s32.totalorder %v334, 1
      %v337 = vsel %vm335, %v328, 0.0
      %v338 = vsel %vm336, %v327, 0.0
      %s339 = scalar_lea.vmem %s1, 4
      %v340 = vld [vmem:[%s339] sm:$0x3]
      %v341 = vpack.c.bf16 %v337, %v337
      %v342 = vpack.c.bf16 %v338, %v338
      %v344 = vsel %vm220, %v340, 0
      %v347 = vsel %vm224, %v341, 0
      %v350 = vsel %vm224, %v342, 0
      %352 = vmatprep.subr.bf16.mxu0 0
      %353 = vmatpush1.bf16.msra.mxu0 0
      %354 = vmatprep.subr.bf16.mxu0 0
      %355 = vmatpush1.bf16.msra.mxu0 0
      %356 = vmatprep.subr.bf16.mxu0 0
      %357 = vmatpush1.bf16.msra.mxu0 0
      %358 = vmatprep.subr.bf16.mxu0 0
      %359 = vmatpush1.bf16.msra.mxu0 0
      %360 = vmatprep.subr.bf16.mxu0 0
      %361 = vmatpush1.bf16.msra.mxu0 0
      %362 = vmatprep.subr.bf16.mxu0 0
      %363 = vmatpush1.bf16.msra.mxu0 0
      %364 = vmatprep.subr.bf16.mxu0 0
      %365 = vmatpush1.bf16.msra.mxu0 0
      %366 = vmatprep.subr.bf16.mxu0 %v350
      %367 = vmatpush1.bf16.msra.mxu0 %v347
      %368 = vmatprep.subr.bf16.mxu0 0
      %369 = vmatpush2.bf16.msra.mxu0 0
      %370 = vmatprep.subr.bf16.mxu0 0
      %371 = vmatpush2.bf16.msra.mxu0 0
      %372 = vmatprep.subr.bf16.mxu0 0
      %373 = vmatpush2.bf16.msra.mxu0 0
      %374 = vmatprep.subr.bf16.mxu0 0
      %375 = vmatpush2.bf16.msra.mxu0 0
      %376 = vmatprep.subr.bf16.mxu0 0
      %377 = vmatpush2.bf16.msra.mxu0 0
      %378 = vmatprep.subr.bf16.mxu0 0
      %379 = vmatpush2.bf16.msra.mxu0 0
      %380 = vmatprep.subr.bf16.mxu0 0
      %381 = vmatpush2.bf16.msra.mxu0 0
      %382 = vmatprep.subr.bf16.mxu0 0
      %383 = vmatpush2.bf16.msra.mxu0 0
      %384 = vmatprep.mubr.bf16.mxu0 0
      %385 = vmatmul.mubr.bf16.gmra.mxu0 %v344
      %v386 = vpop.f32.mrf.mxu0
      %v387 = vadd.f32 0.0, %v386
      %v388 = vpop.f32.mrf.mxu0
      %v389 = vadd.f32 0.0, %v388
      %v390 = vpop.f32.mrf.mxu0
      %v391 = vpop.f32.mrf.mxu0
      %392 = vdwg.mxu0
      %v393 = vadd.f32 %v316, %v387
      %v394 = vadd.f32 %v318, %v389
      %395 = vrot.lane.b32.xlu0 %v172, 1
      %v396 = vpop.permute.xlu0 %395
      %397 = vrot.lane.b32.xlu0 %v173, 1
      %v398 = vpop.permute.xlu0 %397
      %vm399 = vcmp.lt.s32.totalorder %v175, 1
      %v400 = vsel %vm399, %v396, %v398
      %v401 = vsel %vm399, %v398, %v396
      %v402 = vsel %vm190, 1, 0
      %v403 = vsel %vm191, 1, 0
      %vm404 = vcmp.eq.s32.totalorder %v402, 1
      %vm405 = vcmp.eq.s32.totalorder %v403, 1
      %v406 = vsel %vm404, %v401, 0.0
      %v407 = vsel %vm405, %v400, 0.0
      %s408 = scalar_lea.vmem %s1, 6
      %v409 = vld [vmem:[%s408] sm:$0x3]
      %v410 = vpack.c.bf16 %v406, %v406
      %v411 = vpack.c.bf16 %v407, %v407
      %v413 = vsel %vm220, %v409, 0
      %v416 = vsel %vm224, %v410, 0
      %v419 = vsel %vm224, %v411, 0
      %421 = vmatprep.subr.bf16.mxu0 0
      %422 = vmatpush1.bf16.msra.mxu0 0
      %423 = vmatprep.subr.bf16.mxu0 0
      %424 = vmatpush1.bf16.msra.mxu0 0
      %425 = vmatprep.subr.bf16.mxu0 0
      %426 = vmatpush1.bf16.msra.mxu0 0
      %427 = vmatprep.subr.bf16.mxu0 0
      %428 = vmatpush1.bf16.msra.mxu0 0
      %429 = vmatprep.subr.bf16.mxu0 0
      %430 = vmatpush1.bf16.msra.mxu0 0
      %431 = vmatprep.subr.bf16.mxu0 0
      %432 = vmatpush1.bf16.msra.mxu0 0
      %433 = vmatprep.subr.bf16.mxu0 0
      %434 = vmatpush1.bf16.msra.mxu0 0
      %435 = vmatprep.subr.bf16.mxu0 %v419
      %436 = vmatpush1.bf16.msra.mxu0 %v416
      %437 = vmatprep.subr.bf16.mxu0 0
      %438 = vmatpush2.bf16.msra.mxu0 0
      %439 = vmatprep.subr.bf16.mxu0 0
      %440 = vmatpush2.bf16.msra.mxu0 0
      %441 = vmatprep.subr.bf16.mxu0 0
      %442 = vmatpush2.bf16.msra.mxu0 0
      %443 = vmatprep.subr.bf16.mxu0 0
      %444 = vmatpush2.bf16.msra.mxu0 0
      %445 = vmatprep.subr.bf16.mxu0 0
      %446 = vmatpush2.bf16.msra.mxu0 0
      %447 = vmatprep.subr.bf16.mxu0 0
      %448 = vmatpush2.bf16.msra.mxu0 0
      %449 = vmatprep.subr.bf16.mxu0 0
      %450 = vmatpush2.bf16.msra.mxu0 0
      %451 = vmatprep.subr.bf16.mxu0 0
      %452 = vmatpush2.bf16.msra.mxu0 0
      %453 = vmatprep.mubr.bf16.mxu0 0
      %454 = vmatmul.mubr.bf16.gmra.mxu0 %v413
      %v455 = vpop.f32.mrf.mxu0
      %v456 = vadd.f32 0.0, %v455
      %v457 = vpop.f32.mrf.mxu0
      %v458 = vadd.f32 0.0, %v457
      %v459 = vpop.f32.mrf.mxu0
      %v460 = vpop.f32.mrf.mxu0
      %461 = vdwg.mxu0
      %v462 = vadd.f32 %v393, %v456
      %v463 = vadd.f32 %v394, %v458
      %s464 = scalar_lea.vmem %s1, 8
      %v465 = vld [vmem:[%s464] sm:$0x3]
      %v466 = vpack.c.bf16 %v172, %v172
      %v467 = vpack.c.bf16 %v173, %v173
      %v469 = vsel %vm220, %v465, 0
      %v472 = vsel %vm224, %v466, 0
      %v475 = vsel %vm224, %v467, 0
      %477 = vmatprep.subr.bf16.mxu0 0
      %478 = vmatpush1.bf16.msra.mxu0 0
      %479 = vmatprep.subr.bf16.mxu0 0
      %480 = vmatpush1.bf16.msra.mxu0 0
      %481 = vmatprep.subr.bf16.mxu0 0
      %482 = vmatpush1.bf16.msra.mxu0 0
      %483 = vmatprep.subr.bf16.mxu0 0
      %484 = vmatpush1.bf16.msra.mxu0 0
      %485 = vmatprep.subr.bf16.mxu0 0
      %486 = vmatpush1.bf16.msra.mxu0 0
      %487 = vmatprep.subr.bf16.mxu0 0
      %488 = vmatpush1.bf16.msra.mxu0 0
      %489 = vmatprep.subr.bf16.mxu0 0
      %490 = vmatpush1.bf16.msra.mxu0 0
      %491 = vmatprep.subr.bf16.mxu0 %v475
      %492 = vmatpush1.bf16.msra.mxu0 %v472
      %493 = vmatprep.subr.bf16.mxu0 0
      %494 = vmatpush2.bf16.msra.mxu0 0
      %495 = vmatprep.subr.bf16.mxu0 0
      %496 = vmatpush2.bf16.msra.mxu0 0
      %497 = vmatprep.subr.bf16.mxu0 0
      %498 = vmatpush2.bf16.msra.mxu0 0
      %499 = vmatprep.subr.bf16.mxu0 0
      %500 = vmatpush2.bf16.msra.mxu0 0
      %501 = vmatprep.subr.bf16.mxu0 0
      %502 = vmatpush2.bf16.msra.mxu0 0
      %503 = vmatprep.subr.bf16.mxu0 0
      %504 = vmatpush2.bf16.msra.mxu0 0
      %505 = vmatprep.subr.bf16.mxu0 0
      %506 = vmatpush2.bf16.msra.mxu0 0
      %507 = vmatprep.subr.bf16.mxu0 0
      %508 = vmatpush2.bf16.msra.mxu0 0
      %509 = vmatprep.mubr.bf16.mxu0 0
      %510 = vmatmul.mubr.bf16.gmra.mxu0 %v469
      %v511 = vpop.f32.mrf.mxu0
      %v512 = vadd.f32 0.0, %v511
      %v513 = vpop.f32.mrf.mxu0
      %v514 = vadd.f32 0.0, %v513
      %v515 = vpop.f32.mrf.mxu0
      %v516 = vpop.f32.mrf.mxu0
      %517 = vdwg.mxu0
      %v518 = vadd.f32 %v462, %v512
      %v519 = vadd.f32 %v463, %v514
      %520 = vrot.lane.b32.xlu0 %v172, 127
      %v521 = vpop.permute.xlu0 %520
      %522 = vrot.lane.b32.xlu0 %v173, 127
      %v523 = vpop.permute.xlu0 %522
      %vm524 = vcmp.lt.s32.totalorder %v175, 127
      %v525 = vsel %vm524, %v521, %v523
      %v526 = vsel %vm524, %v523, %v521
      %v527 = vsel %vm329, 1, 0
      %v528 = vsel %vm330, 1, 0
      %vm529 = vcmp.eq.s32.totalorder %v527, 1
      %vm530 = vcmp.eq.s32.totalorder %v528, 1
      %v531 = vsel %vm529, %v525, 0.0
      %v532 = vsel %vm530, %v526, 0.0
      %s533 = scalar_lea.vmem %s1, 10
      %v534 = vld [vmem:[%s533] sm:$0x3]
      %v535 = vpack.c.bf16 %v531, %v531
      %v536 = vpack.c.bf16 %v532, %v532
      %v538 = vsel %vm220, %v534, 0
      %v541 = vsel %vm224, %v535, 0
      %v544 = vsel %vm224, %v536, 0
      %546 = vmatprep.subr.bf16.mxu0 0
      %547 = vmatpush1.bf16.msra.mxu0 0
      %548 = vmatprep.subr.bf16.mxu0 0
      %549 = vmatpush1.bf16.msra.mxu0 0
      %550 = vmatprep.subr.bf16.mxu0 0
      %551 = vmatpush1.bf16.msra.mxu0 0
      %552 = vmatprep.subr.bf16.mxu0 0
      %553 = vmatpush1.bf16.msra.mxu0 0
      %554 = vmatprep.subr.bf16.mxu0 0
      %555 = vmatpush1.bf16.msra.mxu0 0
      %556 = vmatprep.subr.bf16.mxu0 0
      %557 = vmatpush1.bf16.msra.mxu0 0
      %558 = vmatprep.subr.bf16.mxu0 0
      %559 = vmatpush1.bf16.msra.mxu0 0
      %560 = vmatprep.subr.bf16.mxu0 %v544
      %561 = vmatpush1.bf16.msra.mxu0 %v541
      %562 = vmatprep.subr.bf16.mxu0 0
      %563 = vmatpush2.bf16.msra.mxu0 0
      %564 = vmatprep.subr.bf16.mxu0 0
      %565 = vmatpush2.bf16.msra.mxu0 0
      %566 = vmatprep.subr.bf16.mxu0 0
      %567 = vmatpush2.bf16.msra.mxu0 0
      %568 = vmatprep.subr.bf16.mxu0 0
      %569 = vmatpush2.bf16.msra.mxu0 0
      %570 = vmatprep.subr.bf16.mxu0 0
      %571 = vmatpush2.bf16.msra.mxu0 0
      %572 = vmatprep.subr.bf16.mxu0 0
      %573 = vmatpush2.bf16.msra.mxu0 0
      %574 = vmatprep.subr.bf16.mxu0 0
      %575 = vmatpush2.bf16.msra.mxu0 0
      %576 = vmatprep.subr.bf16.mxu0 0
      %577 = vmatpush2.bf16.msra.mxu0 0
      %578 = vmatprep.mubr.bf16.mxu0 0
      %579 = vmatmul.mubr.bf16.gmra.mxu0 %v538
      %v580 = vpop.f32.mrf.mxu0
      %v581 = vadd.f32 0.0, %v580
      %v582 = vpop.f32.mrf.mxu0
      %v583 = vadd.f32 0.0, %v582
      %v584 = vpop.f32.mrf.mxu0
      %v585 = vpop.f32.mrf.mxu0
      %586 = vdwg.mxu0
      %v587 = vadd.f32 %v518, %v581
      %v588 = vadd.f32 %v519, %v583
      %589 = vrot.lane.b32.xlu0 %v172, 113
      %v590 = vpop.permute.xlu0 %589
      %591 = vrot.lane.b32.xlu0 %v173, 113
      %v592 = vpop.permute.xlu0 %591
      %vm593 = vcmp.lt.s32.totalorder %v175, 113
      %v594 = vsel %vm593, %v590, %v592
      %v595 = vsel %vm593, %v592, %v590
      %vm596 = vcmp.lt.s32.totalorder %v177, 15
      %vm597 = vcmp.lt.s32.totalorder %v178, 15
      %vm598 = vmand %vm596, %vm190
      %vm599 = vmand %vm597, %vm191
      %v600 = vsel %vm598, 1, 0
      %v601 = vsel %vm599, 1, 0
      %vm602 = vcmp.eq.s32.totalorder %v600, 1
      %vm603 = vcmp.eq.s32.totalorder %v601, 1
      %v604 = vsel %vm602, %v594, 0.0
      %v605 = vsel %vm603, %v595, 0.0
      %s606 = scalar_lea.vmem %s1, 12
      %v607 = vld [vmem:[%s606] sm:$0x3]
      %v608 = vpack.c.bf16 %v604, %v604
      %v609 = vpack.c.bf16 %v605, %v605
      %v611 = vsel %vm220, %v607, 0
      %v614 = vsel %vm224, %v608, 0
      %v617 = vsel %vm224, %v609, 0
      %619 = vmatprep.subr.bf16.mxu0 0
      %620 = vmatpush1.bf16.msra.mxu0 0
      %621 = vmatprep.subr.bf16.mxu0 0
      %622 = vmatpush1.bf16.msra.mxu0 0
      %623 = vmatprep.subr.bf16.mxu0 0
      %624 = vmatpush1.bf16.msra.mxu0 0
      %625 = vmatprep.subr.bf16.mxu0 0
      %626 = vmatpush1.bf16.msra.mxu0 0
      %627 = vmatprep.subr.bf16.mxu0 0
      %628 = vmatpush1.bf16.msra.mxu0 0
      %629 = vmatprep.subr.bf16.mxu0 0
      %630 = vmatpush1.bf16.msra.mxu0 0
      %631 = vmatprep.subr.bf16.mxu0 0
      %632 = vmatpush1.bf16.msra.mxu0 0
      %633 = vmatprep.subr.bf16.mxu0 %v617
      %634 = vmatpush1.bf16.msra.mxu0 %v614
      %635 = vmatprep.subr.bf16.mxu0 0
      %636 = vmatpush2.bf16.msra.mxu0 0
      %637 = vmatprep.subr.bf16.mxu0 0
      %638 = vmatpush2.bf16.msra.mxu0 0
      %639 = vmatprep.subr.bf16.mxu0 0
      %640 = vmatpush2.bf16.msra.mxu0 0
      %641 = vmatprep.subr.bf16.mxu0 0
      %642 = vmatpush2.bf16.msra.mxu0 0
      %643 = vmatprep.subr.bf16.mxu0 0
      %644 = vmatpush2.bf16.msra.mxu0 0
      %645 = vmatprep.subr.bf16.mxu0 0
      %646 = vmatpush2.bf16.msra.mxu0 0
      %647 = vmatprep.subr.bf16.mxu0 0
      %648 = vmatpush2.bf16.msra.mxu0 0
      %649 = vmatprep.subr.bf16.mxu0 0
      %650 = vmatpush2.bf16.msra.mxu0 0
      %651 = vmatprep.mubr.bf16.mxu0 0
      %652 = vmatmul.mubr.bf16.gmra.mxu0 %v611
      %v653 = vpop.f32.mrf.mxu0
      %v654 = vadd.f32 0.0, %v653
      %v655 = vpop.f32.mrf.mxu0
      %v656 = vadd.f32 0.0, %v655
      %v657 = vpop.f32.mrf.mxu0
      %v658 = vpop.f32.mrf.mxu0
      %659 = vdwg.mxu0
      %v660 = vadd.f32 %v587, %v654
      %v661 = vadd.f32 %v588, %v656
      %662 = vrot.lane.b32.xlu0 %v172, 112
      %v663 = vpop.permute.xlu0 %662
      %664 = vrot.lane.b32.xlu0 %v173, 112
      %v665 = vpop.permute.xlu0 %664
      %vm666 = vcmp.lt.s32.totalorder %v175, 112
      %v667 = vsel %vm666, %v663, %v665
      %v668 = vsel %vm666, %v665, %v663
      %v669 = vsel %vm596, 1, 0
      %v670 = vsel %vm597, 1, 0
      %vm671 = vcmp.eq.s32.totalorder %v669, 1
      %vm672 = vcmp.eq.s32.totalorder %v670, 1
      %v673 = vsel %vm671, %v667, 0.0
      %v674 = vsel %vm672, %v668, 0.0
      %s675 = scalar_lea.vmem %s1, 14
      %v676 = vld [vmem:[%s675] sm:$0x3]
      %v677 = vpack.c.bf16 %v673, %v673
      %v678 = vpack.c.bf16 %v674, %v674
      %v680 = vsel %vm220, %v676, 0
      %v683 = vsel %vm224, %v677, 0
      %v686 = vsel %vm224, %v678, 0
      %688 = vmatprep.subr.bf16.mxu0 0
      %689 = vmatpush1.bf16.msra.mxu0 0
      %690 = vmatprep.subr.bf16.mxu0 0
      %691 = vmatpush1.bf16.msra.mxu0 0
      %692 = vmatprep.subr.bf16.mxu0 0
      %693 = vmatpush1.bf16.msra.mxu0 0
      %694 = vmatprep.subr.bf16.mxu0 0
      %695 = vmatpush1.bf16.msra.mxu0 0
      %696 = vmatprep.subr.bf16.mxu0 0
      %697 = vmatpush1.bf16.msra.mxu0 0
      %698 = vmatprep.subr.bf16.mxu0 0
      %699 = vmatpush1.bf16.msra.mxu0 0
      %700 = vmatprep.subr.bf16.mxu0 0
      %701 = vmatpush1.bf16.msra.mxu0 0
      %702 = vmatprep.subr.bf16.mxu0 %v686
      %703 = vmatpush1.bf16.msra.mxu0 %v683
      %704 = vmatprep.subr.bf16.mxu0 0
      %705 = vmatpush2.bf16.msra.mxu0 0
      %706 = vmatprep.subr.bf16.mxu0 0
      %707 = vmatpush2.bf16.msra.mxu0 0
      %708 = vmatprep.subr.bf16.mxu0 0
      %709 = vmatpush2.bf16.msra.mxu0 0
      %710 = vmatprep.subr.bf16.mxu0 0
      %711 = vmatpush2.bf16.msra.mxu0 0
      %712 = vmatprep.subr.bf16.mxu0 0
      %713 = vmatpush2.bf16.msra.mxu0 0
      %714 = vmatprep.subr.bf16.mxu0 0
      %715 = vmatpush2.bf16.msra.mxu0 0
      %716 = vmatprep.subr.bf16.mxu0 0
      %717 = vmatpush2.bf16.msra.mxu0 0
      %718 = vmatprep.subr.bf16.mxu0 0
      %719 = vmatpush2.bf16.msra.mxu0 0
      %720 = vmatprep.mubr.bf16.mxu0 0
      %721 = vmatmul.mubr.bf16.gmra.mxu0 %v680
      %v722 = vpop.f32.mrf.mxu0
      %v723 = vadd.f32 0.0, %v722
      %v724 = vpop.f32.mrf.mxu0
      %v725 = vadd.f32 0.0, %v724
      %v726 = vpop.f32.mrf.mxu0
      %v727 = vpop.f32.mrf.mxu0
      %728 = vdwg.mxu0
      %v729 = vadd.f32 %v660, %v723
      %v730 = vadd.f32 %v661, %v725
      %731 = vrot.lane.b32.xlu0 %v172, 111
      %v732 = vpop.permute.xlu0 %731
      %733 = vrot.lane.b32.xlu0 %v173, 111
      %v734 = vpop.permute.xlu0 %733
      %vm735 = vcmp.lt.s32.totalorder %v175, 111
      %v736 = vsel %vm735, %v732, %v734
      %v737 = vsel %vm735, %v734, %v732
      %vm738 = vmand %vm596, %vm329
      %vm739 = vmand %vm597, %vm330
      %v740 = vsel %vm738, 1, 0
      %v741 = vsel %vm739, 1, 0
      %vm742 = vcmp.eq.s32.totalorder %v740, 1
      %vm743 = vcmp.eq.s32.totalorder %v741, 1
      %v744 = vsel %vm742, %v736, 0.0
      %v745 = vsel %vm743, %v737, 0.0
      %s746 = scalar_lea.vmem %s1, 16
      %v747 = vld [vmem:[%s746] sm:$0x3]
      %v748 = vpack.c.bf16 %v744, %v744
      %v749 = vpack.c.bf16 %v745, %v745
      %v751 = vsel %vm220, %v747, 0
      %v754 = vsel %vm224, %v748, 0
      %v757 = vsel %vm224, %v749, 0
      %759 = vmatprep.subr.bf16.mxu0 0
      %760 = vmatpush1.bf16.msra.mxu0 0
      %761 = vmatprep.subr.bf16.mxu0 0
      %762 = vmatpush1.bf16.msra.mxu0 0
      %763 = vmatprep.subr.bf16.mxu0 0
      %764 = vmatpush1.bf16.msra.mxu0 0
      %765 = vmatprep.subr.bf16.mxu0 0
      %766 = vmatpush1.bf16.msra.mxu0 0
      %767 = vmatprep.subr.bf16.mxu0 0
      %768 = vmatpush1.bf16.msra.mxu0 0
      %769 = vmatprep.subr.bf16.mxu0 0
      %770 = vmatpush1.bf16.msra.mxu0 0
      %771 = vmatprep.subr.bf16.mxu0 0
      %772 = vmatpush1.bf16.msra.mxu0 0
      %773 = vmatprep.subr.bf16.mxu0 %v757
      %774 = vmatpush1.bf16.msra.mxu0 %v754
      %775 = vmatprep.subr.bf16.mxu0 0
      %776 = vmatpush2.bf16.msra.mxu0 0
      %777 = vmatprep.subr.bf16.mxu0 0
      %778 = vmatpush2.bf16.msra.mxu0 0
      %779 = vmatprep.subr.bf16.mxu0 0
      %780 = vmatpush2.bf16.msra.mxu0 0
      %781 = vmatprep.subr.bf16.mxu0 0
      %782 = vmatpush2.bf16.msra.mxu0 0
      %783 = vmatprep.subr.bf16.mxu0 0
      %784 = vmatpush2.bf16.msra.mxu0 0
      %785 = vmatprep.subr.bf16.mxu0 0
      %786 = vmatpush2.bf16.msra.mxu0 0
      %787 = vmatprep.subr.bf16.mxu0 0
      %788 = vmatpush2.bf16.msra.mxu0 0
      %789 = vmatprep.subr.bf16.mxu0 0
      %790 = vmatpush2.bf16.msra.mxu0 0
      %791 = vmatprep.mubr.bf16.mxu0 0
      %792 = vmatmul.mubr.bf16.gmra.mxu0 %v751
      %v793 = vpop.f32.mrf.mxu0
      %v794 = vadd.f32 0.0, %v793
      %v795 = vpop.f32.mrf.mxu0
      %v796 = vadd.f32 0.0, %v795
      %v797 = vpop.f32.mrf.mxu0
      %v798 = vpop.f32.mrf.mxu0
      %799 = vdwg.mxu0
      %v800 = vadd.f32 %v729, %v794
      %v801 = vadd.f32 %v730, %v796
      %v802 = vld [vmem:[%s2] sm:$0xf]
      %804 = vset.pattern.permute.xlu0 0
      %805 = vperm.xlu0 %804, %v802
      %v806 = vpop.permute.xlu0 %805
      %v808 = vadd.f32 %v800, %v806
      %v809 = vadd.f32 %v801, %v806
      %v812 = vcombine.low %v808, %v809
      %814 = vst [vmem:[%s170] sm:$0xff] %v812
      %p815 = scmp.lt.s32.totalorder %s14, 1
      %s816 = scalar_select %p815, %s14, 1
      %s817 = smul.addr %s816, 2
      %s818 = smul.addr %s817, 4
      %s819 = scalar_lea.vmem %s3, %s818
      // Predicated region
      $region33: #{_lambda_.9} parent=31 // pred_check
        %p820 = pneg %p100
      $region34: #{_lambda_.9} parent=31 // pred_check_branch
        %822 = sbr.rel (%p820) target = $region36
      $region35: #{_lambda_.9} parent=31 // pred_region
        _
      $region36: #{_lambda_.9} parent=31 // pred_fallthru
        _
    $region32: #{_lambda_.9} parent=5 // pred_fallthru
      _
    %p823 = scmp.le.s32.totalorder 2, %s9
    // Predicated region
    $region37: #{_lambda_.9} parent=5 // pred_check
      %p824 = pneg %p823
    $region38: #{_lambda_.9} parent=5 // pred_check_branch
      %826 = sbr.rel (%p824) target = $region40
    $region39: #{_lambda_.9} parent=5 // pred_region
      %s827 = ssub.s32 %s9, 2
      // Predicated region
      $region41: #{_lambda_.9} parent=39 // pred_check
        %p828 = pneg %p106
      $region42: #{_lambda_.9} parent=39 // pred_check_branch
        %830 = sbr.rel (%p828) target = $region44
      $region43: #{_lambda_.9} parent=39 // pred_region
        %p831 = scmp.lt.s32.totalorder %s15, 1
        %s832 = scalar_select %p831, %s15, 1
        %s833 = smul.addr %s832, 2
        %s834 = smul.addr %s833, 4
        %s835 = scalar_lea.vmem %s3, %s834
      $region44: #{_lambda_.9} parent=39 // pred_fallthru
        _
    $region40: #{_lambda_.9} parent=5 // pred_fallthru
      _
  $region6: #{_lambda_.9} parent=0 // loop_footer
    %s13 = sadd.s32 1, %s9
  $region7: #{_lambda_.9} parent=0 // loop_footer_branch
    %8 = sbr.rel target = $region3
  $region8: #{_lambda_.9} parent=0 // loop_exit
    _

// kernel: _lambda_.11
$region0: #{_lambda_.11}
  #allocation0 [shape = 'u32[]', space=smem, size = 0x4, offset = 0x4, fixed_abs, tag = 'smem constant byte address 0x4 - core index']
  #allocation1 [shape = 'u32[144,128]{1,0:T(1,128)}', space=vmem, size = 0x12000, scoped, tag = 'internal scratch']
  %s0 = inlined_call_operand.vmem [shape: f32[2,8,256], index: 0, kind: input, shape index: {}]
  %s1 = inlined_call_operand.vmem [shape: f32[2,4,256], index: 1, kind: input, shape index: {}]
  %s2 = inlined_call_operand.vmem [shape: bf16[4,8], index: 2, kind: input, shape index: {}]
  %s3 = inlined_call_operand.vmem [shape: f32[4,1], index: 3, kind: input, shape index: {}]
  %s4 = inlined_call_operand.vmem [shape: f32[2,4,256], index: 4, kind: output, shape index: {}]
  %s5 = sld [smem:[#allocation0]]
  $region49: #{_lambda_.11} parent=0
    _
  %s7 = ssub.s32 1, %s5
  %s8 = scalar_select 0, %s7, %s5
  loop: start=0, step=1, limit=4
  $region2: #{_lambda_.11} parent=0 // loop_pre_header
    _
  $region3: #{_lambda_.11} parent=0 // loop_header
    %s10 = sphi 0, %s14
    %p11 = scmp.ge.s32.totalorder %s10, 4
    %s20 = sphi 0, %s22
    %s23 = sphi 0, %s20
    %s24 = sphi 0, %s23
    %s40 = sphi 0, %s24
    %s46 = sphi 0, %s48
    %s49 = sphi 0, %s46
    %s50 = sphi 0, %s49
    %s66 = sphi 0, %s50
    %s70 = sphi 0, %s70
    %s72 = sphi 0, %s70
    %s73 = sphi 0, %s72
    %s87 = sphi 0, %s73
    %s91 = sphi 0, %s91
    %s93 = sphi 0, %s91
    %s94 = sphi 0, %s93
    %s108 = sphi 0, %s94
    %s114 = sphi 0, %s116
    %s117 = sphi 0, %s114
    %s118 = sphi 0, %s117
    %s134 = sphi 0, %s118
  $region4: #{_lambda_.11} parent=0 // loop_header_branch
    %13 = sbr.rel (%p11) target = $region8
  $region5: #{_lambda_.11} parent=0 // loop_body
    %s15 = ssub.s32 %s10, 1
    %s16 = ssub.s32 %s10, 2
    %s17 = sadd.s32 %s10, 1
    %s18 = ssub.s32 %s10, %s17
    %p19 = scmp.eq.s32.totalorder %s18, 0
    %s21 = sadd.s32 %s20, 1
    %s22 = scalar_select %p19, %s20, %s21
    %p25 = pneg %p19
    %p26 = scmp.eq.s32.totalorder %s10, 1
    %p27 = por %p25, %p26
    %p28 = scmp.ne.s32.totalorder %s20, %s23
    %p29 = scmp.eq.s32.totalorder %s10, 0
    %p30 = por %p28, %p29
    %p31 = scmp.ne.s32.totalorder %s20, %s23
    %p32 = scmp.eq.s32.totalorder %s15, 1
    %p33 = por %p31, %p32
    %p34 = scmp.ne.s32.totalorder %s23, %s24
    %p35 = scmp.eq.s32.totalorder %s15, 0
    %p36 = por %p34, %p35
    %p37 = scmp.ne.s32.totalorder %s23, %s24
    %p38 = scmp.eq.s32.totalorder %s16, 1
    %p39 = por %p37, %p38
    %p41 = scmp.ne.s32.totalorder %s24, %s40
    %p42 = scmp.eq.s32.totalorder %s16, 0
    %p43 = por %p41, %p42
    %s44 = ssub.s32 %s10, %s17
    %p45 = scmp.eq.s32.totalorder %s44, 0
    %s47 = sadd.s32 %s46, 1
    %s48 = scalar_select %p45, %s46, %s47
    %p51 = pneg %p45
    %p52 = scmp.eq.s32.totalorder %s10, 1
    %p53 = por %p51, %p52
    %p54 = scmp.ne.s32.totalorder %s46, %s49
    %p55 = scmp.eq.s32.totalorder %s10, 0
    %p56 = por %p54, %p55
    %p57 = scmp.ne.s32.totalorder %s46, %s49
    %p58 = scmp.eq.s32.totalorder %s15, 1
    %p59 = por %p57, %p58
    %p60 = scmp.ne.s32.totalorder %s49, %s50
    %p61 = scmp.eq.s32.totalorder %s15, 0
    %p62 = por %p60, %p61
    %p63 = scmp.ne.s32.totalorder %s49, %s50
    %p64 = scmp.eq.s32.totalorder %s16, 1
    %p65 = por %p63, %p64
    %p67 = scmp.ne.s32.totalorder %s50, %s66
    %p68 = scmp.eq.s32.totalorder %s16, 0
    %p69 = por %p67, %p68
    %s71 = sadd.s32 %s70, 1
    %p74 = scmp.eq.s32.totalorder %s10, 1
    %p75 = scmp.ne.s32.totalorder %s70, %s72
    %p76 = scmp.eq.s32.totalorder %s10, 0
    %p77 = por %p75, %p76
    %p78 = scmp.ne.s32.totalorder %s70, %s72
    %p79 = scmp.eq.s32.totalorder %s15, 1
    %p80 = por %p78, %p79
    %p81 = scmp.ne.s32.totalorder %s72, %s73
    %p82 = scmp.eq.s32.totalorder %s15, 0
    %p83 = por %p81, %p82
    %p84 = scmp.ne.s32.totalorder %s72, %s73
    %p85 = scmp.eq.s32.totalorder %s16, 1
    %p86 = por %p84, %p85
    %p88 = scmp.ne.s32.totalorder %s73, %s87
    %p89 = scmp.eq.s32.totalorder %s16, 0
    %p90 = por %p88, %p89
    %s92 = sadd.s32 %s91, 1
    %p95 = scmp.eq.s32.totalorder %s10, 1
    %p96 = scmp.ne.s32.totalorder %s91, %s93
    %p97 = scmp.eq.s32.totalorder %s10, 0
    %p98 = por %p96, %p97
    %p99 = scmp.ne.s32.totalorder %s91, %s93
    %p100 = scmp.eq.s32.totalorder %s15, 1
    %p101 = por %p99, %p100
    %p102 = scmp.ne.s32.totalorder %s93, %s94
    %p103 = scmp.eq.s32.totalorder %s15, 0
    %p104 = por %p102, %p103
    %p105 = scmp.ne.s32.totalorder %s93, %s94
    %p106 = scmp.eq.s32.totalorder %s16, 1
    %p107 = por %p105, %p106
    %p109 = scmp.ne.s32.totalorder %s94, %s108
    %p110 = scmp.eq.s32.totalorder %s16, 0
    %p111 = por %p109, %p110
    %s112 = ssub.s32 %s10, %s17
    %p113 = scmp.eq.s32.totalorder %s112, 0
    %s115 = sadd.s32 %s114, 1
    %s116 = scalar_select %p113, %s114, %s115
    %p119 = pneg %p113
    %p120 = scmp.eq.s32.totalorder %s10, 1
    %p121 = por %p119, %p120
    %p122 = scmp.ne.s32.totalorder %s114, %s117
    %p123 = scmp.eq.s32.totalorder %s10, 0
    %p124 = por %p122, %p123
    %p125 = scmp.ne.s32.totalorder %s114, %s117
    %p126 = scmp.eq.s32.totalorder %s15, 1
    %p127 = por %p125, %p126
    %p128 = scmp.ne.s32.totalorder %s117, %s118
    %p129 = scmp.eq.s32.totalorder %s15, 0
    %p130 = por %p128, %p129
    %p131 = scmp.ne.s32.totalorder %s117, %s118
    %p132 = scmp.eq.s32.totalorder %s16, 1
    %p133 = por %p131, %p132
    %p135 = scmp.ne.s32.totalorder %s118, %s134
    %p136 = scmp.eq.s32.totalorder %s16, 0
    %p137 = por %p135, %p136
    %p138 = scmp.le.s32.totalorder 1, %s10
    %p139 = scmp.lt.s32.totalorder %s10, 3
    %p140 = pnand %p138, %p139
    %p141 = pneg %p140
    // Predicated region
    $region9: #{_lambda_.11} parent=5 // pred_check
      _
    $region10: #{_lambda_.11} parent=5 // pred_check_branch
      %143 = sbr.rel (%p140) target = $region12
    $region11: #{_lambda_.11} parent=5 // pred_region
      %s144 = ssub.s32 %s10, 1
      // Predicated region
      $region13: #{_lambda_.11} parent=11 // pred_check
        %p145 = pneg %p83
      $region14: #{_lambda_.11} parent=11 // pred_check_branch
        %147 = sbr.rel (%p145) target = $region16
      $region15: #{_lambda_.11} parent=11 // pred_region
        _
      $region16: #{_lambda_.11} parent=11 // pred_fallthru
        _
      // Predicated region
      $region17: #{_lambda_.11} parent=11 // pred_check
        %p148 = pneg %p104
      $region18: #{_lambda_.11} parent=11 // pred_check_branch
        %150 = sbr.rel (%p148) target = $region20
      $region19: #{_lambda_.11} parent=11 // pred_region
        _
      $region20: #{_lambda_.11} parent=11 // pred_fallthru
        _
    $region12: #{_lambda_.11} parent=5 // pred_fallthru
      _
    %p151 = scmp.lt.s32.totalorder %s10, 2
    // Predicated region
    $region21: #{_lambda_.11} parent=5 // pred_check
      %p152 = pneg %p151
    $region22: #{_lambda_.11} parent=5 // pred_check_branch
      %154 = sbr.rel (%p152) target = $region24
    $region23: #{_lambda_.11} parent=5 // pred_region
      // Predicated region
      $region25: #{_lambda_.11} parent=23 // pred_check
        %p155 = pneg %p30
      $region26: #{_lambda_.11} parent=23 // pred_check_branch
        %157 = sbr.rel (%p155) target = $region28
      $region27: #{_lambda_.11} parent=23 // pred_region
        %p158 = scmp.lt.s32.totalorder %s10, 1
        %s159 = scalar_select %p158, %s10, 1
        %s160 = smul.addr %s159, 2
        %s161 = smul.addr %s160, 8
        %s162 = scalar_lea.vmem %s0, %s161
      $region28: #{_lambda_.11} parent=23 // pred_fallthru
        _
      // Predicated region
      $region29: #{_lambda_.11} parent=23 // pred_check
        %p163 = pneg %p56
      $region30: #{_lambda_.11} parent=23 // pred_check_branch
        %165 = sbr.rel (%p163) target = $region32
      $region31: #{_lambda_.11} parent=23 // pred_region
        %p166 = scmp.lt.s32.totalorder %s10, 1
        %s167 = scalar_select %p166, %s10, 1
        %s168 = smul.addr %s167, 2
        %s169 = smul.addr %s168, 4
        %s170 = scalar_lea.vmem %s1, %s169
      $region32: #{_lambda_.11} parent=23 // pred_fallthru
        _
    $region24: #{_lambda_.11} parent=5 // pred_fallthru
      _
    %p171 = scmp.le.s32.totalorder 1, %s10
    %p172 = scmp.lt.s32.totalorder %s10, 3
    %p173 = pnand %p171, %p172
    %p174 = pneg %p173
    // Predicated region
    $region33: #{_lambda_.11} parent=5 // pred_check
      _
    $region34: #{_lambda_.11} parent=5 // pred_check_branch
      %176 = sbr.rel (%p173) target = $region36
    $region35: #{_lambda_.11} parent=5 // pred_region
      %s177 = ssub.s32 %s10, 1
      %p178 = scmp.lt.s32.totalorder %s15, 1
      %s179 = scalar_select %p178, %s15, 1
      %s180 = smul.addr %s179, 2
      %s181 = smul.addr %s180, 8
      %s182 = scalar_lea.vmem %s0, %s181
      %p183 = pneg %p36
      %p184 = pneg %p33
      %p185 = scmp.lt.s32.totalorder %s15, 1
      %s186 = scalar_select %p185, %s15, 1
      %s187 = smul.addr %s186, 2
      %s188 = smul.addr %s187, 4
      %s189 = scalar_lea.vmem %s1, %s188
      %p190 = pneg %p62
      %p191 = pneg %p59
      %p192 = pneg %p83
      %p193 = pneg %p80
      %p194 = pneg %p104
      %p195 = pneg %p101
      %p196 = pneg %p130
      %p197 = pneg %p127
      %p198 = scmp.lt.s32.totalorder %s15, 1
      %s199 = scalar_select %p198, %s15, 1
      %s200 = smul.addr %s199, 2
      %s201 = smul.addr %s200, 4
      %s202 = scalar_lea.vmem %s4, %s201
      %p203 = scmp.lt.s32.totalorder %s15, 1
      %s204 = scalar_select %p203, %s15, 1
      %s205 = smul.addr %s204, 2
      %s206 = smul.addr %s205, 8
      %s207 = scalar_lea.vmem %s0, %s206
      %p208 = scmp.lt.s32.totalorder %s15, 1
      %s209 = scalar_select %p208, %s15, 1
      %s210 = smul.addr %s209, 2
      %s211 = smul.addr %s210, 4
      %s212 = scalar_lea.vmem %s1, %s211
      %p213 = scmp.lt.s32.totalorder %s15, 1
      %s214 = scalar_select %p213, %s15, 1
      %s215 = smul.addr %s214, 2
      %s216 = smul.addr %s215, 4
      %s217 = scalar_lea.vmem %s4, %s216
      %v219 = vld [vmem:[%s2] sm:$0x3]
      %v220 = vld [vmem:[%s207] sm:$0xff]
      %v221 = vld [vmem:[%s207 + $0x8] sm:$0xff]
      %v222 = vpack.c.bf16 %v220, %v220
      %v223 = vpack.c.bf16 %v221, %v221
      %v224 = vld [vmem:[%s3] sm:$0xf]
      %226 = vset.pattern.permute.xlu0 0
      %227 = vperm.xlu0 %226, %v224
      %v228 = vpop.permute.xlu0 %227
      %vm230 = vcmask 64512
      %v232 = vsel %vm230, %v219, 0
      %vm234 = vcmask 1043456
      %v236 = vsel %vm234, %v222, 0
      %v239 = vsel %vm234, %v223, 0
      %241 = vmatprep.subr.bf16.mxu0 0
      %242 = vmatpush1.bf16.msra.mxu0 0
      %243 = vmatprep.subr.bf16.mxu0 0
      %244 = vmatpush1.bf16.msra.mxu0 0
      %245 = vmatprep.subr.bf16.mxu0 0
      %246 = vmatpush1.bf16.msra.mxu0 0
      %247 = vmatprep.subr.bf16.mxu0 0
      %248 = vmatpush1.bf16.msra.mxu0 0
      %249 = vmatprep.subr.bf16.mxu0 0
      %250 = vmatpush1.bf16.msra.mxu0 0
      %251 = vmatprep.subr.bf16.mxu0 0
      %252 = vmatpush1.bf16.msra.mxu0 0
      %253 = vmatprep.subr.bf16.mxu0 0
      %254 = vmatpush1.bf16.msra.mxu0 0
      %255 = vmatprep.subr.bf16.mxu0 %v239
      %256 = vmatpush1.bf16.msra.mxu0 %v236
      %257 = vmatprep.subr.bf16.mxu0 0
      %258 = vmatpush2.bf16.msra.mxu0 0
      %259 = vmatprep.subr.bf16.mxu0 0
      %260 = vmatpush2.bf16.msra.mxu0 0
      %261 = vmatprep.subr.bf16.mxu0 0
      %262 = vmatpush2.bf16.msra.mxu0 0
      %263 = vmatprep.subr.bf16.mxu0 0
      %264 = vmatpush2.bf16.msra.mxu0 0
      %265 = vmatprep.subr.bf16.mxu0 0
      %266 = vmatpush2.bf16.msra.mxu0 0
      %267 = vmatprep.subr.bf16.mxu0 0
      %268 = vmatpush2.bf16.msra.mxu0 0
      %269 = vmatprep.subr.bf16.mxu0 0
      %270 = vmatpush2.bf16.msra.mxu0 0
      %271 = vmatprep.subr.bf16.mxu0 0
      %272 = vmatpush2.bf16.msra.mxu0 0
      %273 = vmatprep.mubr.bf16.mxu0 0
      %274 = vmatmul.mubr.bf16.gmra.mxu0 %v232
      %v275 = vpop.f32.mrf.mxu0
      %v276 = vadd.f32 %v228, %v275
      %v277 = vpop.f32.mrf.mxu0
      %v278 = vadd.f32 %v228, %v277
      %v279 = vpop.f32.mrf.mxu0
      %v280 = vpop.f32.mrf.mxu0
      %281 = vdwg.mxu0
      %v282 = vld [vmem:[%s212] sm:$0xff]
      %v284 = vcombine.high %v282, %v282
      %v286 = vadd.f32 %v276, %v282
      %v287 = vadd.f32 %v278, %v284
      %v290 = vcombine.low %v286, %v287
      %292 = vst [vmem:[%s217] sm:$0xff] %v290
      %p293 = scmp.lt.s32.totalorder %s15, 1
      %s294 = scalar_select %p293, %s15, 1
      %s295 = smul.addr %s294, 2
      %s296 = smul.addr %s295, 4
      %s297 = scalar_lea.vmem %s4, %s296
      // Predicated region
      $region37: #{_lambda_.11} parent=35 // pred_check
        %p298 = pneg %p127
      $region38: #{_lambda_.11} parent=35 // pred_check_branch
        %300 = sbr.rel (%p298) target = $region40
      $region39: #{_lambda_.11} parent=35 // pred_region
        _
      $region40: #{_lambda_.11} parent=35 // pred_fallthru
        _
    $region36: #{_lambda_.11} parent=5 // pred_fallthru
      _
    %p301 = scmp.le.s32.totalorder 2, %s10
    // Predicated region
    $region41: #{_lambda_.11} parent=5 // pred_check
      %p302 = pneg %p301
    $region42: #{_lambda_.11} parent=5 // pred_check_branch
      %304 = sbr.rel (%p302) target = $region44
    $region43: #{_lambda_.11} parent=5 // pred_region
      %s305 = ssub.s32 %s10, 2
      // Predicated region
      $region45: #{_lambda_.11} parent=43 // pred_check
        %p306 = pneg %p133
      $region46: #{_lambda_.11} parent=43 // pred_check_branch
        %308 = sbr.rel (%p306) target = $region48
      $region47: #{_lambda_.11} parent=43 // pred_region
        %p309 = scmp.lt.s32.totalorder %s16, 1
        %s310 = scalar_select %p309, %s16, 1
        %s311 = smul.addr %s310, 2
        %s312 = smul.addr %s311, 4
        %s313 = scalar_lea.vmem %s4, %s312
      $region48: #{_lambda_.11} parent=43 // pred_fallthru
        _
    $region44: #{_lambda_.11} parent=5 // pred_fallthru
      _
  $region6: #{_lambda_.11} parent=0 // loop_footer
    %s14 = sadd.s32 1, %s10
  $region7: #{_lambda_.11} parent=0 // loop_footer_branch
    %9 = sbr.rel target = $region3
  $region8: #{_lambda_.11} parent=0 // loop_exit
    _

// kernel: _lambda_.10
$region0: #{_lambda_.10}
  #allocation0 [shape = 'u32[]', space=smem, size = 0x4, offset = 0x4, fixed_abs, tag = 'smem constant byte address 0x4 - core index']
  #allocation1 [shape = 'u32[144,128]{1,0:T(1,128)}', space=vmem, size = 0x12000, scoped, tag = 'internal scratch']
  %s0 = inlined_call_operand.vmem [shape: f32[2,4,256], index: 0, kind: input, shape index: {}]
  %s1 = inlined_call_operand.vmem [shape: bf16[9,8,4], index: 1, kind: input, shape index: {}]
  %s2 = inlined_call_operand.vmem [shape: f32[8,1], index: 2, kind: input, shape index: {}]
  %s3 = inlined_call_operand.vmem [shape: f32[4,1], index: 3, kind: input, shape index: {}]
  %s4 = inlined_call_operand.vmem [shape: f32[4,1], index: 4, kind: input, shape index: {}]
  %s5 = inlined_call_operand.vmem [shape: f32[2,8,256], index: 5, kind: output, shape index: {}]
  %s6 = sld [smem:[#allocation0]]
  $region53: #{_lambda_.10} parent=0
    _
  %s8 = ssub.s32 1, %s6
  %s9 = scalar_select 0, %s8, %s6
  loop: start=0, step=1, limit=4
  $region2: #{_lambda_.10} parent=0 // loop_pre_header
    _
  $region3: #{_lambda_.10} parent=0 // loop_header
    %s11 = sphi 0, %s15
    %p12 = scmp.ge.s32.totalorder %s11, 4
    %s21 = sphi 0, %s23
    %s24 = sphi 0, %s21
    %s25 = sphi 0, %s24
    %s41 = sphi 0, %s25
    %s45 = sphi 0, %s45
    %s47 = sphi 0, %s45
    %s48 = sphi 0, %s47
    %s62 = sphi 0, %s48
    %s66 = sphi 0, %s66
    %s68 = sphi 0, %s66
    %s69 = sphi 0, %s68
    %s83 = sphi 0, %s69
    %s87 = sphi 0, %s87
    %s89 = sphi 0, %s87
    %s90 = sphi 0, %s89
    %s104 = sphi 0, %s90
    %s108 = sphi 0, %s108
    %s110 = sphi 0, %s108
    %s111 = sphi 0, %s110
    %s125 = sphi 0, %s111
    %s131 = sphi 0, %s133
    %s134 = sphi 0, %s131
    %s135 = sphi 0, %s134
    %s151 = sphi 0, %s135
  $region4: #{_lambda_.10} parent=0 // loop_header_branch
    %14 = sbr.rel (%p12) target = $region8
  $region5: #{_lambda_.10} parent=0 // loop_body
    %s16 = ssub.s32 %s11, 1
    %s17 = ssub.s32 %s11, 2
    %s18 = sadd.s32 %s11, 1
    %s19 = ssub.s32 %s11, %s18
    %p20 = scmp.eq.s32.totalorder %s19, 0
    %s22 = sadd.s32 %s21, 1
    %s23 = scalar_select %p20, %s21, %s22
    %p26 = pneg %p20
    %p27 = scmp.eq.s32.totalorder %s11, 1
    %p28 = por %p26, %p27
    %p29 = scmp.ne.s32.totalorder %s21, %s24
    %p30 = scmp.eq.s32.totalorder %s11, 0
    %p31 = por %p29, %p30
    %p32 = scmp.ne.s32.totalorder %s21, %s24
    %p33 = scmp.eq.s32.totalorder %s16, 1
    %p34 = por %p32, %p33
    %p35 = scmp.ne.s32.totalorder %s24, %s25
    %p36 = scmp.eq.s32.totalorder %s16, 0
    %p37 = por %p35, %p36
    %p38 = scmp.ne.s32.totalorder %s24, %s25
    %p39 = scmp.eq.s32.totalorder %s17, 1
    %p40 = por %p38, %p39
    %p42 = scmp.ne.s32.totalorder %s25, %s41
    %p43 = scmp.eq.s32.totalorder %s17, 0
    %p44 = por %p42, %p43
    %s46 = sadd.s32 %s45, 1
    %p49 = scmp.eq.s32.totalorder %s11, 1
    %p50 = scmp.ne.s32.totalorder %s45, %s47
    %p51 = scmp.eq.s32.totalorder %s11, 0
    %p52 = por %p50, %p51
    %p53 = scmp.ne.s32.totalorder %s45, %s47
    %p54 = scmp.eq.s32.totalorder %s16, 1
    %p55 = por %p53, %p54
    %p56 = scmp.ne.s32.totalorder %s47, %s48
    %p57 = scmp.eq.s32.totalorder %s16, 0
    %p58 = por %p56, %p57
    %p59 = scmp.ne.s32.totalorder %s47, %s48
    %p60 = scmp.eq.s32.totalorder %s17, 1
    %p61 = por %p59, %p60
    %p63 = scmp.ne.s32.totalorder %s48, %s62
    %p64 = scmp.eq.s32.totalorder %s17, 0
    %p65 = por %p63, %p64
    %s67 = sadd.s32 %s66, 1
    %p70 = scmp.eq.s32.totalorder %s11, 1
    %p71 = scmp.ne.s32.totalorder %s66, %s68
    %p72 = scmp.eq.s32.totalorder %s11, 0
    %p73 = por %p71, %p72
    %p74 = scmp.ne.s32.totalorder %s66, %s68
    %p75 = scmp.eq.s32.totalorder %s16, 1
    %p76 = por %p74, %p75
    %p77 = scmp.ne.s32.totalorder %s68, %s69
    %p78 = scmp.eq.s32.totalorder %s16, 0
    %p79 = por %p77, %p78
    %p80 = scmp.ne.s32.totalorder %s68, %s69
    %p81 = scmp.eq.s32.totalorder %s17, 1
    %p82 = por %p80, %p81
    %p84 = scmp.ne.s32.totalorder %s69, %s83
    %p85 = scmp.eq.s32.totalorder %s17, 0
    %p86 = por %p84, %p85
    %s88 = sadd.s32 %s87, 1
    %p91 = scmp.eq.s32.totalorder %s11, 1
    %p92 = scmp.ne.s32.totalorder %s87, %s89
    %p93 = scmp.eq.s32.totalorder %s11, 0
    %p94 = por %p92, %p93
    %p95 = scmp.ne.s32.totalorder %s87, %s89
    %p96 = scmp.eq.s32.totalorder %s16, 1
    %p97 = por %p95, %p96
    %p98 = scmp.ne.s32.totalorder %s89, %s90
    %p99 = scmp.eq.s32.totalorder %s16, 0
    %p100 = por %p98, %p99
    %p101 = scmp.ne.s32.totalorder %s89, %s90
    %p102 = scmp.eq.s32.totalorder %s17, 1
    %p103 = por %p101, %p102
    %p105 = scmp.ne.s32.totalorder %s90, %s104
    %p106 = scmp.eq.s32.totalorder %s17, 0
    %p107 = por %p105, %p106
    %s109 = sadd.s32 %s108, 1
    %p112 = scmp.eq.s32.totalorder %s11, 1
    %p113 = scmp.ne.s32.totalorder %s108, %s110
    %p114 = scmp.eq.s32.totalorder %s11, 0
    %p115 = por %p113, %p114
    %p116 = scmp.ne.s32.totalorder %s108, %s110
    %p117 = scmp.eq.s32.totalorder %s16, 1
    %p118 = por %p116, %p117
    %p119 = scmp.ne.s32.totalorder %s110, %s111
    %p120 = scmp.eq.s32.totalorder %s16, 0
    %p121 = por %p119, %p120
    %p122 = scmp.ne.s32.totalorder %s110, %s111
    %p123 = scmp.eq.s32.totalorder %s17, 1
    %p124 = por %p122, %p123
    %p126 = scmp.ne.s32.totalorder %s111, %s125
    %p127 = scmp.eq.s32.totalorder %s17, 0
    %p128 = por %p126, %p127
    %s129 = ssub.s32 %s11, %s18
    %p130 = scmp.eq.s32.totalorder %s129, 0
    %s132 = sadd.s32 %s131, 1
    %s133 = scalar_select %p130, %s131, %s132
    %p136 = pneg %p130
    %p137 = scmp.eq.s32.totalorder %s11, 1
    %p138 = por %p136, %p137
    %p139 = scmp.ne.s32.totalorder %s131, %s134
    %p140 = scmp.eq.s32.totalorder %s11, 0
    %p141 = por %p139, %p140
    %p142 = scmp.ne.s32.totalorder %s131, %s134
    %p143 = scmp.eq.s32.totalorder %s16, 1
    %p144 = por %p142, %p143
    %p145 = scmp.ne.s32.totalorder %s134, %s135
    %p146 = scmp.eq.s32.totalorder %s16, 0
    %p147 = por %p145, %p146
    %p148 = scmp.ne.s32.totalorder %s134, %s135
    %p149 = scmp.eq.s32.totalorder %s17, 1
    %p150 = por %p148, %p149
    %p152 = scmp.ne.s32.totalorder %s135, %s151
    %p153 = scmp.eq.s32.totalorder %s17, 0
    %p154 = por %p152, %p153
    %p155 = scmp.le.s32.totalorder 1, %s11
    %p156 = scmp.lt.s32.totalorder %s11, 3
    %p157 = pnand %p155, %p156
    %p158 = pneg %p157
    // Predicated region
    $region9: #{_lambda_.10} parent=5 // pred_check
      _
    $region10: #{_lambda_.10} parent=5 // pred_check_branch
      %160 = sbr.rel (%p157) target = $region12
    $region11: #{_lambda_.10} parent=5 // pred_region
      %s161 = ssub.s32 %s11, 1
      // Predicated region
      $region13: #{_lambda_.10} parent=11 // pred_check
        %p162 = pneg %p58
      $region14: #{_lambda_.10} parent=11 // pred_check_branch
        %164 = sbr.rel (%p162) target = $region16
      $region15: #{_lambda_.10} parent=11 // pred_region
        _
      $region16: #{_lambda_.10} parent=11 // pred_fallthru
        _
      // Predicated region
      $region17: #{_lambda_.10} parent=11 // pred_check
        %p165 = pneg %p79
      $region18: #{_lambda_.10} parent=11 // pred_check_branch
        %167 = sbr.rel (%p165) target = $region20
      $region19: #{_lambda_.10} parent=11 // pred_region
        _
      $region20: #{_lambda_.10} parent=11 // pred_fallthru
        _
      // Predicated region
      $region21: #{_lambda_.10} parent=11 // pred_check
        %p168 = pneg %p100
      $region22: #{_lambda_.10} parent=11 // pred_check_branch
        %170 = sbr.rel (%p168) target = $region24
      $region23: #{_lambda_.10} parent=11 // pred_region
        _
      $region24: #{_lambda_.10} parent=11 // pred_fallthru
        _
      // Predicated region
      $region25: #{_lambda_.10} parent=11 // pred_check
        %p171 = pneg %p121
      $region26: #{_lambda_.10} parent=11 // pred_check_branch
        %173 = sbr.rel (%p171) target = $region28
      $region27: #{_lambda_.10} parent=11 // pred_region
        _
      $region28: #{_lambda_.10} parent=11 // pred_fallthru
        _
    $region12: #{_lambda_.10} parent=5 // pred_fallthru
      _
    %p174 = scmp.lt.s32.totalorder %s11, 2
    // Predicated region
    $region29: #{_lambda_.10} parent=5 // pred_check
      %p175 = pneg %p174
    $region30: #{_lambda_.10} parent=5 // pred_check_branch
      %177 = sbr.rel (%p175) target = $region32
    $region31: #{_lambda_.10} parent=5 // pred_region
      // Predicated region
      $region33: #{_lambda_.10} parent=31 // pred_check
        %p178 = pneg %p31
      $region34: #{_lambda_.10} parent=31 // pred_check_branch
        %180 = sbr.rel (%p178) target = $region36
      $region35: #{_lambda_.10} parent=31 // pred_region
        %p181 = scmp.lt.s32.totalorder %s11, 1
        %s182 = scalar_select %p181, %s11, 1
        %s183 = smul.addr %s182, 2
        %s184 = smul.addr %s183, 4
        %s185 = scalar_lea.vmem %s0, %s184
      $region36: #{_lambda_.10} parent=31 // pred_fallthru
        _
    $region32: #{_lambda_.10} parent=5 // pred_fallthru
      _
    %p186 = scmp.le.s32.totalorder 1, %s11
    %p187 = scmp.lt.s32.totalorder %s11, 3
    %p188 = pnand %p186, %p187
    %p189 = pneg %p188
    // Predicated region
    $region37: #{_lambda_.10} parent=5 // pred_check
      _
    $region38: #{_lambda_.10} parent=5 // pred_check_branch
      %191 = sbr.rel (%p188) target = $region40
    $region39: #{_lambda_.10} parent=5 // pred_region
      %s192 = ssub.s32 %s11, 1
      %p193 = scmp.lt.s32.totalorder %s16, 1
      %s194 = scalar_select %p193, %s16, 1
      %s195 = smul.addr %s194, 2
      %s196 = smul.addr %s195, 4
      %s197 = scalar_lea.vmem %s0, %s196
      %p198 = pneg %p37
      %p199 = pneg %p34
      %p200 = pneg %p58
      %p201 = pneg %p55
      %p202 = pneg %p79
      %p203 = pneg %p76
      %p204 = pneg %p100
      %p205 = pneg %p97
      %p206 = pneg %p121
      %p207 = pneg %p118
      %p208 = pneg %p147
      %p209 = pneg %p144
      %p210 = scmp.lt.s32.totalorder %s16, 1
      %s211 = scalar_select %p210, %s16, 1
      %s212 = smul.addr %s211, 2
      %s213 = smul.addr %s212, 8
      %s214 = scalar_lea.vmem %s5, %s213
      %p215 = scmp.lt.s32.totalorder %s16, 1
      %s216 = scalar_select %p215, %s16, 1
      %s217 = smul.addr %s216, 2
      %s218 = smul.addr %s217, 4
      %s219 = scalar_lea.vmem %s0, %s218
      %p220 = scmp.lt.s32.totalorder %s16, 1
      %s221 = scalar_select %p220, %s16, 1
      %s222 = smul.addr %s221, 2
      %s223 = smul.addr %s222, 8
      %s224 = scalar_lea.vmem %s5, %s223
      %v226 = vld [vmem:[%s219] sm:$0xff]
      %v227 = vld [vmem:[%s3] sm:$0xf]
      %v228 = vld [vmem:[%s4] sm:$0xf]
      %v230 = vcombine.high %v226, %v226
      %vm232 = vcmask 1043456
      %v233 = vsel %vm232, %v226, 0.0
      %v234 = vrot.slane %v233, 4
      %v235 = vadd.f32 %v233, %v234
      %v236 = vrot.slane %v235, 2
      %v237 = vadd.f32 %v235, %v236
      %v238 = vrot.slane %v237, 1
      %v239 = vadd.f32 %v237, %v238
      %v240 = vsel %vm232, %v230, 0.0
      %v241 = vrot.slane %v240, 4
      %v242 = vadd.f32 %v240, %v241
      %v243 = vrot.slane %v242, 2
      %v244 = vadd.f32 %v242, %v243
      %v245 = vrot.slane %v244, 1
      %v246 = vadd.f32 %v244, %v245
      %v247 = vrcp.pop 4.0
      %v248 = vmul.f32 %v239, %v247
      %v249 = vmul.f32 %v246, %v247
      %v252 = vcombine.low %v248, %v249
      %v254 = vsub.f32 %v226, %v252
      %v255 = vmul.f32 %v254, %v254
      %v257 = vcombine.high %v255, %v255
      %v259 = vsel %vm232, %v255, 0.0
      %v260 = vrot.slane %v259, 4
      %v261 = vadd.f32 %v259, %v260
      %v262 = vrot.slane %v261, 2
      %v263 = vadd.f32 %v261, %v262
      %v264 = vrot.slane %v263, 1
      %v265 = vadd.f32 %v263, %v264
      %v266 = vsel %vm232, %v257, 0.0
      %v267 = vrot.slane %v266, 4
      %v268 = vadd.f32 %v266, %v267
      %v269 = vrot.slane %v268, 2
      %v270 = vadd.f32 %v268, %v269
      %v271 = vrot.slane %v270, 1
      %v272 = vadd.f32 %v270, %v271
      %v273 = vmul.f32 %v265, %v247
      %v274 = vmul.f32 %v272, %v247
      %v275 = vadd.f32 %v273, 1e-06
      %v276 = vadd.f32 %v274, 1e-06
      %v277 = vrsqrt.pop %v275
      %v278 = vrsqrt.pop %v276
      %v281 = vcombine.low %v277, %v278
      %v283 = vmul.f32 %v254, %v281
      %285 = vset.pattern.permute.xlu0 0
      %286 = vperm.xlu0 %285, %v227
      %v287 = vpop.permute.xlu0 %286
      %v290 = vcombine.high %v283, %v283
      %v292 = vmul.f32 %v287, %v283
      %v293 = vmul.f32 %v287, %v290
      %295 = vset.pattern.permute.xlu0 0
      %296 = vperm.xlu0 %295, %v228
      %v297 = vpop.permute.xlu0 %296
      %v299 = vadd.f32 %v292, %v297
      %v300 = vadd.f32 %v293, %v297
      %v301 = vlaneseq
      %v302 = vand.u32 %v301, 127
      %v303 = vadd.s32 %v302, 128
      %v304 = vshra.s32 %v302, 4
      %v305 = vshra.s32 %v303, 4
      %v306 = vand.u32 %v302, 15
      %v307 = vand.u32 %v303, 15
      %308 = vrot.lane.b32.xlu0 %v299, 17
      %v309 = vpop.permute.xlu0 %308
      %310 = vrot.lane.b32.xlu0 %v300, 17
      %v311 = vpop.permute.xlu0 %310
      %vm312 = vcmp.lt.s32.totalorder %v302, 17
      %v313 = vsel %vm312, %v309, %v311
      %v314 = vsel %vm312, %v311, %v309
      %vm315 = vcmp.ge.s32.totalorder %v304, 1
      %vm316 = vcmp.ge.s32.totalorder %v305, 1
      %vm317 = vcmp.ge.s32.totalorder %v306, 1
      %vm318 = vcmp.ge.s32.totalorder %v307, 1
      %vm319 = vmand %vm315, %vm317
      %vm320 = vmand %vm316, %vm318
      %v321 = vsel %vm319, 1, 0
      %v322 = vsel %vm320, 1, 0
      %vm323 = vcmp.eq.s32.totalorder %v321, 1
      %vm324 = vcmp.eq.s32.totalorder %v322, 1
      %v325 = vsel %vm323, %v314, 0.0
      %v326 = vsel %vm324, %v313, 0.0
      %v327 = vld [vmem:[%s1] sm:$0xf]
      %v328 = vpack.c.bf16 %v325, %v325
      %v329 = vpack.c.bf16 %v326, %v326
      %330 = vrot.lane.b32.xlu0 %v299, 16
      %v331 = vpop.permute.xlu0 %330
      %332 = vrot.lane.b32.xlu0 %v300, 16
      %v333 = vpop.permute.xlu0 %332
      %vm334 = vcmp.lt.s32.totalorder %v302, 16
      %v335 = vsel %vm334, %v331, %v333
      %v336 = vsel %vm334, %v333, %v331
      %v337 = vsel %vm315, 1, 0
      %v338 = vsel %vm316, 1, 0
      %vm339 = vcmp.eq.s32.totalorder %v337, 1
      %vm340 = vcmp.eq.s32.totalorder %v338, 1
      %v341 = vsel %vm339, %v336, 0.0
      %v342 = vsel %vm340, %v335, 0.0
      %s343 = scalar_lea.vmem %s1, 4
      %v344 = vld [vmem:[%s343] sm:$0xf]
      %v345 = vpack.c.bf16 %v341, %v341
      %v346 = vpack.c.bf16 %v342, %v342
      %vm347 = vcmask 31744
      %v349 = vsel %vm347, %v344, 0
      %vm351 = vcmask 1041408
      %v353 = vsel %vm351, %v345, 0
      %v356 = vsel %vm351, %v346, 0
      %358 = vmatprep.subr.bf16.mxu0 0
      %359 = vmatpush1.bf16.msra.mxu0 0
      %360 = vmatprep.subr.bf16.mxu0 0
      %361 = vmatpush1.bf16.msra.mxu0 0
      %362 = vmatprep.subr.bf16.mxu0 0
      %363 = vmatpush1.bf16.msra.mxu0 0
      %364 = vmatprep.subr.bf16.mxu0 0
      %365 = vmatpush1.bf16.msra.mxu0 0
      %366 = vmatprep.subr.bf16.mxu0 0
      %367 = vmatpush1.bf16.msra.mxu0 0
      %368 = vmatprep.subr.bf16.mxu0 0
      %369 = vmatpush1.bf16.msra.mxu0 0
      %370 = vmatprep.subr.bf16.mxu0 0
      %371 = vmatpush1.bf16.msra.mxu0 0
      %372 = vmatprep.subr.bf16.mxu0 %v356
      %373 = vmatpush1.bf16.msra.mxu0 %v353
      %374 = vmatprep.subr.bf16.mxu0 0
      %375 = vmatpush2.bf16.msra.mxu0 0
      %376 = vmatprep.subr.bf16.mxu0 0
      %377 = vmatpush2.bf16.msra.mxu0 0
      %378 = vmatprep.subr.bf16.mxu0 0
      %379 = vmatpush2.bf16.msra.mxu0 0
      %380 = vmatprep.subr.bf16.mxu0 0
      %381 = vmatpush2.bf16.msra.mxu0 0
      %382 = vmatprep.subr.bf16.mxu0 0
      %383 = vmatpush2.bf16.msra.mxu0 0
      %384 = vmatprep.subr.bf16.mxu0 0
      %385 = vmatpush2.bf16.msra.mxu0 0
      %386 = vmatprep.subr.bf16.mxu0 0
      %387 = vmatpush2.bf16.msra.mxu0 0
      %388 = vmatprep.subr.bf16.mxu0 0
      %389 = vmatpush2.bf16.msra.mxu0 0
      %390 = vmatprep.mubr.bf16.mxu0 0
      %391 = vmatmul.mubr.bf16.gmra.mxu0 %v349
      %v392 = vpop.f32.mrf.mxu0
      %v393 = vadd.f32 0.0, %v392
      %v394 = vpop.f32.mrf.mxu0
      %v395 = vadd.f32 0.0, %v394
      %v396 = vpop.f32.mrf.mxu0
      %v397 = vpop.f32.mrf.mxu0
      %398 = vdwg.mxu0
      %v400 = vsel %vm347, %v327, 0
      %v403 = vsel %vm351, %v328, 0
      %v406 = vsel %vm351, %v329, 0
      %408 = vmatprep.subr.bf16.mxu0 0
      %409 = vmatpush1.bf16.msra.mxu0 0
      %410 = vmatprep.subr.bf16.mxu0 0
      %411 = vmatpush1.bf16.msra.mxu0 0
      %412 = vmatprep.subr.bf16.mxu0 0
      %413 = vmatpush1.bf16.msra.mxu0 0
      %414 = vmatprep.subr.bf16.mxu0 0
      %415 = vmatpush1.bf16.msra.mxu0 0
      %416 = vmatprep.subr.bf16.mxu0 0
      %417 = vmatpush1.bf16.msra.mxu0 0
      %418 = vmatprep.subr.bf16.mxu0 0
      %419 = vmatpush1.bf16.msra.mxu0 0
      %420 = vmatprep.subr.bf16.mxu0 0
      %421 = vmatpush1.bf16.msra.mxu0 0
      %422 = vmatprep.subr.bf16.mxu0 %v406
      %423 = vmatpush1.bf16.msra.mxu0 %v403
      %424 = vmatprep.subr.bf16.mxu0 0
      %425 = vmatpush2.bf16.msra.mxu0 0
      %426 = vmatprep.subr.bf16.mxu0 0
      %427 = vmatpush2.bf16.msra.mxu0 0
      %428 = vmatprep.subr.bf16.mxu0 0
      %429 = vmatpush2.bf16.msra.mxu0 0
      %430 = vmatprep.subr.bf16.mxu0 0
      %431 = vmatpush2.bf16.msra.mxu0 0
      %432 = vmatprep.subr.bf16.mxu0 0
      %433 = vmatpush2.bf16.msra.mxu0 0
      %434 = vmatprep.subr.bf16.mxu0 0
      %435 = vmatpush2.bf16.msra.mxu0 0
      %436 = vmatprep.subr.bf16.mxu0 0
      %437 = vmatpush2.bf16.msra.mxu0 0
      %438 = vmatprep.subr.bf16.mxu0 0
      %439 = vmatpush2.bf16.msra.mxu0 0
      %440 = vmatprep.mubr.bf16.mxu0 0
      %441 = vmatmul.mubr.bf16.gmra.mxu0 %v400
      %v442 = vpop.f32.mrf.mxu0
      %v443 = vadd.f32 %v393, %v442
      %v444 = vpop.f32.mrf.mxu0
      %v445 = vadd.f32 %v395, %v444
      %v446 = vpop.f32.mrf.mxu0
      %v447 = vpop.f32.mrf.mxu0
      %448 = vdwg.mxu0
      %449 = vrot.lane.b32.xlu0 %v299, 15
      %v450 = vpop.permute.xlu0 %449
      %451 = vrot.lane.b32.xlu0 %v300, 15
      %v452 = vpop.permute.xlu0 %451
      %vm453 = vcmp.lt.s32.totalorder %v302, 15
      %v454 = vsel %vm453, %v450, %v452
      %v455 = vsel %vm453, %v452, %v450
      %vm456 = vcmp.lt.s32.totalorder %v306, 15
      %vm457 = vcmp.lt.s32.totalorder %v307, 15
      %vm458 = vmand %vm315, %vm456
      %vm459 = vmand %vm316, %vm457
      %v460 = vsel %vm458, 1, 0
      %v461 = vsel %vm459, 1, 0
      %vm462 = vcmp.eq.s32.totalorder %v460, 1
      %vm463 = vcmp.eq.s32.totalorder %v461, 1
      %v464 = vsel %vm462, %v455, 0.0
      %v465 = vsel %vm463, %v454, 0.0
      %s466 = scalar_lea.vmem %s1, 8
      %v467 = vld [vmem:[%s466] sm:$0xf]
      %v468 = vpack.c.bf16 %v464, %v464
      %v469 = vpack.c.bf16 %v465, %v465
      %v471 = vsel %vm347, %v467, 0
      %v474 = vsel %vm351, %v468, 0
      %v477 = vsel %vm351, %v469, 0
      %479 = vmatprep.subr.bf16.mxu0 0
      %480 = vmatpush1.bf16.msra.mxu0 0
      %481 = vmatprep.subr.bf16.mxu0 0
      %482 = vmatpush1.bf16.msra.mxu0 0
      %483 = vmatprep.subr.bf16.mxu0 0
      %484 = vmatpush1.bf16.msra.mxu0 0
      %485 = vmatprep.subr.bf16.mxu0 0
      %486 = vmatpush1.bf16.msra.mxu0 0
      %487 = vmatprep.subr.bf16.mxu0 0
      %488 = vmatpush1.bf16.msra.mxu0 0
      %489 = vmatprep.subr.bf16.mxu0 0
      %490 = vmatpush1.bf16.msra.mxu0 0
      %491 = vmatprep.subr.bf16.mxu0 0
      %492 = vmatpush1.bf16.msra.mxu0 0
      %493 = vmatprep.subr.bf16.mxu0 %v477
      %494 = vmatpush1.bf16.msra.mxu0 %v474
      %495 = vmatprep.subr.bf16.mxu0 0
      %496 = vmatpush2.bf16.msra.mxu0 0
      %497 = vmatprep.subr.bf16.mxu0 0
      %498 = vmatpush2.bf16.msra.mxu0 0
      %499 = vmatprep.subr.bf16.mxu0 0
      %500 = vmatpush2.bf16.msra.mxu0 0
      %501 = vmatprep.subr.bf16.mxu0 0
      %502 = vmatpush2.bf16.msra.mxu0 0
      %503 = vmatprep.subr.bf16.mxu0 0
      %504 = vmatpush2.bf16.msra.mxu0 0
      %505 = vmatprep.subr.bf16.mxu0 0
      %506 = vmatpush2.bf16.msra.mxu0 0
      %507 = vmatprep.subr.bf16.mxu0 0
      %508 = vmatpush2.bf16.msra.mxu0 0
      %509 = vmatprep.subr.bf16.mxu0 0
      %510 = vmatpush2.bf16.msra.mxu0 0
      %511 = vmatprep.mubr.bf16.mxu0 0
      %512 = vmatmul.mubr.bf16.gmra.mxu0 %v471
      %v513 = vpop.f32.mrf.mxu0
      %v514 = vadd.f32 0.0, %v513
      %v515 = vpop.f32.mrf.mxu0
      %v516 = vadd.f32 0.0, %v515
      %v517 = vpop.f32.mrf.mxu0
      %v518 = vpop.f32.mrf.mxu0
      %519 = vdwg.mxu0
      %v520 = vadd.f32 %v443, %v514
      %v521 = vadd.f32 %v445, %v516
      %522 = vrot.lane.b32.xlu0 %v299, 1
      %v523 = vpop.permute.xlu0 %522
      %524 = vrot.lane.b32.xlu0 %v300, 1
      %v525 = vpop.permute.xlu0 %524
      %vm526 = vcmp.lt.s32.totalorder %v302, 1
      %v527 = vsel %vm526, %v523, %v525
      %v528 = vsel %vm526, %v525, %v523
      %v529 = vsel %vm317, 1, 0
      %v530 = vsel %vm318, 1, 0
      %vm531 = vcmp.eq.s32.totalorder %v529, 1
      %vm532 = vcmp.eq.s32.totalorder %v530, 1
      %v533 = vsel %vm531, %v528, 0.0
      %v534 = vsel %vm532, %v527, 0.0
      %s535 = scalar_lea.vmem %s1, 12
      %v536 = vld [vmem:[%s535] sm:$0xf]
      %v537 = vpack.c.bf16 %v533, %v533
      %v538 = vpack.c.bf16 %v534, %v534
      %v540 = vsel %vm347, %v536, 0
      %v543 = vsel %vm351, %v537, 0
      %v546 = vsel %vm351, %v538, 0
      %548 = vmatprep.subr.bf16.mxu0 0
      %549 = vmatpush1.bf16.msra.mxu0 0
      %550 = vmatprep.subr.bf16.mxu0 0
      %551 = vmatpush1.bf16.msra.mxu0 0
      %552 = vmatprep.subr.bf16.mxu0 0
      %553 = vmatpush1.bf16.msra.mxu0 0
      %554 = vmatprep.subr.bf16.mxu0 0
      %555 = vmatpush1.bf16.msra.mxu0 0
      %556 = vmatprep.subr.bf16.mxu0 0
      %557 = vmatpush1.bf16.msra.mxu0 0
      %558 = vmatprep.subr.bf16.mxu0 0
      %559 = vmatpush1.bf16.msra.mxu0 0
      %560 = vmatprep.subr.bf16.mxu0 0
      %561 = vmatpush1.bf16.msra.mxu0 0
      %562 = vmatprep.subr.bf16.mxu0 %v546
      %563 = vmatpush1.bf16.msra.mxu0 %v543
      %564 = vmatprep.subr.bf16.mxu0 0
      %565 = vmatpush2.bf16.msra.mxu0 0
      %566 = vmatprep.subr.bf16.mxu0 0
      %567 = vmatpush2.bf16.msra.mxu0 0
      %568 = vmatprep.subr.bf16.mxu0 0
      %569 = vmatpush2.bf16.msra.mxu0 0
      %570 = vmatprep.subr.bf16.mxu0 0
      %571 = vmatpush2.bf16.msra.mxu0 0
      %572 = vmatprep.subr.bf16.mxu0 0
      %573 = vmatpush2.bf16.msra.mxu0 0
      %574 = vmatprep.subr.bf16.mxu0 0
      %575 = vmatpush2.bf16.msra.mxu0 0
      %576 = vmatprep.subr.bf16.mxu0 0
      %577 = vmatpush2.bf16.msra.mxu0 0
      %578 = vmatprep.subr.bf16.mxu0 0
      %579 = vmatpush2.bf16.msra.mxu0 0
      %580 = vmatprep.mubr.bf16.mxu0 0
      %581 = vmatmul.mubr.bf16.gmra.mxu0 %v540
      %v582 = vpop.f32.mrf.mxu0
      %v583 = vadd.f32 0.0, %v582
      %v584 = vpop.f32.mrf.mxu0
      %v585 = vadd.f32 0.0, %v584
      %v586 = vpop.f32.mrf.mxu0
      %v587 = vpop.f32.mrf.mxu0
      %588 = vdwg.mxu0
      %v589 = vadd.f32 %v520, %v583
      %v590 = vadd.f32 %v521, %v585
      %s591 = scalar_lea.vmem %s1, 16
      %v592 = vld [vmem:[%s591] sm:$0xf]
      %v593 = vpack.c.bf16 %v299, %v299
      %v594 = vpack.c.bf16 %v300, %v300
      %v596 = vsel %vm347, %v592, 0
      %v599 = vsel %vm351, %v593, 0
      %v602 = vsel %vm351, %v594, 0
      %604 = vmatprep.subr.bf16.mxu0 0
      %605 = vmatpush1.bf16.msra.mxu0 0
      %606 = vmatprep.subr.bf16.mxu0 0
      %607 = vmatpush1.bf16.msra.mxu0 0
      %608 = vmatprep.subr.bf16.mxu0 0
      %609 = vmatpush1.bf16.msra.mxu0 0
      %610 = vmatprep.subr.bf16.mxu0 0
      %611 = vmatpush1.bf16.msra.mxu0 0
      %612 = vmatprep.subr.bf16.mxu0 0
      %613 = vmatpush1.bf16.msra.mxu0 0
      %614 = vmatprep.subr.bf16.mxu0 0
      %615 = vmatpush1.bf16.msra.mxu0 0
      %616 = vmatprep.subr.bf16.mxu0 0
      %617 = vmatpush1.bf16.msra.mxu0 0
      %618 = vmatprep.subr.bf16.mxu0 %v602
      %619 = vmatpush1.bf16.msra.mxu0 %v599
      %620 = vmatprep.subr.bf16.mxu0 0
      %621 = vmatpush2.bf16.msra.mxu0 0
      %622 = vmatprep.subr.bf16.mxu0 0
      %623 = vmatpush2.bf16.msra.mxu0 0
      %624 = vmatprep.subr.bf16.mxu0 0
      %625 = vmatpush2.bf16.msra.mxu0 0
      %626 = vmatprep.subr.bf16.mxu0 0
      %627 = vmatpush2.bf16.msra.mxu0 0
      %628 = vmatprep.subr.bf16.mxu0 0
      %629 = vmatpush2.bf16.msra.mxu0 0
      %630 = vmatprep.subr.bf16.mxu0 0
      %631 = vmatpush2.bf16.msra.mxu0 0
      %632 = vmatprep.subr.bf16.mxu0 0
      %633 = vmatpush2.bf16.msra.mxu0 0
      %634 = vmatprep.subr.bf16.mxu0 0
      %635 = vmatpush2.bf16.msra.mxu0 0
      %636 = vmatprep.mubr.bf16.mxu0 0
      %637 = vmatmul.mubr.bf16.gmra.mxu0 %v596
      %v638 = vpop.f32.mrf.mxu0
      %v639 = vadd.f32 0.0, %v638
      %v640 = vpop.f32.mrf.mxu0
      %v641 = vadd.f32 0.0, %v640
      %v642 = vpop.f32.mrf.mxu0
      %v643 = vpop.f32.mrf.mxu0
      %644 = vdwg.mxu0
      %v645 = vadd.f32 %v589, %v639
      %v646 = vadd.f32 %v590, %v641
      %647 = vrot.lane.b32.xlu0 %v299, 127
      %v648 = vpop.permute.xlu0 %647
      %649 = vrot.lane.b32.xlu0 %v300, 127
      %v650 = vpop.permute.xlu0 %649
      %vm651 = vcmp.lt.s32.totalorder %v302, 127
      %v652 = vsel %vm651, %v648, %v650
      %v653 = vsel %vm651, %v650, %v648
      %v654 = vsel %vm456, 1, 0
      %v655 = vsel %vm457, 1, 0
      %vm656 = vcmp.eq.s32.totalorder %v654, 1
      %vm657 = vcmp.eq.s32.totalorder %v655, 1
      %v658 = vsel %vm656, %v652, 0.0
      %v659 = vsel %vm657, %v653, 0.0
      %s660 = scalar_lea.vmem %s1, 20
      %v661 = vld [vmem:[%s660] sm:$0xf]
      %v662 = vpack.c.bf16 %v658, %v658
      %v663 = vpack.c.bf16 %v659, %v659
      %v665 = vsel %vm347, %v661, 0
      %v668 = vsel %vm351, %v662, 0
      %v671 = vsel %vm351, %v663, 0
      %673 = vmatprep.subr.bf16.mxu0 0
      %674 = vmatpush1.bf16.msra.mxu0 0
      %675 = vmatprep.subr.bf16.mxu0 0
      %676 = vmatpush1.bf16.msra.mxu0 0
      %677 = vmatprep.subr.bf16.mxu0 0
      %678 = vmatpush1.bf16.msra.mxu0 0
      %679 = vmatprep.subr.bf16.mxu0 0
      %680 = vmatpush1.bf16.msra.mxu0 0
      %681 = vmatprep.subr.bf16.mxu0 0
      %682 = vmatpush1.bf16.msra.mxu0 0
      %683 = vmatprep.subr.bf16.mxu0 0
      %684 = vmatpush1.bf16.msra.mxu0 0
      %685 = vmatprep.subr.bf16.mxu0 0
      %686 = vmatpush1.bf16.msra.mxu0 0
      %687 = vmatprep.subr.bf16.mxu0 %v671
      %688 = vmatpush1.bf16.msra.mxu0 %v668
      %689 = vmatprep.subr.bf16.mxu0 0
      %690 = vmatpush2.bf16.msra.mxu0 0
      %691 = vmatprep.subr.bf16.mxu0 0
      %692 = vmatpush2.bf16.msra.mxu0 0
      %693 = vmatprep.subr.bf16.mxu0 0
      %694 = vmatpush2.bf16.msra.mxu0 0
      %695 = vmatprep.subr.bf16.mxu0 0
      %696 = vmatpush2.bf16.msra.mxu0 0
      %697 = vmatprep.subr.bf16.mxu0 0
      %698 = vmatpush2.bf16.msra.mxu0 0
      %699 = vmatprep.subr.bf16.mxu0 0
      %700 = vmatpush2.bf16.msra.mxu0 0
      %701 = vmatprep.subr.bf16.mxu0 0
      %702 = vmatpush2.bf16.msra.mxu0 0
      %703 = vmatprep.subr.bf16.mxu0 0
      %704 = vmatpush2.bf16.msra.mxu0 0
      %705 = vmatprep.mubr.bf16.mxu0 0
      %706 = vmatmul.mubr.bf16.gmra.mxu0 %v665
      %v707 = vpop.f32.mrf.mxu0
      %v708 = vadd.f32 0.0, %v707
      %v709 = vpop.f32.mrf.mxu0
      %v710 = vadd.f32 0.0, %v709
      %v711 = vpop.f32.mrf.mxu0
      %v712 = vpop.f32.mrf.mxu0
      %713 = vdwg.mxu0
      %v714 = vadd.f32 %v645, %v708
      %v715 = vadd.f32 %v646, %v710
      %716 = vrot.lane.b32.xlu0 %v299, 113
      %v717 = vpop.permute.xlu0 %716
      %718 = vrot.lane.b32.xlu0 %v300, 113
      %v719 = vpop.permute.xlu0 %718
      %vm720 = vcmp.lt.s32.totalorder %v302, 113
      %v721 = vsel %vm720, %v717, %v719
      %v722 = vsel %vm720, %v719, %v717
      %vm723 = vcmp.lt.s32.totalorder %v304, 15
      %vm724 = vcmp.lt.s32.totalorder %v305, 15
      %vm725 = vmand %vm723, %vm317
      %vm726 = vmand %vm724, %vm318
      %v727 = vsel %vm725, 1, 0
      %v728 = vsel %vm726, 1, 0
      %vm729 = vcmp.eq.s32.totalorder %v727, 1
      %vm730 = vcmp.eq.s32.totalorder %v728, 1
      %v731 = vsel %vm729, %v721, 0.0
      %v732 = vsel %vm730, %v722, 0.0
      %s733 = scalar_lea.vmem %s1, 24
      %v734 = vld [vmem:[%s733] sm:$0xf]
      %v735 = vpack.c.bf16 %v731, %v731
      %v736 = vpack.c.bf16 %v732, %v732
      %v738 = vsel %vm347, %v734, 0
      %v741 = vsel %vm351, %v735, 0
      %v744 = vsel %vm351, %v736, 0
      %746 = vmatprep.subr.bf16.mxu0 0
      %747 = vmatpush1.bf16.msra.mxu0 0
      %748 = vmatprep.subr.bf16.mxu0 0
      %749 = vmatpush1.bf16.msra.mxu0 0
      %750 = vmatprep.subr.bf16.mxu0 0
      %751 = vmatpush1.bf16.msra.mxu0 0
      %752 = vmatprep.subr.bf16.mxu0 0
      %753 = vmatpush1.bf16.msra.mxu0 0
      %754 = vmatprep.subr.bf16.mxu0 0
      %755 = vmatpush1.bf16.msra.mxu0 0
      %756 = vmatprep.subr.bf16.mxu0 0
      %757 = vmatpush1.bf16.msra.mxu0 0
      %758 = vmatprep.subr.bf16.mxu0 0
      %759 = vmatpush1.bf16.msra.mxu0 0
      %760 = vmatprep.subr.bf16.mxu0 %v744
      %761 = vmatpush1.bf16.msra.mxu0 %v741
      %762 = vmatprep.subr.bf16.mxu0 0
      %763 = vmatpush2.bf16.msra.mxu0 0
      %764 = vmatprep.subr.bf16.mxu0 0
      %765 = vmatpush2.bf16.msra.mxu0 0
      %766 = vmatprep.subr.bf16.mxu0 0
      %767 = vmatpush2.bf16.msra.mxu0 0
      %768 = vmatprep.subr.bf16.mxu0 0
      %769 = vmatpush2.bf16.msra.mxu0 0
      %770 = vmatprep.subr.bf16.mxu0 0
      %771 = vmatpush2.bf16.msra.mxu0 0
      %772 = vmatprep.subr.bf16.mxu0 0
      %773 = vmatpush2.bf16.msra.mxu0 0
      %774 = vmatprep.subr.bf16.mxu0 0
      %775 = vmatpush2.bf16.msra.mxu0 0
      %776 = vmatprep.subr.bf16.mxu0 0
      %777 = vmatpush2.bf16.msra.mxu0 0
      %778 = vmatprep.mubr.bf16.mxu0 0
      %779 = vmatmul.mubr.bf16.gmra.mxu0 %v738
      %v780 = vpop.f32.mrf.mxu0
      %v781 = vadd.f32 0.0, %v780
      %v782 = vpop.f32.mrf.mxu0
      %v783 = vadd.f32 0.0, %v782
      %v784 = vpop.f32.mrf.mxu0
      %v785 = vpop.f32.mrf.mxu0
      %786 = vdwg.mxu0
      %v787 = vadd.f32 %v714, %v781
      %v788 = vadd.f32 %v715, %v783
      %789 = vrot.lane.b32.xlu0 %v299, 112
      %v790 = vpop.permute.xlu0 %789
      %791 = vrot.lane.b32.xlu0 %v300, 112
      %v792 = vpop.permute.xlu0 %791
      %vm793 = vcmp.lt.s32.totalorder %v302, 112
      %v794 = vsel %vm793, %v790, %v792
      %v795 = vsel %vm793, %v792, %v790
      %v796 = vsel %vm723, 1, 0
      %v797 = vsel %vm724, 1, 0
      %vm798 = vcmp.eq.s32.totalorder %v796, 1
      %vm799 = vcmp.eq.s32.totalorder %v797, 1
      %v800 = vsel %vm798, %v794, 0.0
      %v801 = vsel %vm799, %v795, 0.0
      %s802 = scalar_lea.vmem %s1, 28
      %v803 = vld [vmem:[%s802] sm:$0xf]
      %v804 = vpack.c.bf16 %v800, %v800
      %v805 = vpack.c.bf16 %v801, %v801
      %v807 = vsel %vm347, %v803, 0
      %v810 = vsel %vm351, %v804, 0
      %v813 = vsel %vm351, %v805, 0
      %815 = vmatprep.subr.bf16.mxu0 0
      %816 = vmatpush1.bf16.msra.mxu0 0
      %817 = vmatprep.subr.bf16.mxu0 0
      %818 = vmatpush1.bf16.msra.mxu0 0
      %819 = vmatprep.subr.bf16.mxu0 0
      %820 = vmatpush1.bf16.msra.mxu0 0
      %821 = vmatprep.subr.bf16.mxu0 0
      %822 = vmatpush1.bf16.msra.mxu0 0
      %823 = vmatprep.subr.bf16.mxu0 0
      %824 = vmatpush1.bf16.msra.mxu0 0
      %825 = vmatprep.subr.bf16.mxu0 0
      %826 = vmatpush1.bf16.msra.mxu0 0
      %827 = vmatprep.subr.bf16.mxu0 0
      %828 = vmatpush1.bf16.msra.mxu0 0
      %829 = vmatprep.subr.bf16.mxu0 %v813
      %830 = vmatpush1.bf16.msra.mxu0 %v810
      %831 = vmatprep.subr.bf16.mxu0 0
      %832 = vmatpush2.bf16.msra.mxu0 0
      %833 = vmatprep.subr.bf16.mxu0 0
      %834 = vmatpush2.bf16.msra.mxu0 0
      %835 = vmatprep.subr.bf16.mxu0 0
      %836 = vmatpush2.bf16.msra.mxu0 0
      %837 = vmatprep.subr.bf16.mxu0 0
      %838 = vmatpush2.bf16.msra.mxu0 0
      %839 = vmatprep.subr.bf16.mxu0 0
      %840 = vmatpush2.bf16.msra.mxu0 0
      %841 = vmatprep.subr.bf16.mxu0 0
      %842 = vmatpush2.bf16.msra.mxu0 0
      %843 = vmatprep.subr.bf16.mxu0 0
      %844 = vmatpush2.bf16.msra.mxu0 0
      %845 = vmatprep.subr.bf16.mxu0 0
      %846 = vmatpush2.bf16.msra.mxu0 0
      %847 = vmatprep.mubr.bf16.mxu0 0
      %848 = vmatmul.mubr.bf16.gmra.mxu0 %v807
      %v849 = vpop.f32.mrf.mxu0
      %v850 = vadd.f32 0.0, %v849
      %v851 = vpop.f32.mrf.mxu0
      %v852 = vadd.f32 0.0, %v851
      %v853 = vpop.f32.mrf.mxu0
      %v854 = vpop.f32.mrf.mxu0
      %855 = vdwg.mxu0
      %v856 = vadd.f32 %v787, %v850
      %v857 = vadd.f32 %v788, %v852
      %858 = vrot.lane.b32.xlu0 %v299, 111
      %v859 = vpop.permute.xlu0 %858
      %860 = vrot.lane.b32.xlu0 %v300, 111
      %v861 = vpop.permute.xlu0 %860
      %vm862 = vcmp.lt.s32.totalorder %v302, 111
      %v863 = vsel %vm862, %v859, %v861
      %v864 = vsel %vm862, %v861, %v859
      %vm865 = vmand %vm723, %vm456
      %vm866 = vmand %vm724, %vm457
      %v867 = vsel %vm865, 1, 0
      %v868 = vsel %vm866, 1, 0
      %vm869 = vcmp.eq.s32.totalorder %v867, 1
      %vm870 = vcmp.eq.s32.totalorder %v868, 1
      %v871 = vsel %vm869, %v863, 0.0
      %v872 = vsel %vm870, %v864, 0.0
      %s873 = scalar_lea.vmem %s1, 32
      %v874 = vld [vmem:[%s873] sm:$0xf]
      %v875 = vpack.c.bf16 %v871, %v871
      %v876 = vpack.c.bf16 %v872, %v872
      %v878 = vsel %vm347, %v874, 0
      %v881 = vsel %vm351, %v875, 0
      %v884 = vsel %vm351, %v876, 0
      %886 = vmatprep.subr.bf16.mxu0 0
      %887 = vmatpush1.bf16.msra.mxu0 0
      %888 = vmatprep.subr.bf16.mxu0 0
      %889 = vmatpush1.bf16.msra.mxu0 0
      %890 = vmatprep.subr.bf16.mxu0 0
      %891 = vmatpush1.bf16.msra.mxu0 0
      %892 = vmatprep.subr.bf16.mxu0 0
      %893 = vmatpush1.bf16.msra.mxu0 0
      %894 = vmatprep.subr.bf16.mxu0 0
      %895 = vmatpush1.bf16.msra.mxu0 0
      %896 = vmatprep.subr.bf16.mxu0 0
      %897 = vmatpush1.bf16.msra.mxu0 0
      %898 = vmatprep.subr.bf16.mxu0 0
      %899 = vmatpush1.bf16.msra.mxu0 0
      %900 = vmatprep.subr.bf16.mxu0 %v884
      %901 = vmatpush1.bf16.msra.mxu0 %v881
      %902 = vmatprep.subr.bf16.mxu0 0
      %903 = vmatpush2.bf16.msra.mxu0 0
      %904 = vmatprep.subr.bf16.mxu0 0
      %905 = vmatpush2.bf16.msra.mxu0 0
      %906 = vmatprep.subr.bf16.mxu0 0
      %907 = vmatpush2.bf16.msra.mxu0 0
      %908 = vmatprep.subr.bf16.mxu0 0
      %909 = vmatpush2.bf16.msra.mxu0 0
      %910 = vmatprep.subr.bf16.mxu0 0
      %911 = vmatpush2.bf16.msra.mxu0 0
      %912 = vmatprep.subr.bf16.mxu0 0
      %913 = vmatpush2.bf16.msra.mxu0 0
      %914 = vmatprep.subr.bf16.mxu0 0
      %915 = vmatpush2.bf16.msra.mxu0 0
      %916 = vmatprep.subr.bf16.mxu0 0
      %917 = vmatpush2.bf16.msra.mxu0 0
      %918 = vmatprep.mubr.bf16.mxu0 0
      %919 = vmatmul.mubr.bf16.gmra.mxu0 %v878
      %v920 = vpop.f32.mrf.mxu0
      %v921 = vadd.f32 0.0, %v920
      %v922 = vpop.f32.mrf.mxu0
      %v923 = vadd.f32 0.0, %v922
      %v924 = vpop.f32.mrf.mxu0
      %v925 = vpop.f32.mrf.mxu0
      %926 = vdwg.mxu0
      %v927 = vadd.f32 %v856, %v921
      %v928 = vadd.f32 %v857, %v923
      %v929 = vld [vmem:[%s2] sm:$0xff]
      %931 = vset.pattern.permute.xlu0 0
      %932 = vperm.xlu0 %931, %v929
      %v933 = vpop.permute.xlu0 %932
      %v935 = vadd.f32 %v927, %v933
      %v936 = vadd.f32 %v928, %v933
      %v937 = vmul.f32 %v935, 0.5
      %v938 = vmul.f32 %v936, 0.5
      %v939 = vmul.f32 %v935, 0.044715
      %v940 = vmul.f32 %v936, 0.044715
      %v941 = vmul.f32 %v939, %v935
      %v942 = vmul.f32 %v940, %v936
      %v943 = vmul.f32 %v941, %v935
      %v944 = vmul.f32 %v942, %v936
      %v945 = vadd.f32 %v935, %v943
      %v946 = vadd.f32 %v936, %v944
      %v947 = vmul.f32 %v945, 0.7978846
      %v948 = vmul.f32 %v946, 0.7978846
      %v949 = vtanh.pop %v947
      %v950 = vtanh.pop %v948
      %v951 = vadd.f32 %v949, 1.0
      %v952 = vadd.f32 %v950, 1.0
      %v953 = vmul.f32 %v937, %v951
      %v954 = vmul.f32 %v938, %v952
      %955 = vst [vmem:[%s224] sm:$0xff] %v953
      %956 = vst [vmem:[%s224 + $0x8] sm:$0xff] %v954
      %p957 = scmp.lt.s32.totalorder %s16, 1
      %s958 = scalar_select %p957, %s16, 1
      %s959 = smul.addr %s958, 2
      %s960 = smul.addr %s959, 8
      %s961 = scalar_lea.vmem %s5, %s960
      // Predicated region
      $region41: #{_lambda_.10} parent=39 // pred_check
        %p962 = pneg %p144
      $region42: #{_lambda_.10} parent=39 // pred_check_branch
        %964 = sbr.rel (%p962) target = $region44
      $region43: #{_lambda_.10} parent=39 // pred_region
        _
      $region44: #{_lambda_.10} parent=39 // pred_fallthru
        _
    $region40: #{_lambda_.10} parent=5 // pred_fallthru
      _
    %p965 = scmp.le.s32.totalorder 2, %s11
    // Predicated region
    $region45: #{_lambda_.10} parent=5 // pred_check
      %p966 = pneg %p965
    $region46: #{_lambda_.10} parent=5 // pred_check_branch
      %968 = sbr.rel (%p966) target = $region48
    $region47: #{_lambda_.10} parent=5 // pred_region
      %s969 = ssub.s32 %s11, 2
      // Predicated region
      $region49: #{_lambda_.10} parent=47 // pred_check
        %p970 = pneg %p150
      $region50: #{_lambda_.10} parent=47 // pred_check_branch
        %972 = sbr.rel (%p970) target = $region52
      $region51: #{_lambda_.10} parent=47 // pred_region
        %p973 = scmp.lt.s32.totalorder %s17, 1
        %s974 = scalar_select %p973, %s17, 1
        %s975 = smul.addr %s974, 2
        %s976 = smul.addr %s975, 8
        %s977 = scalar_lea.vmem %s5, %s976
      $region52: #{_lambda_.10} parent=47 // pred_fallthru
        _
    $region48: #{_lambda_.10} parent=5 // pred_fallthru
      _
  $region6: #{_lambda_.10} parent=0 // loop_footer
    %s15 = sadd.s32 1, %s11
  $region7: #{_lambda_.10} parent=0 // loop_footer_branch
    %10 = sbr.rel target = $region3
  $region8: #{_lambda_.10} parent=0 // loop_exit
    _

</llo_original>
